<compile_context>
chip_gen: v7x
topology: tpu7x:2x2x1
jax: 0.10.0
libtpu: 0.0.40
codegen_flags: <defaults>
</compile_context>

<pallas_src>
import functools

import numpy as np
import jax
import jax.numpy as jnp
from jax.experimental import pallas as pl
from jax.experimental.pallas import tpu as pltpu


# ----------------------------------------------------------------------------
# Fused kernel
# ----------------------------------------------------------------------------
def _maxpool2x2(y_flat, b, h, w, c):
    """2x2 / stride-2 max pool. y_flat: (b*h*w, c) f32, rows ordered (b, i, j)."""
    hh, wh = h // 2, w // 2
    y = y_flat.reshape(b, hh, 2, wh, 2, c)
    y = jnp.maximum(y[:, :, 0], y[:, :, 1])          # (b, hh, wh, 2, c)
    y = jnp.maximum(y[:, :, :, 0], y[:, :, :, 1])    # (b, hh, wh, c)
    return y


def _conv_bn_relu_pool(x, w_ref, b_ref, mxu_dtype):
    """One inner layer on an in-VMEM f32 activation: (b, h, w, c) -> (b, h/2, w/2, cout)."""
    b, h, w, c = x.shape
    cout = w_ref.shape[-1]
    # Zero pad H and W by 1 entirely in-kernel (no HBM round trip, no wrapper jnp.pad).
    zr = jnp.zeros((b, 1, w, c), x.dtype)
    xp = jnp.concatenate([zr, x, zr], axis=1)            # (b, h+2, w,   c)
    zc = jnp.zeros((b, h + 2, 1, c), x.dtype)
    xp = jnp.concatenate([zc, xp, zc], axis=2)           # (b, h+2, w+2, c)
    # im2col -> single MXU matmul with K = 9*c (576 for c=64).  Each tap is cast to the
    # MXU dtype *before* the lane-dim concat so the 9x-expanded patch matrix (the
    # largest live activation) is materialized in bf16 instead of f32.
    taps = [xp[:, ky:ky + h, kx:kx + w, :].astype(mxu_dtype)
            for ky in range(3) for kx in range(3)]
    patches = jnp.concatenate(taps, axis=-1).reshape(b * h * w, 9 * c)
    y = jnp.dot(patches, w_ref[...], preferred_element_type=jnp.float32)
    y = jnp.maximum(y + b_ref[...], 0.0)                 # folded-BN bias + ReLU, f32
    return _maxpool2x2(y, b, h, w, cout)


def _conv4_fused_kernel(x0_ref, w0_ref, b0_ref, w1_ref, b1_ref, w2_ref, b2_ref,
                        w3_ref, b3_ref, o_ref, *, hw, mxu_dtype):
    """Whole Conv4 forward for a block of images.

    x0_ref: (B, H*W, K0)   layer-0 im2col patches (K zero-padded 27->32), mxu_dtype
    wK_ref: (K, 64)        BN-scale-folded weights, mxu_dtype
    bK_ref: (1, 64)        folded BN bias, f32
    o_ref:  (B, 64)        per-image features after global average pooling, f32
    """
    h, w = hw
    b = x0_ref.shape[0]
    cout = o_ref.shape[-1]

    # Layer 0 (Cin=3): patches pre-built in the wrapper -> one matmul, K=32.
    p0 = x0_ref[...].reshape(b * h * w, x0_ref.shape[-1])
    y = jnp.dot(p0, w0_ref[...], preferred_element_type=jnp.float32)
    y = jnp.maximum(y + b0_ref[...], 0.0)
    x = _maxpool2x2(y, b, h, w, cout)                    # (b, h/2, w/2, 64) f32

    # Layers 1-3 (Cin=64): pad + im2col (bf16 patches) + matmul (K=576) + bias/ReLU + pool.
    x = _conv_bn_relu_pool(x, w1_ref, b1_ref, mxu_dtype)
    x = _conv_bn_relu_pool(x, w2_ref, b2_ref, mxu_dtype)
    x = _conv_bn_relu_pool(x, w3_ref, b3_ref, mxu_dtype)

    # Global average pool over the remaining spatial positions (f32).
    bb, hf, wf, c = x.shape
    feats = x.reshape(bb, hf * wf, c)
    o_ref[...] = (jnp.sum(feats, axis=1) * (1.0 / float(hf * wf))).astype(o_ref.dtype)


# ----------------------------------------------------------------------------
# Wrapper: generation-aware block sizing, BN folding, layout plumbing
# ----------------------------------------------------------------------------
def _vmem_capacity_bytes():
    """Physical VMEM of the attached TPU (for generation-aware sizing); safe fallback."""
    try:
        cap = getattr(pltpu.get_tpu_info(), "vmem_capacity_bytes", None)
        if cap:
            return int(cap)
    except Exception:
        pass
    return 64 * 1024 * 1024      # v7x-sized lower bound; v5e/v6e have 128 MiB


def _per_image_vmem_bytes(h, w, mxu_bytes):
    """Rough per-image VMEM footprint of the fused kernel (dominant live arrays)."""
    hw = h * w
    x0 = hw * 128 * mxu_bytes * 2                # layer-0 block (lanes padded to 128), 2 buffers
    y0 = hw * 64 * 4                             # layer-0 f32 matmul output
    l1 = (hw // 4) * 9 * 64 * (4 + mxu_bytes)    # layer-1 f32 taps (transient) + patch matrix
    l2 = (hw // 16) * 9 * 64 * (4 + mxu_bytes)   # layers 2-3 (layer 3 negligible)
    misc = hw * 64 * 2 + (64 << 10)              # pools, bias/relu temporaries, slack
    return x0 + y0 + l1 + l2 + misc


def _choose_batch_block(n, per_image_bytes, budget_bytes):
    """Images per grid step + padded batch.  Blocks are multiples of 8 whenever there is
    more than one grid step (output block-shape constraint)."""
    cap = max(8, min(128, int(budget_bytes // max(per_image_bytes, 1))))
    if n <= cap:
        if n < 32:
            return n, n                          # single step; block == full array
        # Split a large single step into 2 balanced "parallel" steps so a 2-TensorCore
        # chip (v7x) gets work on both cores; near-free on single-TC v5e/v6e.
        half = -(-n // 2)
        bb = -(-half // 8) * 8
    else:
        bb = (cap // 8) * 8
    n_pad = -(-n // bb) * bb
    return bb, n_pad


def _im2col_layer0(x_nhwc, mxu_dtype, k_pad):
    """(N, H, W, 3) -> (N, H*W, k_pad) patch matrix for the first conv (K zero-padded)."""
    n, h, w, c = x_nhwc.shape
    xp = jnp.pad(x_nhwc, ((0, 0), (1, 1), (1, 1), (0, 0)))
    taps = [xp[:, ky:ky + h, kx:kx + w, :] for ky in range(3) for kx in range(3)]
    p = jnp.concatenate(taps, axis=-1).reshape(n, h * w, 9 * c)
    if k_pad > 9 * c:
        p = jnp.pad(p, ((0, 0), (0, 0), (0, k_pad - 9 * c)))
    return p.astype(mxu_dtype)


def conv4_forward(x_nchw, params, *, mxu_dtype=jnp.bfloat16, batch_block=None):
    """Full Conv4 forward (avg_pool=True). Input NCHW float32, output (batch, 64) float32.

    mxu_dtype=jnp.bfloat16 is the recommended (shipping) path on v6e/v7x; the f32 path
    is an exact-numerics correctness check (the MXU emulates f32 multi-pass).
    """
    n, cin, h, w = x_nchw.shape
    assert h % 16 == 0 and w % 16 == 0, (
        "Conv4 with 4x MaxPool2d(2) requires spatial dims divisible by 16")
    # TODO(synk): odd intermediate spatial dims (PyTorch floor pooling) are not supported.

    mxu_bytes = jnp.dtype(mxu_dtype).itemsize
    k0 = ((9 * cin + 7) // 8) * 8                        # layer-0 K zero-padded (27 -> 32)

    # Generation-aware sizing: v7x has 64 MiB VMEM/TC, v5e/v6e 128 MiB.  Use ~70% of
    # physical as the scoped limit and budget roughly half of that for the batched
    # activations (the rest covers double buffers, weights and compiler temporaries).
    vmem_limit = min(int(_vmem_capacity_bytes() * 0.70), 96 * 1024 * 1024)
    if batch_block is None:
        batch_block, n_pad = _choose_batch_block(
            n, _per_image_vmem_bytes(h, w, mxu_bytes), vmem_limit // 2)
    else:
        n_pad = -(-n // batch_block) * batch_block
        assert batch_block % 8 == 0 or n_pad == batch_block, (
            "batch_block must be a multiple of 8 when it spans multiple grid steps")
    grid = (n_pad // batch_block,)

    x_nhwc = jnp.transpose(x_nchw, (0, 2, 3, 1))
    if n_pad != n:
        # Pad the batch with zero images (at most one block of throwaway work) instead of
        # shrinking batch_block to a divisor of an awkward N.
        x_nhwc = jnp.pad(x_nhwc, ((0, n_pad - n), (0, 0), (0, 0), (0, 0)))
    x0 = _im2col_layer0(x_nhwc, mxu_dtype, k0)           # (n_pad, H*W, 32)

    # Fold BN scale into the conv weights; reshape HWIO -> (9*Cin, Cout); cast for the MXU.
    ws, bs = [], []
    for li, (wgt, scale, bias) in enumerate(params):
        kh, kw, ci, co = wgt.shape
        wf = (wgt * scale.reshape(1, 1, 1, co)).reshape(kh * kw * ci, co)
        if li == 0 and wf.shape[0] < k0:                 # match the zero-padded x0 K
            wf = jnp.pad(wf, ((0, k0 - wf.shape[0]), (0, 0)))
        ws.append(wf.astype(mxu_dtype))
        bs.append(bias.reshape(1, co).astype(jnp.float32))
    cout = ws[0].shape[-1]

    kernel = functools.partial(_conv4_fused_kernel, hw=(h, w), mxu_dtype=mxu_dtype)
    # Constant index_map => weights/biases are DMA'd once and stay resident across steps.
    const_spec = lambda shape: pl.BlockSpec(shape, lambda i: (0, 0))  # noqa: E731

    out = pl.pallas_call(
        kernel,
        out_shape=jax.ShapeDtypeStruct((n_pad, cout), jnp.float32),
        grid=grid,
        in_specs=[
            pl.BlockSpec((batch_block, h * w, k0), lambda i: (i, 0, 0)),
            const_spec(ws[0].shape), const_spec(bs[0].shape),
            const_spec(ws[1].shape), const_spec(bs[1].shape),
            const_spec(ws[2].shape), const_spec(bs[2].shape),
            const_spec(ws[3].shape), const_spec(bs[3].shape),
        ],
        out_specs=pl.BlockSpec((batch_block, cout), lambda i: (i, 0)),
        compiler_params=pltpu.CompilerParams(
            dimension_semantics=("parallel",),
            vmem_limit_bytes=vmem_limit),
    )(x0, ws[0], bs[0], ws[1], bs[1], ws[2], bs[2], ws[3], bs[3])
    return out[:n]


# ----------------------------------------------------------------------------
# Pure-JAX reference (for correctness check)
# ----------------------------------------------------------------------------
def conv4_reference(x_nchw, params):
    x = jnp.transpose(x_nchw, (0, 2, 3, 1))
    for (w, scale, bias) in params:
        y = jax.lax.conv_general_dilated(
            x, w, window_strides=(1, 1), padding=((1, 1), (1, 1)),
            dimension_numbers=("NHWC", "HWIO", "NHWC"))
        y = jnp.maximum(y * scale.reshape(1, 1, 1, -1) + bias.reshape(1, 1, 1, -1), 0.0)
        n, h, wd, c = y.shape
        x = jnp.max(y.reshape(n, h // 2, 2, wd // 2, 2, c), axis=(2, 4))
    return jnp.mean(x, axis=(1, 2))


# ----------------------------------------------------------------------------
# Deterministic parameter init (shapes from Conv4.__init__; BN folded, eval mode)
# ----------------------------------------------------------------------------
def init_params(key):
    layer_dims = [(3, 64), (64, 64), (64, 64), (64, 64)]
    eps = 1e-5
    params = []
    for cin, cout in layer_dims:
        key, k1, k2, k3, k4, k5 = jax.random.split(key, 6)
        w = (jax.random.normal(k1, (3, 3, cin, cout), jnp.float32)
             * (1.0 / float(np.sqrt(9 * cin))))
        gamma = 1.0 + 0.1 * jax.random.normal(k2, (cout,), jnp.float32)
        beta = 0.1 * jax.random.normal(k3, (cout,), jnp.float32)
        running_mean = 0.1 * jax.random.normal(k4, (cout,), jnp.float32)
        running_var = jnp.abs(1.0 + 0.1 * jax.random.normal(k5, (cout,), jnp.float32))
        scale = (gamma / jnp.sqrt(running_var + eps)).astype(jnp.float32)
        bias = (beta - running_mean * scale).astype(jnp.float32)
        params.append((w, scale, bias))
    return params


if __name__ == "__main__":
    key = jax.random.PRNGKey(0)
    k_x, k_p = jax.random.split(key)

    # Small NCHW input consistent with the module (3 input channels, 16x16 spatial).
    x_nchw = jax.random.normal(k_x, (2, 3, 16, 16), jnp.float32)
    params = init_params(k_p)

    ref = np.asarray(conv4_reference(x_nchw, params))

    # Exact-f32 MXU path: tight check against the pure-JAX reference.
    fwd_f32 = jax.jit(functools.partial(conv4_forward, mxu_dtype=jnp.float32))
    out_f32 = jax.block_until_ready(fwd_f32(x_nchw, params))
    assert out_f32.shape == (2, 64), out_f32.shape
    np.testing.assert_allclose(np.asarray(out_f32), ref, rtol=5e-4, atol=5e-4)

    # Default bf16-MXU path (recommended on v6e/v7x): f32 accumulation; the input and the
    # im2col patch matrices are intentionally quantized to bf16, hence the loose tolerance.
    out_bf16 = jax.block_until_ready(jax.jit(conv4_forward)(x_nchw, params))
    assert out_bf16.shape == (2, 64), out_bf16.shape
    np.testing.assert_allclose(np.asarray(out_bf16), ref, rtol=1e-1, atol=5e-2)

    print("KERNEL_OK")
</pallas_src>

<mosaic_0001>
module attributes {stable_mosaic.version = 11 : i64} {
  func.func @_conv4_fused_kernel(%arg0: i32, %arg1: memref<2x256x32xf32, #tpu.memory_space<vmem>>, %arg2: memref<32x64xf32, #tpu.memory_space<vmem>>, %arg3: memref<1x64xf32, #tpu.memory_space<vmem>>, %arg4: memref<576x64xf32, #tpu.memory_space<vmem>>, %arg5: memref<1x64xf32, #tpu.memory_space<vmem>>, %arg6: memref<576x64xf32, #tpu.memory_space<vmem>>, %arg7: memref<1x64xf32, #tpu.memory_space<vmem>>, %arg8: memref<576x64xf32, #tpu.memory_space<vmem>>, %arg9: memref<1x64xf32, #tpu.memory_space<vmem>>, %arg10: memref<2x64xf32, #tpu.memory_space<vmem>>) attributes {dimension_semantics = [#tpu.dimension_semantics<parallel>], iteration_bounds = array<i64: 1>, scalar_prefetch = 0 : i64, scratch_operands = 0 : i64, tpu.core_type = #tpu.core_type<tc>, window_params = [{transform_indices = @transform_0, window_bounds = array<i64: 2, 256, 32>}, {pipeline_mode = #tpu.pipeline_mode<synchronous>, transform_indices = @transform_1, window_bounds = array<i64: 32, 64>}, {pipeline_mode = #tpu.pipeline_mode<synchronous>, transform_indices = @transform_2, window_bounds = array<i64: 1, 64>}, {pipeline_mode = #tpu.pipeline_mode<synchronous>, transform_indices = @transform_3, window_bounds = array<i64: 576, 64>}, {pipeline_mode = #tpu.pipeline_mode<synchronous>, transform_indices = @transform_4, window_bounds = array<i64: 1, 64>}, {pipeline_mode = #tpu.pipeline_mode<synchronous>, transform_indices = @transform_5, window_bounds = array<i64: 576, 64>}, {pipeline_mode = #tpu.pipeline_mode<synchronous>, transform_indices = @transform_6, window_bounds = array<i64: 1, 64>}, {pipeline_mode = #tpu.pipeline_mode<synchronous>, transform_indices = @transform_7, window_bounds = array<i64: 576, 64>}, {pipeline_mode = #tpu.pipeline_mode<synchronous>, transform_indices = @transform_8, window_bounds = array<i64: 1, 64>}, {transform_indices = @transform_9, window_bounds = array<i64: 2, 64>}]} {
    %c0 = arith.constant 0 : index
    %c0_0 = arith.constant 0 : index
    %c0_1 = arith.constant 0 : index
    %0 = vector.load %arg1[%c0, %c0_0, %c0_1] : memref<2x256x32xf32, #tpu.memory_space<vmem>>, vector<2x256x32xf32>
    %1 = vector.shape_cast %0 : vector<2x256x32xf32> to vector<512x32xf32>
    %c0_2 = arith.constant 0 : index
    %c0_3 = arith.constant 0 : index
    %2 = vector.load %arg2[%c0_2, %c0_3] : memref<32x64xf32, #tpu.memory_space<vmem>>, vector<32x64xf32>
    %cst = arith.constant dense<0.000000e+00> : vector<512x64xf32>
    %3 = tpu.matmul %1, %2, %cst {dimension_numbers = #tpu.dot_dimension_numbers<[1], [0], [0], [1], [0, 0, 1, 1], [], []>} : vector<512x32xf32>, vector<32x64xf32>, vector<512x64xf32> -> vector<512x64xf32>
    %c0_4 = arith.constant 0 : index
    %c0_5 = arith.constant 0 : index
    %4 = vector.load %arg3[%c0_4, %c0_5] : memref<1x64xf32, #tpu.memory_space<vmem>>, vector<1x64xf32>
    %5 = vector.broadcast %4 : vector<1x64xf32> to vector<512x64xf32>
    %6 = arith.addf %3, %5 : vector<512x64xf32>
    %cst_6 = arith.constant 0.000000e+00 : f32
    %7 = vector.broadcast %cst_6 : f32 to vector<512x64xf32>
    %8 = arith.maximumf %6, %7 : vector<512x64xf32>
    %9 = vector.shape_cast %8 : vector<512x64xf32> to vector<2x8x2x8x2x64xf32>
    %10 = vector.extract_strided_slice %9 {offsets = [0, 0, 0, 0, 0, 0], sizes = [2, 8, 1, 8, 2, 64], strides = [1, 1, 1, 1, 1, 1]} : vector<2x8x2x8x2x64xf32> to vector<2x8x1x8x2x64xf32>
    %11 = vector.shape_cast %10 : vector<2x8x1x8x2x64xf32> to vector<2x8x8x2x64xf32>
    %12 = vector.extract_strided_slice %9 {offsets = [0, 0, 1, 0, 0, 0], sizes = [2, 8, 1, 8, 2, 64], strides = [1, 1, 1, 1, 1, 1]} : vector<2x8x2x8x2x64xf32> to vector<2x8x1x8x2x64xf32>
    %13 = vector.shape_cast %12 : vector<2x8x1x8x2x64xf32> to vector<2x8x8x2x64xf32>
    %14 = arith.maximumf %11, %13 : vector<2x8x8x2x64xf32>
    %15 = vector.extract_strided_slice %14 {offsets = [0, 0, 0, 0, 0], sizes = [2, 8, 8, 1, 64], strides = [1, 1, 1, 1, 1]} : vector<2x8x8x2x64xf32> to vector<2x8x8x1x64xf32>
    %16 = vector.shape_cast %15 : vector<2x8x8x1x64xf32> to vector<2x8x8x64xf32>
    %17 = vector.extract_strided_slice %14 {offsets = [0, 0, 0, 1, 0], sizes = [2, 8, 8, 1, 64], strides = [1, 1, 1, 1, 1]} : vector<2x8x8x2x64xf32> to vector<2x8x8x1x64xf32>
    %18 = vector.shape_cast %17 : vector<2x8x8x1x64xf32> to vector<2x8x8x64xf32>
    %19 = arith.maximumf %16, %18 : vector<2x8x8x64xf32>
    %cst_7 = arith.constant 0.000000e+00 : f32
    %20 = vector.broadcast %cst_7 : f32 to vector<2x1x8x64xf32>
    %21 = tpu.concatenate %20, %19, %20 in 1 : vector<2x1x8x64xf32>, vector<2x8x8x64xf32>, vector<2x1x8x64xf32> -> vector<2x10x8x64xf32>
    %cst_8 = arith.constant 0.000000e+00 : f32
    %22 = vector.broadcast %cst_8 : f32 to vector<2x10x1x64xf32>
    %23 = tpu.concatenate %22, %21, %22 in 2 : vector<2x10x1x64xf32>, vector<2x10x8x64xf32>, vector<2x10x1x64xf32> -> vector<2x10x10x64xf32>
    %24 = vector.extract_strided_slice %23 {offsets = [0, 0, 0, 0], sizes = [2, 8, 8, 64], strides = [1, 1, 1, 1]} : vector<2x10x10x64xf32> to vector<2x8x8x64xf32>
    %25 = vector.extract_strided_slice %23 {offsets = [0, 0, 1, 0], sizes = [2, 8, 8, 64], strides = [1, 1, 1, 1]} : vector<2x10x10x64xf32> to vector<2x8x8x64xf32>
    %26 = vector.extract_strided_slice %23 {offsets = [0, 0, 2, 0], sizes = [2, 8, 8, 64], strides = [1, 1, 1, 1]} : vector<2x10x10x64xf32> to vector<2x8x8x64xf32>
    %27 = vector.extract_strided_slice %23 {offsets = [0, 1, 0, 0], sizes = [2, 8, 8, 64], strides = [1, 1, 1, 1]} : vector<2x10x10x64xf32> to vector<2x8x8x64xf32>
    %28 = vector.extract_strided_slice %23 {offsets = [0, 1, 1, 0], sizes = [2, 8, 8, 64], strides = [1, 1, 1, 1]} : vector<2x10x10x64xf32> to vector<2x8x8x64xf32>
    %29 = vector.extract_strided_slice %23 {offsets = [0, 1, 2, 0], sizes = [2, 8, 8, 64], strides = [1, 1, 1, 1]} : vector<2x10x10x64xf32> to vector<2x8x8x64xf32>
    %30 = vector.extract_strided_slice %23 {offsets = [0, 2, 0, 0], sizes = [2, 8, 8, 64], strides = [1, 1, 1, 1]} : vector<2x10x10x64xf32> to vector<2x8x8x64xf32>
    %31 = vector.extract_strided_slice %23 {offsets = [0, 2, 1, 0], sizes = [2, 8, 8, 64], strides = [1, 1, 1, 1]} : vector<2x10x10x64xf32> to vector<2x8x8x64xf32>
    %32 = vector.extract_strided_slice %23 {offsets = [0, 2, 2, 0], sizes = [2, 8, 8, 64], strides = [1, 1, 1, 1]} : vector<2x10x10x64xf32> to vector<2x8x8x64xf32>
    %33 = tpu.concatenate %24, %25, %26, %27, %28, %29, %30, %31, %32 in 3 : vector<2x8x8x64xf32>, vector<2x8x8x64xf32>, vector<2x8x8x64xf32>, vector<2x8x8x64xf32>, vector<2x8x8x64xf32>, vector<2x8x8x64xf32>, vector<2x8x8x64xf32>, vector<2x8x8x64xf32>, vector<2x8x8x64xf32> -> vector<2x8x8x576xf32>
    %34 = vector.shape_cast %33 : vector<2x8x8x576xf32> to vector<128x576xf32>
    %c0_9 = arith.constant 0 : index
    %c0_10 = arith.constant 0 : index
    %35 = vector.load %arg4[%c0_9, %c0_10] : memref<576x64xf32, #tpu.memory_space<vmem>>, vector<576x64xf32>
    %cst_11 = arith.constant dense<0.000000e+00> : vector<128x64xf32>
    %36 = tpu.matmul %34, %35, %cst_11 {dimension_numbers = #tpu.dot_dimension_numbers<[1], [0], [0], [1], [0, 0, 1, 1], [], []>} : vector<128x576xf32>, vector<576x64xf32>, vector<128x64xf32> -> vector<128x64xf32>
    %c0_12 = arith.constant 0 : index
    %c0_13 = arith.constant 0 : index
    %37 = vector.load %arg5[%c0_12, %c0_13] : memref<1x64xf32, #tpu.memory_space<vmem>>, vector<1x64xf32>
    %38 = vector.broadcast %37 : vector<1x64xf32> to vector<128x64xf32>
    %39 = arith.addf %36, %38 : vector<128x64xf32>
    %cst_14 = arith.constant 0.000000e+00 : f32
    %40 = vector.broadcast %cst_14 : f32 to vector<128x64xf32>
    %41 = arith.maximumf %39, %40 : vector<128x64xf32>
    %42 = vector.shape_cast %41 : vector<128x64xf32> to vector<2x4x2x4x2x64xf32>
    %43 = vector.extract_strided_slice %42 {offsets = [0, 0, 0, 0, 0, 0], sizes = [2, 4, 1, 4, 2, 64], strides = [1, 1, 1, 1, 1, 1]} : vector<2x4x2x4x2x64xf32> to vector<2x4x1x4x2x64xf32>
    %44 = vector.shape_cast %43 : vector<2x4x1x4x2x64xf32> to vector<2x4x4x2x64xf32>
    %45 = vector.extract_strided_slice %42 {offsets = [0, 0, 1, 0, 0, 0], sizes = [2, 4, 1, 4, 2, 64], strides = [1, 1, 1, 1, 1, 1]} : vector<2x4x2x4x2x64xf32> to vector<2x4x1x4x2x64xf32>
    %46 = vector.shape_cast %45 : vector<2x4x1x4x2x64xf32> to vector<2x4x4x2x64xf32>
    %47 = arith.maximumf %44, %46 : vector<2x4x4x2x64xf32>
    %48 = vector.extract_strided_slice %47 {offsets = [0, 0, 0, 0, 0], sizes = [2, 4, 4, 1, 64], strides = [1, 1, 1, 1, 1]} : vector<2x4x4x2x64xf32> to vector<2x4x4x1x64xf32>
    %49 = vector.shape_cast %48 : vector<2x4x4x1x64xf32> to vector<2x4x4x64xf32>
    %50 = vector.extract_strided_slice %47 {offsets = [0, 0, 0, 1, 0], sizes = [2, 4, 4, 1, 64], strides = [1, 1, 1, 1, 1]} : vector<2x4x4x2x64xf32> to vector<2x4x4x1x64xf32>
    %51 = vector.shape_cast %50 : vector<2x4x4x1x64xf32> to vector<2x4x4x64xf32>
    %52 = arith.maximumf %49, %51 : vector<2x4x4x64xf32>
    %cst_15 = arith.constant 0.000000e+00 : f32
    %53 = vector.broadcast %cst_15 : f32 to vector<2x1x4x64xf32>
    %54 = tpu.concatenate %53, %52, %53 in 1 : vector<2x1x4x64xf32>, vector<2x4x4x64xf32>, vector<2x1x4x64xf32> -> vector<2x6x4x64xf32>
    %cst_16 = arith.constant 0.000000e+00 : f32
    %55 = vector.broadcast %cst_16 : f32 to vector<2x6x1x64xf32>
    %56 = tpu.concatenate %55, %54, %55 in 2 : vector<2x6x1x64xf32>, vector<2x6x4x64xf32>, vector<2x6x1x64xf32> -> vector<2x6x6x64xf32>
    %57 = vector.extract_strided_slice %56 {offsets = [0, 0, 0, 0], sizes = [2, 4, 4, 64], strides = [1, 1, 1, 1]} : vector<2x6x6x64xf32> to vector<2x4x4x64xf32>
    %58 = vector.extract_strided_slice %56 {offsets = [0, 0, 1, 0], sizes = [2, 4, 4, 64], strides = [1, 1, 1, 1]} : vector<2x6x6x64xf32> to vector<2x4x4x64xf32>
    %59 = vector.extract_strided_slice %56 {offsets = [0, 0, 2, 0], sizes = [2, 4, 4, 64], strides = [1, 1, 1, 1]} : vector<2x6x6x64xf32> to vector<2x4x4x64xf32>
    %60 = vector.extract_strided_slice %56 {offsets = [0, 1, 0, 0], sizes = [2, 4, 4, 64], strides = [1, 1, 1, 1]} : vector<2x6x6x64xf32> to vector<2x4x4x64xf32>
    %61 = vector.extract_strided_slice %56 {offsets = [0, 1, 1, 0], sizes = [2, 4, 4, 64], strides = [1, 1, 1, 1]} : vector<2x6x6x64xf32> to vector<2x4x4x64xf32>
    %62 = vector.extract_strided_slice %56 {offsets = [0, 1, 2, 0], sizes = [2, 4, 4, 64], strides = [1, 1, 1, 1]} : vector<2x6x6x64xf32> to vector<2x4x4x64xf32>
    %63 = vector.extract_strided_slice %56 {offsets = [0, 2, 0, 0], sizes = [2, 4, 4, 64], strides = [1, 1, 1, 1]} : vector<2x6x6x64xf32> to vector<2x4x4x64xf32>
    %64 = vector.extract_strided_slice %56 {offsets = [0, 2, 1, 0], sizes = [2, 4, 4, 64], strides = [1, 1, 1, 1]} : vector<2x6x6x64xf32> to vector<2x4x4x64xf32>
    %65 = vector.extract_strided_slice %56 {offsets = [0, 2, 2, 0], sizes = [2, 4, 4, 64], strides = [1, 1, 1, 1]} : vector<2x6x6x64xf32> to vector<2x4x4x64xf32>
    %66 = tpu.concatenate %57, %58, %59, %60, %61, %62, %63, %64, %65 in 3 : vector<2x4x4x64xf32>, vector<2x4x4x64xf32>, vector<2x4x4x64xf32>, vector<2x4x4x64xf32>, vector<2x4x4x64xf32>, vector<2x4x4x64xf32>, vector<2x4x4x64xf32>, vector<2x4x4x64xf32>, vector<2x4x4x64xf32> -> vector<2x4x4x576xf32>
    %67 = vector.shape_cast %66 : vector<2x4x4x576xf32> to vector<32x576xf32>
    %c0_17 = arith.constant 0 : index
    %c0_18 = arith.constant 0 : index
    %68 = vector.load %arg6[%c0_17, %c0_18] : memref<576x64xf32, #tpu.memory_space<vmem>>, vector<576x64xf32>
    %cst_19 = arith.constant dense<0.000000e+00> : vector<32x64xf32>
    %69 = tpu.matmul %67, %68, %cst_19 {dimension_numbers = #tpu.dot_dimension_numbers<[1], [0], [0], [1], [0, 0, 1, 1], [], []>} : vector<32x576xf32>, vector<576x64xf32>, vector<32x64xf32> -> vector<32x64xf32>
    %c0_20 = arith.constant 0 : index
    %c0_21 = arith.constant 0 : index
    %70 = vector.load %arg7[%c0_20, %c0_21] : memref<1x64xf32, #tpu.memory_space<vmem>>, vector<1x64xf32>
    %71 = vector.broadcast %70 : vector<1x64xf32> to vector<32x64xf32>
    %72 = arith.addf %69, %71 : vector<32x64xf32>
    %cst_22 = arith.constant 0.000000e+00 : f32
    %73 = vector.broadcast %cst_22 : f32 to vector<32x64xf32>
    %74 = arith.maximumf %72, %73 : vector<32x64xf32>
    %75 = vector.shape_cast %74 : vector<32x64xf32> to vector<2x2x2x2x2x64xf32>
    %76 = vector.extract_strided_slice %75 {offsets = [0, 0, 0, 0, 0, 0], sizes = [2, 2, 1, 2, 2, 64], strides = [1, 1, 1, 1, 1, 1]} : vector<2x2x2x2x2x64xf32> to vector<2x2x1x2x2x64xf32>
    %77 = vector.shape_cast %76 : vector<2x2x1x2x2x64xf32> to vector<2x2x2x2x64xf32>
    %78 = vector.extract_strided_slice %75 {offsets = [0, 0, 1, 0, 0, 0], sizes = [2, 2, 1, 2, 2, 64], strides = [1, 1, 1, 1, 1, 1]} : vector<2x2x2x2x2x64xf32> to vector<2x2x1x2x2x64xf32>
    %79 = vector.shape_cast %78 : vector<2x2x1x2x2x64xf32> to vector<2x2x2x2x64xf32>
    %80 = arith.maximumf %77, %79 : vector<2x2x2x2x64xf32>
    %81 = vector.extract_strided_slice %80 {offsets = [0, 0, 0, 0, 0], sizes = [2, 2, 2, 1, 64], strides = [1, 1, 1, 1, 1]} : vector<2x2x2x2x64xf32> to vector<2x2x2x1x64xf32>
    %82 = vector.shape_cast %81 : vector<2x2x2x1x64xf32> to vector<2x2x2x64xf32>
    %83 = vector.extract_strided_slice %80 {offsets = [0, 0, 0, 1, 0], sizes = [2, 2, 2, 1, 64], strides = [1, 1, 1, 1, 1]} : vector<2x2x2x2x64xf32> to vector<2x2x2x1x64xf32>
    %84 = vector.shape_cast %83 : vector<2x2x2x1x64xf32> to vector<2x2x2x64xf32>
    %85 = arith.maximumf %82, %84 : vector<2x2x2x64xf32>
    %cst_23 = arith.constant 0.000000e+00 : f32
    %86 = vector.broadcast %cst_23 : f32 to vector<2x1x2x64xf32>
    %87 = tpu.concatenate %86, %85, %86 in 1 : vector<2x1x2x64xf32>, vector<2x2x2x64xf32>, vector<2x1x2x64xf32> -> vector<2x4x2x64xf32>
    %cst_24 = arith.constant 0.000000e+00 : f32
    %88 = vector.broadcast %cst_24 : f32 to vector<2x4x1x64xf32>
    %89 = tpu.concatenate %88, %87, %88 in 2 : vector<2x4x1x64xf32>, vector<2x4x2x64xf32>, vector<2x4x1x64xf32> -> vector<2x4x4x64xf32>
    %90 = vector.extract_strided_slice %89 {offsets = [0, 0, 0, 0], sizes = [2, 2, 2, 64], strides = [1, 1, 1, 1]} : vector<2x4x4x64xf32> to vector<2x2x2x64xf32>
    %91 = vector.extract_strided_slice %89 {offsets = [0, 0, 1, 0], sizes = [2, 2, 2, 64], strides = [1, 1, 1, 1]} : vector<2x4x4x64xf32> to vector<2x2x2x64xf32>
    %92 = vector.extract_strided_slice %89 {offsets = [0, 0, 2, 0], sizes = [2, 2, 2, 64], strides = [1, 1, 1, 1]} : vector<2x4x4x64xf32> to vector<2x2x2x64xf32>
    %93 = vector.extract_strided_slice %89 {offsets = [0, 1, 0, 0], sizes = [2, 2, 2, 64], strides = [1, 1, 1, 1]} : vector<2x4x4x64xf32> to vector<2x2x2x64xf32>
    %94 = vector.extract_strided_slice %89 {offsets = [0, 1, 1, 0], sizes = [2, 2, 2, 64], strides = [1, 1, 1, 1]} : vector<2x4x4x64xf32> to vector<2x2x2x64xf32>
    %95 = vector.extract_strided_slice %89 {offsets = [0, 1, 2, 0], sizes = [2, 2, 2, 64], strides = [1, 1, 1, 1]} : vector<2x4x4x64xf32> to vector<2x2x2x64xf32>
    %96 = vector.extract_strided_slice %89 {offsets = [0, 2, 0, 0], sizes = [2, 2, 2, 64], strides = [1, 1, 1, 1]} : vector<2x4x4x64xf32> to vector<2x2x2x64xf32>
    %97 = vector.extract_strided_slice %89 {offsets = [0, 2, 1, 0], sizes = [2, 2, 2, 64], strides = [1, 1, 1, 1]} : vector<2x4x4x64xf32> to vector<2x2x2x64xf32>
    %98 = vector.extract_strided_slice %89 {offsets = [0, 2, 2, 0], sizes = [2, 2, 2, 64], strides = [1, 1, 1, 1]} : vector<2x4x4x64xf32> to vector<2x2x2x64xf32>
    %99 = tpu.concatenate %90, %91, %92, %93, %94, %95, %96, %97, %98 in 3 : vector<2x2x2x64xf32>, vector<2x2x2x64xf32>, vector<2x2x2x64xf32>, vector<2x2x2x64xf32>, vector<2x2x2x64xf32>, vector<2x2x2x64xf32>, vector<2x2x2x64xf32>, vector<2x2x2x64xf32>, vector<2x2x2x64xf32> -> vector<2x2x2x576xf32>
    %100 = vector.shape_cast %99 : vector<2x2x2x576xf32> to vector<8x576xf32>
    %c0_25 = arith.constant 0 : index
    %c0_26 = arith.constant 0 : index
    %101 = vector.load %arg8[%c0_25, %c0_26] : memref<576x64xf32, #tpu.memory_space<vmem>>, vector<576x64xf32>
    %cst_27 = arith.constant dense<0.000000e+00> : vector<8x64xf32>
    %102 = tpu.matmul %100, %101, %cst_27 {dimension_numbers = #tpu.dot_dimension_numbers<[1], [0], [0], [1], [0, 0, 1, 1], [], []>} : vector<8x576xf32>, vector<576x64xf32>, vector<8x64xf32> -> vector<8x64xf32>
    %c0_28 = arith.constant 0 : index
    %c0_29 = arith.constant 0 : index
    %103 = vector.load %arg9[%c0_28, %c0_29] : memref<1x64xf32, #tpu.memory_space<vmem>>, vector<1x64xf32>
    %104 = vector.broadcast %103 : vector<1x64xf32> to vector<8x64xf32>
    %105 = arith.addf %102, %104 : vector<8x64xf32>
    %cst_30 = arith.constant 0.000000e+00 : f32
    %106 = vector.broadcast %cst_30 : f32 to vector<8x64xf32>
    %107 = arith.maximumf %105, %106 : vector<8x64xf32>
    %108 = vector.shape_cast %107 : vector<8x64xf32> to vector<2x1x2x1x2x64xf32>
    %109 = vector.extract_strided_slice %108 {offsets = [0, 0, 0, 0, 0, 0], sizes = [2, 1, 1, 1, 2, 64], strides = [1, 1, 1, 1, 1, 1]} : vector<2x1x2x1x2x64xf32> to vector<2x1x1x1x2x64xf32>
    %110 = vector.shape_cast %109 : vector<2x1x1x1x2x64xf32> to vector<2x1x1x2x64xf32>
    %111 = vector.extract_strided_slice %108 {offsets = [0, 0, 1, 0, 0, 0], sizes = [2, 1, 1, 1, 2, 64], strides = [1, 1, 1, 1, 1, 1]} : vector<2x1x2x1x2x64xf32> to vector<2x1x1x1x2x64xf32>
    %112 = vector.shape_cast %111 : vector<2x1x1x1x2x64xf32> to vector<2x1x1x2x64xf32>
    %113 = arith.maximumf %110, %112 : vector<2x1x1x2x64xf32>
    %114 = vector.extract_strided_slice %113 {offsets = [0, 0, 0, 0, 0], sizes = [2, 1, 1, 1, 64], strides = [1, 1, 1, 1, 1]} : vector<2x1x1x2x64xf32> to vector<2x1x1x1x64xf32>
    %115 = vector.shape_cast %114 : vector<2x1x1x1x64xf32> to vector<2x1x1x64xf32>
    %116 = vector.extract_strided_slice %113 {offsets = [0, 0, 0, 1, 0], sizes = [2, 1, 1, 1, 64], strides = [1, 1, 1, 1, 1]} : vector<2x1x1x2x64xf32> to vector<2x1x1x1x64xf32>
    %117 = vector.shape_cast %116 : vector<2x1x1x1x64xf32> to vector<2x1x1x64xf32>
    %118 = arith.maximumf %115, %117 : vector<2x1x1x64xf32>
    %119 = vector.shape_cast %118 : vector<2x1x1x64xf32> to vector<2x1x64xf32>
    %cst_31 = arith.constant dense<0.000000e+00> : vector<2x64xf32>
    %120 = vector.multi_reduction <add>, %119, %cst_31 [1] : vector<2x1x64xf32> to vector<2x64xf32>
    %cst_32 = arith.constant 1.000000e+00 : f32
    %121 = vector.broadcast %cst_32 : f32 to vector<2x64xf32>
    %122 = arith.mulf %120, %121 : vector<2x64xf32>
    %c0_33 = arith.constant 0 : index
    %c0_34 = arith.constant 0 : index
    %123 = vector.load %arg10[%c0_33, %c0_34] : memref<2x64xf32, #tpu.memory_space<vmem>>, vector<2x64xf32>
    tpu.vector_store %arg10[%c0_33, %c0_34], %122 {strides = array<i32>} : memref<2x64xf32, #tpu.memory_space<vmem>>, vector<2x64xf32>,
    return
  }
  func.func @transform_0(%arg0: i32) -> (i32, i32, i32) {
    %c0_i32 = arith.constant 0 : i32
    %c0_i32_0 = arith.constant 0 : i32
    %c0_i32_1 = arith.constant 0 : i32
    return %arg0, %c0_i32, %c0_i32_0 : i32, i32, i32
  }
  func.func @transform_1(%arg0: i32) -> (i32, i32) {
    %c0_i32 = arith.constant 0 : i32
    %c0_i32_0 = arith.constant 0 : i32
    %c0_i32_1 = arith.constant 0 : i32
    return %c0_i32, %c0_i32_0 : i32, i32
  }
  func.func @transform_2(%arg0: i32) -> (i32, i32) {
    %c0_i32 = arith.constant 0 : i32
    %c0_i32_0 = arith.constant 0 : i32
    %c0_i32_1 = arith.constant 0 : i32
    return %c0_i32, %c0_i32_0 : i32, i32
  }
  func.func @transform_3(%arg0: i32) -> (i32, i32) {
    %c0_i32 = arith.constant 0 : i32
    %c0_i32_0 = arith.constant 0 : i32
    %c0_i32_1 = arith.constant 0 : i32
    return %c0_i32, %c0_i32_0 : i32, i32
  }
  func.func @transform_4(%arg0: i32) -> (i32, i32) {
    %c0_i32 = arith.constant 0 : i32
    %c0_i32_0 = arith.constant 0 : i32
    %c0_i32_1 = arith.constant 0 : i32
    return %c0_i32, %c0_i32_0 : i32, i32
  }
  func.func @transform_5(%arg0: i32) -> (i32, i32) {
    %c0_i32 = arith.constant 0 : i32
    %c0_i32_0 = arith.constant 0 : i32
    %c0_i32_1 = arith.constant 0 : i32
    return %c0_i32, %c0_i32_0 : i32, i32
  }
  func.func @transform_6(%arg0: i32) -> (i32, i32) {
    %c0_i32 = arith.constant 0 : i32
    %c0_i32_0 = arith.constant 0 : i32
    %c0_i32_1 = arith.constant 0 : i32
    return %c0_i32, %c0_i32_0 : i32, i32
  }
  func.func @transform_7(%arg0: i32) -> (i32, i32) {
    %c0_i32 = arith.constant 0 : i32
    %c0_i32_0 = arith.constant 0 : i32
    %c0_i32_1 = arith.constant 0 : i32
    return %c0_i32, %c0_i32_0 : i32, i32
  }
  func.func @transform_8(%arg0: i32) -> (i32, i32) {
    %c0_i32 = arith.constant 0 : i32
    %c0_i32_0 = arith.constant 0 : i32
    %c0_i32_1 = arith.constant 0 : i32
    return %c0_i32, %c0_i32_0 : i32, i32
  }
  func.func @transform_9(%arg0: i32) -> (i32, i32) {
    %c0_i32 = arith.constant 0 : i32
    %c0_i32_0 = arith.constant 0 : i32
    return %arg0, %c0_i32 : i32, i32
  }
}

</mosaic_0001>

<llo_original>
// kernel: conv4_forward.1
$region0: #{conv4_forward.1}
  #allocation0 [shape = 'u32[]', space=smem, size = 0x4, offset = 0x4, fixed_abs, tag = 'smem constant byte address 0x4 - core index']
  #allocation1 [shape = 'u32[144,128]{1,0:T(1,128)}', space=vmem, size = 0x12000, scoped, tag = 'internal scratch']
  %s0 = inlined_call_operand.vmem [shape: f32[2,256,32], index: 0, kind: input, shape index: {}]
  %s1 = inlined_call_operand.vmem [shape: f32[32,64], index: 1, kind: input, shape index: {}]
  %s2 = inlined_call_operand.vmem [shape: f32[1,64], index: 2, kind: input, shape index: {}]
  %s3 = inlined_call_operand.vmem [shape: f32[576,64], index: 3, kind: input, shape index: {}]
  %s4 = inlined_call_operand.vmem [shape: f32[1,64], index: 4, kind: input, shape index: {}]
  %s5 = inlined_call_operand.vmem [shape: f32[576,64], index: 5, kind: input, shape index: {}]
  %s6 = inlined_call_operand.vmem [shape: f32[1,64], index: 6, kind: input, shape index: {}]
  %s7 = inlined_call_operand.vmem [shape: f32[576,64], index: 7, kind: input, shape index: {}]
  %s8 = inlined_call_operand.vmem [shape: f32[1,64], index: 8, kind: input, shape index: {}]
  %s9 = inlined_call_operand.hbm [shape: f32[2,64], index: 9, kind: output, shape index: {}]
  %s10 = sld [smem:[#allocation0]]
  $region46: #{conv4_forward.1} parent=0
    _
  %s12 = ssub.s32 1, %s10
  %s13 = scalar_select 0, %s12, %s10
  $region1: #{conv4_forward.1} parent=0
    #allocation2 [shape = 'u8[1024]{0}', space=vmem, size = 0x400, scoped, tag = 'output window, operand 0, single buffered']
    #allocation3 [shape = 's32[1]{0}', space=sflag, size = 0x4, scoped, tag = 'scoped memory for conv4_forward.1']
    %14 = vsyncpa [#allocation3], 0
    // Predicated region
    $region2: #{conv4_forward.1} parent=1 // pred_check
      _
    $region3: #{conv4_forward.1} parent=1 // pred_check_branch
      %16 = sbr.rel (0) target = $region5
    $region4: #{conv4_forward.1} parent=1 // pred_region
      _
    $region5: #{conv4_forward.1} parent=1 // pred_fallthru
      _
    // Predicated region
    $region6: #{conv4_forward.1} parent=1 // pred_check
      _
    $region7: #{conv4_forward.1} parent=1 // pred_check_branch
      %18 = sbr.rel (0) target = $region9
    $region8: #{conv4_forward.1} parent=1 // pred_region
      _
    $region9: #{conv4_forward.1} parent=1 // pred_fallthru
      _
    // Predicated region
    $region10: #{conv4_forward.1} parent=1 // pred_check
      _
    $region11: #{conv4_forward.1} parent=1 // pred_check_branch
      %20 = sbr.rel (0) target = $region13
    $region12: #{conv4_forward.1} parent=1 // pred_region
      _
    $region13: #{conv4_forward.1} parent=1 // pred_fallthru
      _
    // Predicated region
    $region14: #{conv4_forward.1} parent=1 // pred_check
      _
    $region15: #{conv4_forward.1} parent=1 // pred_check_branch
      %22 = sbr.rel (0) target = $region17
    $region16: #{conv4_forward.1} parent=1 // pred_region
      _
    $region17: #{conv4_forward.1} parent=1 // pred_fallthru
      _
    // Predicated region
    $region18: #{conv4_forward.1} parent=1 // pred_check
      _
    $region19: #{conv4_forward.1} parent=1 // pred_check_branch
      %24 = sbr.rel (0) target = $region21
    $region20: #{conv4_forward.1} parent=1 // pred_region
      _
    $region21: #{conv4_forward.1} parent=1 // pred_fallthru
      _
    // Predicated region
    $region22: #{conv4_forward.1} parent=1 // pred_check
      _
    $region23: #{conv4_forward.1} parent=1 // pred_check_branch
      %26 = sbr.rel (0) target = $region25
    $region24: #{conv4_forward.1} parent=1 // pred_region
      _
    $region25: #{conv4_forward.1} parent=1 // pred_fallthru
      _
    // Predicated region
    $region26: #{conv4_forward.1} parent=1 // pred_check
      _
    $region27: #{conv4_forward.1} parent=1 // pred_check_branch
      %28 = sbr.rel (0) target = $region29
    $region28: #{conv4_forward.1} parent=1 // pred_region
      _
    $region29: #{conv4_forward.1} parent=1 // pred_fallthru
      _
    // Predicated region
    $region30: #{conv4_forward.1} parent=1 // pred_check
      _
    $region31: #{conv4_forward.1} parent=1 // pred_check_branch
      %30 = sbr.rel (0) target = $region33
    $region32: #{conv4_forward.1} parent=1 // pred_region
      _
    $region33: #{conv4_forward.1} parent=1 // pred_fallthru
      _
    // Predicated region
    $region34: #{conv4_forward.1} parent=1 // pred_check
      _
    $region35: #{conv4_forward.1} parent=1 // pred_check_branch
      %32 = sbr.rel (0) target = $region37
    $region36: #{conv4_forward.1} parent=1 // pred_region
      _
    $region37: #{conv4_forward.1} parent=1 // pred_fallthru
      _
    %v33 = vld [vmem:[%s0] sm:$0xff]
    %v34 = vld [vmem:[%s0 + $0x8] sm:$0xff]
    %v35 = vld [vmem:[%s0 + $0x10] sm:$0xff]
    %v36 = vld [vmem:[%s0 + $0x18] sm:$0xff]
    %v37 = vld [vmem:[%s0 + $0x20] sm:$0xff]
    %v38 = vld [vmem:[%s0 + $0x28] sm:$0xff]
    %v39 = vld [vmem:[%s0 + $0x30] sm:$0xff]
    %v40 = vld [vmem:[%s0 + $0x38] sm:$0xff]
    %v41 = vld [vmem:[%s0 + $0x40] sm:$0xff]
    %v42 = vld [vmem:[%s0 + $0x48] sm:$0xff]
    %v43 = vld [vmem:[%s0 + $0x50] sm:$0xff]
    %v44 = vld [vmem:[%s0 + $0x58] sm:$0xff]
    %v45 = vld [vmem:[%s0 + $0x60] sm:$0xff]
    %v46 = vld [vmem:[%s0 + $0x68] sm:$0xff]
    %v47 = vld [vmem:[%s0 + $0x70] sm:$0xff]
    %v48 = vld [vmem:[%s0 + $0x78] sm:$0xff]
    %v49 = vld [vmem:[%s0 + $0x80] sm:$0xff]
    %v50 = vld [vmem:[%s0 + $0x88] sm:$0xff]
    %v51 = vld [vmem:[%s0 + $0x90] sm:$0xff]
    %v52 = vld [vmem:[%s0 + $0x98] sm:$0xff]
    %v53 = vld [vmem:[%s0 + $0xa0] sm:$0xff]
    %v54 = vld [vmem:[%s0 + $0xa8] sm:$0xff]
    %v55 = vld [vmem:[%s0 + $0xb0] sm:$0xff]
    %v56 = vld [vmem:[%s0 + $0xb8] sm:$0xff]
    %v57 = vld [vmem:[%s0 + $0xc0] sm:$0xff]
    %v58 = vld [vmem:[%s0 + $0xc8] sm:$0xff]
    %v59 = vld [vmem:[%s0 + $0xd0] sm:$0xff]
    %v60 = vld [vmem:[%s0 + $0xd8] sm:$0xff]
    %v61 = vld [vmem:[%s0 + $0xe0] sm:$0xff]
    %v62 = vld [vmem:[%s0 + $0xe8] sm:$0xff]
    %v63 = vld [vmem:[%s0 + $0xf0] sm:$0xff]
    %v64 = vld [vmem:[%s0 + $0xf8] sm:$0xff]
    %v65 = vld [vmem:[%s0 + $0x100] sm:$0xff]
    %v66 = vld [vmem:[%s0 + $0x108] sm:$0xff]
    %v67 = vld [vmem:[%s0 + $0x110] sm:$0xff]
    %v68 = vld [vmem:[%s0 + $0x118] sm:$0xff]
    %v69 = vld [vmem:[%s0 + $0x120] sm:$0xff]
    %v70 = vld [vmem:[%s0 + $0x128] sm:$0xff]
    %v71 = vld [vmem:[%s0 + $0x130] sm:$0xff]
    %v72 = vld [vmem:[%s0 + $0x138] sm:$0xff]
    %v73 = vld [vmem:[%s0 + $0x140] sm:$0xff]
    %v74 = vld [vmem:[%s0 + $0x148] sm:$0xff]
    %v75 = vld [vmem:[%s0 + $0x150] sm:$0xff]
    %v76 = vld [vmem:[%s0 + $0x158] sm:$0xff]
    %v77 = vld [vmem:[%s0 + $0x160] sm:$0xff]
    %v78 = vld [vmem:[%s0 + $0x168] sm:$0xff]
    %v79 = vld [vmem:[%s0 + $0x170] sm:$0xff]
    %v80 = vld [vmem:[%s0 + $0x178] sm:$0xff]
    %v81 = vld [vmem:[%s0 + $0x180] sm:$0xff]
    %v82 = vld [vmem:[%s0 + $0x188] sm:$0xff]
    %v83 = vld [vmem:[%s0 + $0x190] sm:$0xff]
    %v84 = vld [vmem:[%s0 + $0x198] sm:$0xff]
    %v85 = vld [vmem:[%s0 + $0x1a0] sm:$0xff]
    %v86 = vld [vmem:[%s0 + $0x1a8] sm:$0xff]
    %v87 = vld [vmem:[%s0 + $0x1b0] sm:$0xff]
    %v88 = vld [vmem:[%s0 + $0x1b8] sm:$0xff]
    %v89 = vld [vmem:[%s0 + $0x1c0] sm:$0xff]
    %v90 = vld [vmem:[%s0 + $0x1c8] sm:$0xff]
    %v91 = vld [vmem:[%s0 + $0x1d0] sm:$0xff]
    %v92 = vld [vmem:[%s0 + $0x1d8] sm:$0xff]
    %v93 = vld [vmem:[%s0 + $0x1e0] sm:$0xff]
    %v94 = vld [vmem:[%s0 + $0x1e8] sm:$0xff]
    %v95 = vld [vmem:[%s0 + $0x1f0] sm:$0xff]
    %v96 = vld [vmem:[%s0 + $0x1f8] sm:$0xff]
    %v97 = vld [vmem:[%s1] sm:$0xff]
    %v98 = vld [vmem:[%s1 + $0x8] sm:$0xff]
    %v99 = vld [vmem:[%s1 + $0x10] sm:$0xff]
    %v100 = vld [vmem:[%s1 + $0x18] sm:$0xff]
    %v101 = vld [vmem:[%s2] sm:$0x1]
    %v103 = vlaneseq
    %v104 = vshrl.u32 %v103, 7
    %v105 = vsub.s32 0, %v104
    %v106 = vrot.slane %v101, %v105
    %vm108 = vcmask 261120
    %v110 = vsel %vm108, %v33, 0
    %v113 = vsel %vm108, %v34, 0
    %v116 = vsel %vm108, %v35, 0
    %v119 = vsel %vm108, %v36, 0
    %v122 = vsel %vm108, %v37, 0
    %v125 = vsel %vm108, %v38, 0
    %v128 = vsel %vm108, %v39, 0
    %v131 = vsel %vm108, %v40, 0
    %v134 = vsel %vm108, %v41, 0
    %v137 = vsel %vm108, %v42, 0
    %v140 = vsel %vm108, %v43, 0
    %v143 = vsel %vm108, %v44, 0
    %v146 = vsel %vm108, %v45, 0
    %v149 = vsel %vm108, %v46, 0
    %v152 = vsel %vm108, %v47, 0
    %v155 = vsel %vm108, %v48, 0
    %v158 = vsel %vm108, %v49, 0
    %v161 = vsel %vm108, %v50, 0
    %v164 = vsel %vm108, %v51, 0
    %v167 = vsel %vm108, %v52, 0
    %v170 = vsel %vm108, %v53, 0
    %v173 = vsel %vm108, %v54, 0
    %v176 = vsel %vm108, %v55, 0
    %v179 = vsel %vm108, %v56, 0
    %v182 = vsel %vm108, %v57, 0
    %v185 = vsel %vm108, %v58, 0
    %v188 = vsel %vm108, %v59, 0
    %v191 = vsel %vm108, %v60, 0
    %v194 = vsel %vm108, %v61, 0
    %v197 = vsel %vm108, %v62, 0
    %v200 = vsel %vm108, %v63, 0
    %v203 = vsel %vm108, %v64, 0
    %v206 = vsel %vm108, %v65, 0
    %v209 = vsel %vm108, %v66, 0
    %v212 = vsel %vm108, %v67, 0
    %v215 = vsel %vm108, %v68, 0
    %v218 = vsel %vm108, %v69, 0
    %v221 = vsel %vm108, %v70, 0
    %v224 = vsel %vm108, %v71, 0
    %v227 = vsel %vm108, %v72, 0
    %v230 = vsel %vm108, %v73, 0
    %v233 = vsel %vm108, %v74, 0
    %v236 = vsel %vm108, %v75, 0
    %v239 = vsel %vm108, %v76, 0
    %v242 = vsel %vm108, %v77, 0
    %v245 = vsel %vm108, %v78, 0
    %v248 = vsel %vm108, %v79, 0
    %v251 = vsel %vm108, %v80, 0
    %v254 = vsel %vm108, %v81, 0
    %v257 = vsel %vm108, %v82, 0
    %v260 = vsel %vm108, %v83, 0
    %v263 = vsel %vm108, %v84, 0
    %v266 = vsel %vm108, %v85, 0
    %v269 = vsel %vm108, %v86, 0
    %v272 = vsel %vm108, %v87, 0
    %v275 = vsel %vm108, %v88, 0
    %v278 = vsel %vm108, %v89, 0
    %v281 = vsel %vm108, %v90, 0
    %v284 = vsel %vm108, %v91, 0
    %v287 = vsel %vm108, %v92, 0
    %v290 = vsel %vm108, %v93, 0
    %v293 = vsel %vm108, %v94, 0
    %v296 = vsel %vm108, %v95, 0
    %v299 = vsel %vm108, %v96, 0
    %301 = vmatprep.subr.mxu0 0.0
    %302 = vmatpush1.msra.mxu0 %v97
    %303 = vmatprep.subr.mxu0 0.0
    %304 = vmatpush1.msra.mxu0 %v98
    %305 = vmatprep.subr.mxu0 0.0
    %306 = vmatpush1.msra.mxu0 %v99
    %307 = vmatprep.subr.mxu0 0.0
    %308 = vmatpush1.msra.mxu0 %v100
    %309 = vmatprep.subr.mxu0 0.0
    %310 = vmatpush1.msra.mxu0 0.0
    %311 = vmatprep.subr.mxu0 0.0
    %312 = vmatpush1.msra.mxu0 0.0
    %313 = vmatprep.subr.mxu0 0.0
    %314 = vmatpush1.msra.mxu0 0.0
    %315 = vmatprep.subr.mxu0 0.0
    %316 = vmatpush1.msra.mxu0 0.0
    %317 = vmatprep.subr.mxu0 0.0
    %318 = vmatpush1.msra.mxu0 0.0
    %319 = vmatprep.subr.mxu0 0.0
    %320 = vmatpush1.msra.mxu0 0.0
    %321 = vmatprep.subr.mxu0 0.0
    %322 = vmatpush1.msra.mxu0 0.0
    %323 = vmatprep.subr.mxu0 0.0
    %324 = vmatpush1.msra.mxu0 0.0
    %325 = vmatprep.subr.mxu0 0.0
    %326 = vmatpush1.msra.mxu0 0.0
    %327 = vmatprep.subr.mxu0 0.0
    %328 = vmatpush1.msra.mxu0 0.0
    %329 = vmatprep.subr.mxu0 0.0
    %330 = vmatpush1.msra.mxu0 0.0
    %331 = vmatprep.subr.mxu0 0.0
    %332 = vmatpush1.msra.mxu0 0.0
    %333 = vmatprep.subr.mxu0 0.0
    %334 = vmatpush1.msra.mxu0 0.0
    %335 = vmatprep.subr.mxu0 0.0
    %336 = vmatpush1.msra.mxu0 0.0
    %337 = vmatprep.subr.mxu0 0.0
    %338 = vmatpush1.msra.mxu0 0.0
    %339 = vmatprep.subr.mxu0 0.0
    %340 = vmatpush1.msra.mxu0 0.0
    %341 = vmatprep.subr.mxu0 0.0
    %342 = vmatpush1.msra.mxu0 0.0
    %343 = vmatprep.subr.mxu0 0.0
    %344 = vmatpush1.msra.mxu0 0.0
    %345 = vmatprep.subr.mxu0 0.0
    %346 = vmatpush1.msra.mxu0 0.0
    %347 = vmatprep.subr.mxu0 0.0
    %348 = vmatpush1.msra.mxu0 0.0
    %349 = vmatprep.subr.mxu0 0.0
    %350 = vmatpush1.msra.mxu0 0.0
    %351 = vmatprep.subr.mxu0 0.0
    %352 = vmatpush1.msra.mxu0 0.0
    %353 = vmatprep.subr.mxu0 0.0
    %354 = vmatpush1.msra.mxu0 0.0
    %355 = vmatprep.subr.mxu0 0.0
    %356 = vmatpush1.msra.mxu0 0.0
    %357 = vmatprep.subr.mxu0 0.0
    %358 = vmatpush1.msra.mxu0 0.0
    %359 = vmatprep.subr.mxu0 0.0
    %360 = vmatpush1.msra.mxu0 0.0
    %361 = vmatprep.subr.mxu0 0.0
    %362 = vmatpush1.msra.mxu0 0.0
    %363 = vmatprep.subr.mxu0 0.0
    %364 = vmatpush1.msra.mxu0 0.0
    %365 = vmatprep.mubr.f32.mxu0 0.0
    %366 = vmatmul.mubr.f32.gmra.mrb[0].mxu0 %v110
    %v367 = vpop.f32.mrb[0].mxu0
    %v368 = vadd.f32 %v106, %v367
    %v369 = vpop.f32.mrb[0].mxu0
    %370 = vmatprep.mubr.f32.mxu0 0.0
    %371 = vmatmul.mubr.f32.gmra.mrb[0].mxu0 %v113
    %v372 = vpop.f32.mrb[0].mxu0
    %v373 = vadd.f32 %v106, %v372
    %v374 = vpop.f32.mrb[0].mxu0
    %375 = vmatprep.mubr.f32.mxu0 0.0
    %376 = vmatmul.mubr.f32.gmra.mrb[0].mxu0 %v116
    %v377 = vpop.f32.mrb[0].mxu0
    %v378 = vadd.f32 %v106, %v377
    %v379 = vpop.f32.mrb[0].mxu0
    %380 = vmatprep.mubr.f32.mxu0 0.0
    %381 = vmatmul.mubr.f32.gmra.mrb[0].mxu0 %v119
    %v382 = vpop.f32.mrb[0].mxu0
    %v383 = vadd.f32 %v106, %v382
    %v384 = vpop.f32.mrb[0].mxu0
    %385 = vmatprep.mubr.f32.mxu0 0.0
    %386 = vmatmul.mubr.f32.gmra.mrb[0].mxu0 %v122
    %v387 = vpop.f32.mrb[0].mxu0
    %v388 = vadd.f32 %v106, %v387
    %v389 = vpop.f32.mrb[0].mxu0
    %390 = vmatprep.mubr.f32.mxu0 0.0
    %391 = vmatmul.mubr.f32.gmra.mrb[0].mxu0 %v125
    %v392 = vpop.f32.mrb[0].mxu0
    %v393 = vadd.f32 %v106, %v392
    %v394 = vpop.f32.mrb[0].mxu0
    %395 = vmatprep.mubr.f32.mxu0 0.0
    %396 = vmatmul.mubr.f32.gmra.mrb[0].mxu0 %v128
    %v397 = vpop.f32.mrb[0].mxu0
    %v398 = vadd.f32 %v106, %v397
    %v399 = vpop.f32.mrb[0].mxu0
    %400 = vmatprep.mubr.f32.mxu0 0.0
    %401 = vmatmul.mubr.f32.gmra.mrb[0].mxu0 %v131
    %v402 = vpop.f32.mrb[0].mxu0
    %v403 = vadd.f32 %v106, %v402
    %v404 = vpop.f32.mrb[0].mxu0
    %405 = vmatprep.mubr.f32.mxu0 0.0
    %406 = vmatmul.mubr.f32.gmra.mrb[0].mxu0 %v134
    %v407 = vpop.f32.mrb[0].mxu0
    %v408 = vadd.f32 %v106, %v407
    %v409 = vpop.f32.mrb[0].mxu0
    %410 = vmatprep.mubr.f32.mxu0 0.0
    %411 = vmatmul.mubr.f32.gmra.mrb[0].mxu0 %v137
    %v412 = vpop.f32.mrb[0].mxu0
    %v413 = vadd.f32 %v106, %v412
    %v414 = vpop.f32.mrb[0].mxu0
    %415 = vmatprep.mubr.f32.mxu0 0.0
    %416 = vmatmul.mubr.f32.gmra.mrb[0].mxu0 %v140
    %v417 = vpop.f32.mrb[0].mxu0
    %v418 = vadd.f32 %v106, %v417
    %v419 = vpop.f32.mrb[0].mxu0
    %420 = vmatprep.mubr.f32.mxu0 0.0
    %421 = vmatmul.mubr.f32.gmra.mrb[0].mxu0 %v143
    %v422 = vpop.f32.mrb[0].mxu0
    %v423 = vadd.f32 %v106, %v422
    %v424 = vpop.f32.mrb[0].mxu0
    %425 = vmatprep.mubr.f32.mxu0 0.0
    %426 = vmatmul.mubr.f32.gmra.mrb[0].mxu0 %v146
    %v427 = vpop.f32.mrb[0].mxu0
    %v428 = vadd.f32 %v106, %v427
    %v429 = vpop.f32.mrb[0].mxu0
    %430 = vmatprep.mubr.f32.mxu0 0.0
    %431 = vmatmul.mubr.f32.gmra.mrb[0].mxu0 %v149
    %v432 = vpop.f32.mrb[0].mxu0
    %v433 = vadd.f32 %v106, %v432
    %v434 = vpop.f32.mrb[0].mxu0
    %435 = vmatprep.mubr.f32.mxu0 0.0
    %436 = vmatmul.mubr.f32.gmra.mrb[0].mxu0 %v152
    %v437 = vpop.f32.mrb[0].mxu0
    %v438 = vadd.f32 %v106, %v437
    %v439 = vpop.f32.mrb[0].mxu0
    %440 = vmatprep.mubr.f32.mxu0 0.0
    %441 = vmatmul.mubr.f32.gmra.mrb[0].mxu0 %v155
    %v442 = vpop.f32.mrb[0].mxu0
    %v443 = vadd.f32 %v106, %v442
    %v444 = vpop.f32.mrb[0].mxu0
    %445 = vmatprep.mubr.f32.mxu0 0.0
    %446 = vmatmul.mubr.f32.gmra.mrb[0].mxu0 %v158
    %v447 = vpop.f32.mrb[0].mxu0
    %v448 = vadd.f32 %v106, %v447
    %v449 = vpop.f32.mrb[0].mxu0
    %450 = vmatprep.mubr.f32.mxu0 0.0
    %451 = vmatmul.mubr.f32.gmra.mrb[0].mxu0 %v161
    %v452 = vpop.f32.mrb[0].mxu0
    %v453 = vadd.f32 %v106, %v452
    %v454 = vpop.f32.mrb[0].mxu0
    %455 = vmatprep.mubr.f32.mxu0 0.0
    %456 = vmatmul.mubr.f32.gmra.mrb[0].mxu0 %v164
    %v457 = vpop.f32.mrb[0].mxu0
    %v458 = vadd.f32 %v106, %v457
    %v459 = vpop.f32.mrb[0].mxu0
    %460 = vmatprep.mubr.f32.mxu0 0.0
    %461 = vmatmul.mubr.f32.gmra.mrb[0].mxu0 %v167
    %v462 = vpop.f32.mrb[0].mxu0
    %v463 = vadd.f32 %v106, %v462
    %v464 = vpop.f32.mrb[0].mxu0
    %465 = vmatprep.mubr.f32.mxu0 0.0
    %466 = vmatmul.mubr.f32.gmra.mrb[0].mxu0 %v170
    %v467 = vpop.f32.mrb[0].mxu0
    %v468 = vadd.f32 %v106, %v467
    %v469 = vpop.f32.mrb[0].mxu0
    %470 = vmatprep.mubr.f32.mxu0 0.0
    %471 = vmatmul.mubr.f32.gmra.mrb[0].mxu0 %v173
    %v472 = vpop.f32.mrb[0].mxu0
    %v473 = vadd.f32 %v106, %v472
    %v474 = vpop.f32.mrb[0].mxu0
    %475 = vmatprep.mubr.f32.mxu0 0.0
    %476 = vmatmul.mubr.f32.gmra.mrb[0].mxu0 %v176
    %v477 = vpop.f32.mrb[0].mxu0
    %v478 = vadd.f32 %v106, %v477
    %v479 = vpop.f32.mrb[0].mxu0
    %480 = vmatprep.mubr.f32.mxu0 0.0
    %481 = vmatmul.mubr.f32.gmra.mrb[0].mxu0 %v179
    %v482 = vpop.f32.mrb[0].mxu0
    %v483 = vadd.f32 %v106, %v482
    %v484 = vpop.f32.mrb[0].mxu0
    %485 = vmatprep.mubr.f32.mxu0 0.0
    %486 = vmatmul.mubr.f32.gmra.mrb[0].mxu0 %v182
    %v487 = vpop.f32.mrb[0].mxu0
    %v488 = vadd.f32 %v106, %v487
    %v489 = vpop.f32.mrb[0].mxu0
    %490 = vmatprep.mubr.f32.mxu0 0.0
    %491 = vmatmul.mubr.f32.gmra.mrb[0].mxu0 %v185
    %v492 = vpop.f32.mrb[0].mxu0
    %v493 = vadd.f32 %v106, %v492
    %v494 = vpop.f32.mrb[0].mxu0
    %495 = vmatprep.mubr.f32.mxu0 0.0
    %496 = vmatmul.mubr.f32.gmra.mrb[0].mxu0 %v188
    %v497 = vpop.f32.mrb[0].mxu0
    %v498 = vadd.f32 %v106, %v497
    %v499 = vpop.f32.mrb[0].mxu0
    %500 = vmatprep.mubr.f32.mxu0 0.0
    %501 = vmatmul.mubr.f32.gmra.mrb[0].mxu0 %v191
    %v502 = vpop.f32.mrb[0].mxu0
    %v503 = vadd.f32 %v106, %v502
    %v504 = vpop.f32.mrb[0].mxu0
    %505 = vmatprep.mubr.f32.mxu0 0.0
    %506 = vmatmul.mubr.f32.gmra.mrb[0].mxu0 %v194
    %v507 = vpop.f32.mrb[0].mxu0
    %v508 = vadd.f32 %v106, %v507
    %v509 = vpop.f32.mrb[0].mxu0
    %510 = vmatprep.mubr.f32.mxu0 0.0
    %511 = vmatmul.mubr.f32.gmra.mrb[0].mxu0 %v197
    %v512 = vpop.f32.mrb[0].mxu0
    %v513 = vadd.f32 %v106, %v512
    %v514 = vpop.f32.mrb[0].mxu0
    %515 = vmatprep.mubr.f32.mxu0 0.0
    %516 = vmatmul.mubr.f32.gmra.mrb[0].mxu0 %v200
    %v517 = vpop.f32.mrb[0].mxu0
    %v518 = vadd.f32 %v106, %v517
    %v519 = vpop.f32.mrb[0].mxu0
    %520 = vmatprep.mubr.f32.mxu0 0.0
    %521 = vmatmul.mubr.f32.gmra.mrb[0].mxu0 %v203
    %v522 = vpop.f32.mrb[0].mxu0
    %v523 = vadd.f32 %v106, %v522
    %v524 = vpop.f32.mrb[0].mxu0
    %525 = vmatprep.mubr.f32.mxu0 0.0
    %526 = vmatmul.mubr.f32.gmra.mrb[0].mxu0 %v206
    %v527 = vpop.f32.mrb[0].mxu0
    %v528 = vadd.f32 %v106, %v527
    %v529 = vpop.f32.mrb[0].mxu0
    %530 = vmatprep.mubr.f32.mxu0 0.0
    %531 = vmatmul.mubr.f32.gmra.mrb[0].mxu0 %v209
    %v532 = vpop.f32.mrb[0].mxu0
    %v533 = vadd.f32 %v106, %v532
    %v534 = vpop.f32.mrb[0].mxu0
    %535 = vmatprep.mubr.f32.mxu0 0.0
    %536 = vmatmul.mubr.f32.gmra.mrb[0].mxu0 %v212
    %v537 = vpop.f32.mrb[0].mxu0
    %v538 = vadd.f32 %v106, %v537
    %v539 = vpop.f32.mrb[0].mxu0
    %540 = vmatprep.mubr.f32.mxu0 0.0
    %541 = vmatmul.mubr.f32.gmra.mrb[0].mxu0 %v215
    %v542 = vpop.f32.mrb[0].mxu0
    %v543 = vadd.f32 %v106, %v542
    %v544 = vpop.f32.mrb[0].mxu0
    %545 = vmatprep.mubr.f32.mxu0 0.0
    %546 = vmatmul.mubr.f32.gmra.mrb[0].mxu0 %v218
    %v547 = vpop.f32.mrb[0].mxu0
    %v548 = vadd.f32 %v106, %v547
    %v549 = vpop.f32.mrb[0].mxu0
    %550 = vmatprep.mubr.f32.mxu0 0.0
    %551 = vmatmul.mubr.f32.gmra.mrb[0].mxu0 %v221
    %v552 = vpop.f32.mrb[0].mxu0
    %v553 = vadd.f32 %v106, %v552
    %v554 = vpop.f32.mrb[0].mxu0
    %555 = vmatprep.mubr.f32.mxu0 0.0
    %556 = vmatmul.mubr.f32.gmra.mrb[0].mxu0 %v224
    %v557 = vpop.f32.mrb[0].mxu0
    %v558 = vadd.f32 %v106, %v557
    %v559 = vpop.f32.mrb[0].mxu0
    %560 = vmatprep.mubr.f32.mxu0 0.0
    %561 = vmatmul.mubr.f32.gmra.mrb[0].mxu0 %v227
    %v562 = vpop.f32.mrb[0].mxu0
    %v563 = vadd.f32 %v106, %v562
    %v564 = vpop.f32.mrb[0].mxu0
    %565 = vmatprep.mubr.f32.mxu0 0.0
    %566 = vmatmul.mubr.f32.gmra.mrb[0].mxu0 %v230
    %v567 = vpop.f32.mrb[0].mxu0
    %v568 = vadd.f32 %v106, %v567
    %v569 = vpop.f32.mrb[0].mxu0
    %570 = vmatprep.mubr.f32.mxu0 0.0
    %571 = vmatmul.mubr.f32.gmra.mrb[0].mxu0 %v233
    %v572 = vpop.f32.mrb[0].mxu0
    %v573 = vadd.f32 %v106, %v572
    %v574 = vpop.f32.mrb[0].mxu0
    %575 = vmatprep.mubr.f32.mxu0 0.0
    %576 = vmatmul.mubr.f32.gmra.mrb[0].mxu0 %v236
    %v577 = vpop.f32.mrb[0].mxu0
    %v578 = vadd.f32 %v106, %v577
    %v579 = vpop.f32.mrb[0].mxu0
    %580 = vmatprep.mubr.f32.mxu0 0.0
    %581 = vmatmul.mubr.f32.gmra.mrb[0].mxu0 %v239
    %v582 = vpop.f32.mrb[0].mxu0
    %v583 = vadd.f32 %v106, %v582
    %v584 = vpop.f32.mrb[0].mxu0
    %585 = vmatprep.mubr.f32.mxu0 0.0
    %586 = vmatmul.mubr.f32.gmra.mrb[0].mxu0 %v242
    %v587 = vpop.f32.mrb[0].mxu0
    %v588 = vadd.f32 %v106, %v587
    %v589 = vpop.f32.mrb[0].mxu0
    %590 = vmatprep.mubr.f32.mxu0 0.0
    %591 = vmatmul.mubr.f32.gmra.mrb[0].mxu0 %v245
    %v592 = vpop.f32.mrb[0].mxu0
    %v593 = vadd.f32 %v106, %v592
    %v594 = vpop.f32.mrb[0].mxu0
    %595 = vmatprep.mubr.f32.mxu0 0.0
    %596 = vmatmul.mubr.f32.gmra.mrb[0].mxu0 %v248
    %v597 = vpop.f32.mrb[0].mxu0
    %v598 = vadd.f32 %v106, %v597
    %v599 = vpop.f32.mrb[0].mxu0
    %600 = vmatprep.mubr.f32.mxu0 0.0
    %601 = vmatmul.mubr.f32.gmra.mrb[0].mxu0 %v251
    %v602 = vpop.f32.mrb[0].mxu0
    %v603 = vadd.f32 %v106, %v602
    %v604 = vpop.f32.mrb[0].mxu0
    %605 = vmatprep.mubr.f32.mxu0 0.0
    %606 = vmatmul.mubr.f32.gmra.mrb[0].mxu0 %v254
    %v607 = vpop.f32.mrb[0].mxu0
    %v608 = vadd.f32 %v106, %v607
    %v609 = vpop.f32.mrb[0].mxu0
    %610 = vmatprep.mubr.f32.mxu0 0.0
    %611 = vmatmul.mubr.f32.gmra.mrb[0].mxu0 %v257
    %v612 = vpop.f32.mrb[0].mxu0
    %v613 = vadd.f32 %v106, %v612
    %v614 = vpop.f32.mrb[0].mxu0
    %615 = vmatprep.mubr.f32.mxu0 0.0
    %616 = vmatmul.mubr.f32.gmra.mrb[0].mxu0 %v260
    %v617 = vpop.f32.mrb[0].mxu0
    %v618 = vadd.f32 %v106, %v617
    %v619 = vpop.f32.mrb[0].mxu0
    %620 = vmatprep.mubr.f32.mxu0 0.0
    %621 = vmatmul.mubr.f32.gmra.mrb[0].mxu0 %v263
    %v622 = vpop.f32.mrb[0].mxu0
    %v623 = vadd.f32 %v106, %v622
    %v624 = vpop.f32.mrb[0].mxu0
    %625 = vmatprep.mubr.f32.mxu0 0.0
    %626 = vmatmul.mubr.f32.gmra.mrb[0].mxu0 %v266
    %v627 = vpop.f32.mrb[0].mxu0
    %v628 = vadd.f32 %v106, %v627
    %v629 = vpop.f32.mrb[0].mxu0
    %630 = vmatprep.mubr.f32.mxu0 0.0
    %631 = vmatmul.mubr.f32.gmra.mrb[0].mxu0 %v269
    %v632 = vpop.f32.mrb[0].mxu0
    %v633 = vadd.f32 %v106, %v632
    %v634 = vpop.f32.mrb[0].mxu0
    %635 = vmatprep.mubr.f32.mxu0 0.0
    %636 = vmatmul.mubr.f32.gmra.mrb[0].mxu0 %v272
    %v637 = vpop.f32.mrb[0].mxu0
    %v638 = vadd.f32 %v106, %v637
    %v639 = vpop.f32.mrb[0].mxu0
    %640 = vmatprep.mubr.f32.mxu0 0.0
    %641 = vmatmul.mubr.f32.gmra.mrb[0].mxu0 %v275
    %v642 = vpop.f32.mrb[0].mxu0
    %v643 = vadd.f32 %v106, %v642
    %v644 = vpop.f32.mrb[0].mxu0
    %645 = vmatprep.mubr.f32.mxu0 0.0
    %646 = vmatmul.mubr.f32.gmra.mrb[0].mxu0 %v278
    %v647 = vpop.f32.mrb[0].mxu0
    %v648 = vadd.f32 %v106, %v647
    %v649 = vpop.f32.mrb[0].mxu0
    %650 = vmatprep.mubr.f32.mxu0 0.0
    %651 = vmatmul.mubr.f32.gmra.mrb[0].mxu0 %v281
    %v652 = vpop.f32.mrb[0].mxu0
    %v653 = vadd.f32 %v106, %v652
    %v654 = vpop.f32.mrb[0].mxu0
    %655 = vmatprep.mubr.f32.mxu0 0.0
    %656 = vmatmul.mubr.f32.gmra.mrb[0].mxu0 %v284
    %v657 = vpop.f32.mrb[0].mxu0
    %v658 = vadd.f32 %v106, %v657
    %v659 = vpop.f32.mrb[0].mxu0
    %660 = vmatprep.mubr.f32.mxu0 0.0
    %661 = vmatmul.mubr.f32.gmra.mrb[0].mxu0 %v287
    %v662 = vpop.f32.mrb[0].mxu0
    %v663 = vadd.f32 %v106, %v662
    %v664 = vpop.f32.mrb[0].mxu0
    %665 = vmatprep.mubr.f32.mxu0 0.0
    %666 = vmatmul.mubr.f32.gmra.mrb[0].mxu0 %v290
    %v667 = vpop.f32.mrb[0].mxu0
    %v668 = vadd.f32 %v106, %v667
    %v669 = vpop.f32.mrb[0].mxu0
    %670 = vmatprep.mubr.f32.mxu0 0.0
    %671 = vmatmul.mubr.f32.gmra.mrb[0].mxu0 %v293
    %v672 = vpop.f32.mrb[0].mxu0
    %v673 = vadd.f32 %v106, %v672
    %v674 = vpop.f32.mrb[0].mxu0
    %675 = vmatprep.mubr.f32.mxu0 0.0
    %676 = vmatmul.mubr.f32.gmra.mrb[0].mxu0 %v296
    %v677 = vpop.f32.mrb[0].mxu0
    %v678 = vadd.f32 %v106, %v677
    %v679 = vpop.f32.mrb[0].mxu0
    %680 = vmatprep.mubr.f32.mxu0 0.0
    %681 = vmatmul.mubr.f32.gmra.mrb[0].mxu0 %v299
    %v682 = vpop.f32.mrb[0].mxu0
    %v683 = vadd.f32 %v106, %v682
    %v684 = vpop.f32.mrb[0].mxu0
    %685 = vdwg.mxu0
    %v686 = vmax.f32 %v368, 0.0
    %v687 = vmax.f32 %v373, 0.0
    %v688 = vmax.f32 %v378, 0.0
    %v689 = vmax.f32 %v383, 0.0
    %v690 = vmax.f32 %v388, 0.0
    %v691 = vmax.f32 %v393, 0.0
    %v692 = vmax.f32 %v398, 0.0
    %v693 = vmax.f32 %v403, 0.0
    %v694 = vmax.f32 %v408, 0.0
    %v695 = vmax.f32 %v413, 0.0
    %v696 = vmax.f32 %v418, 0.0
    %v697 = vmax.f32 %v423, 0.0
    %v698 = vmax.f32 %v428, 0.0
    %v699 = vmax.f32 %v433, 0.0
    %v700 = vmax.f32 %v438, 0.0
    %v701 = vmax.f32 %v443, 0.0
    %v702 = vmax.f32 %v448, 0.0
    %v703 = vmax.f32 %v453, 0.0
    %v704 = vmax.f32 %v458, 0.0
    %v705 = vmax.f32 %v463, 0.0
    %v706 = vmax.f32 %v468, 0.0
    %v707 = vmax.f32 %v473, 0.0
    %v708 = vmax.f32 %v478, 0.0
    %v709 = vmax.f32 %v483, 0.0
    %v710 = vmax.f32 %v488, 0.0
    %v711 = vmax.f32 %v493, 0.0
    %v712 = vmax.f32 %v498, 0.0
    %v713 = vmax.f32 %v503, 0.0
    %v714 = vmax.f32 %v508, 0.0
    %v715 = vmax.f32 %v513, 0.0
    %v716 = vmax.f32 %v518, 0.0
    %v717 = vmax.f32 %v523, 0.0
    %v718 = vmax.f32 %v528, 0.0
    %v719 = vmax.f32 %v533, 0.0
    %v720 = vmax.f32 %v538, 0.0
    %v721 = vmax.f32 %v543, 0.0
    %v722 = vmax.f32 %v548, 0.0
    %v723 = vmax.f32 %v553, 0.0
    %v724 = vmax.f32 %v558, 0.0
    %v725 = vmax.f32 %v563, 0.0
    %v726 = vmax.f32 %v568, 0.0
    %v727 = vmax.f32 %v573, 0.0
    %v728 = vmax.f32 %v578, 0.0
    %v729 = vmax.f32 %v583, 0.0
    %v730 = vmax.f32 %v588, 0.0
    %v731 = vmax.f32 %v593, 0.0
    %v732 = vmax.f32 %v598, 0.0
    %v733 = vmax.f32 %v603, 0.0
    %v734 = vmax.f32 %v608, 0.0
    %v735 = vmax.f32 %v613, 0.0
    %v736 = vmax.f32 %v618, 0.0
    %v737 = vmax.f32 %v623, 0.0
    %v738 = vmax.f32 %v628, 0.0
    %v739 = vmax.f32 %v633, 0.0
    %v740 = vmax.f32 %v638, 0.0
    %v741 = vmax.f32 %v643, 0.0
    %v742 = vmax.f32 %v648, 0.0
    %v743 = vmax.f32 %v653, 0.0
    %v744 = vmax.f32 %v658, 0.0
    %v745 = vmax.f32 %v663, 0.0
    %v746 = vmax.f32 %v668, 0.0
    %v747 = vmax.f32 %v673, 0.0
    %v748 = vmax.f32 %v678, 0.0
    %v749 = vmax.f32 %v683, 0.0
    %v814 = vcombine.high %v686, %v686
    %v816 = vunpack.c.l.s4 1983009808
    %v817 = vunpack.c.0.s8 %v816
    %v818 = vlaneseq
    %v819 = vshrl.u32 %v818, 7
    %v820 = vsub.s32 %v817, %v819
    %v821 = vrot.slane %v686, %v820
    %v823 = vunpack.c.l.s4 1983009808
    %v824 = vunpack.c.0.s8 %v823
    %v825 = vlaneseq
    %v826 = vshrl.u32 %v825, 7
    %v827 = vsub.s32 %v824, %v826
    %v828 = vrot.slane %v814, %v827
    %v829 = vcombine.high %v821, %v821
    %v830 = vcombine.high %v828, %v828
    %v831 = vcombine.high %v687, %v687
    %v833 = vunpack.c.l.s4 1983009808
    %v834 = vunpack.c.0.s8 %v833
    %v835 = vlaneseq
    %v836 = vshrl.u32 %v835, 7
    %v837 = vsub.s32 %v834, %v836
    %v838 = vrot.slane %v687, %v837
    %v840 = vunpack.c.l.s4 1983009808
    %v841 = vunpack.c.0.s8 %v840
    %v842 = vlaneseq
    %v843 = vshrl.u32 %v842, 7
    %v844 = vsub.s32 %v841, %v843
    %v845 = vrot.slane %v831, %v844
    %v846 = vcombine.high %v838, %v838
    %v847 = vcombine.high %v845, %v845
    %v848 = vcombine.high %v688, %v688
    %v850 = vunpack.c.l.s4 1983009808
    %v851 = vunpack.c.0.s8 %v850
    %v852 = vlaneseq
    %v853 = vshrl.u32 %v852, 7
    %v854 = vsub.s32 %v851, %v853
    %v855 = vrot.slane %v688, %v854
    %v857 = vunpack.c.l.s4 1983009808
    %v858 = vunpack.c.0.s8 %v857
    %v859 = vlaneseq
    %v860 = vshrl.u32 %v859, 7
    %v861 = vsub.s32 %v858, %v860
    %v862 = vrot.slane %v848, %v861
    %v863 = vcombine.high %v855, %v855
    %v864 = vcombine.high %v862, %v862
    %v865 = vcombine.high %v689, %v689
    %v867 = vunpack.c.l.s4 1983009808
    %v868 = vunpack.c.0.s8 %v867
    %v869 = vlaneseq
    %v870 = vshrl.u32 %v869, 7
    %v871 = vsub.s32 %v868, %v870
    %v872 = vrot.slane %v689, %v871
    %v874 = vunpack.c.l.s4 1983009808
    %v875 = vunpack.c.0.s8 %v874
    %v876 = vlaneseq
    %v877 = vshrl.u32 %v876, 7
    %v878 = vsub.s32 %v875, %v877
    %v879 = vrot.slane %v865, %v878
    %v880 = vcombine.high %v872, %v872
    %v881 = vcombine.high %v879, %v879
    %v882 = vcombine.high %v690, %v690
    %v884 = vunpack.c.l.s4 1983009808
    %v885 = vunpack.c.0.s8 %v884
    %v886 = vlaneseq
    %v887 = vshrl.u32 %v886, 7
    %v888 = vsub.s32 %v885, %v887
    %v889 = vrot.slane %v690, %v888
    %v891 = vunpack.c.l.s4 1983009808
    %v892 = vunpack.c.0.s8 %v891
    %v893 = vlaneseq
    %v894 = vshrl.u32 %v893, 7
    %v895 = vsub.s32 %v892, %v894
    %v896 = vrot.slane %v882, %v895
    %v897 = vcombine.high %v889, %v889
    %v898 = vcombine.high %v896, %v896
    %v899 = vcombine.high %v691, %v691
    %v901 = vunpack.c.l.s4 1983009808
    %v902 = vunpack.c.0.s8 %v901
    %v903 = vlaneseq
    %v904 = vshrl.u32 %v903, 7
    %v905 = vsub.s32 %v902, %v904
    %v906 = vrot.slane %v691, %v905
    %v908 = vunpack.c.l.s4 1983009808
    %v909 = vunpack.c.0.s8 %v908
    %v910 = vlaneseq
    %v911 = vshrl.u32 %v910, 7
    %v912 = vsub.s32 %v909, %v911
    %v913 = vrot.slane %v899, %v912
    %v914 = vcombine.high %v906, %v906
    %v915 = vcombine.high %v913, %v913
    %v916 = vcombine.high %v692, %v692
    %v918 = vunpack.c.l.s4 1983009808
    %v919 = vunpack.c.0.s8 %v918
    %v920 = vlaneseq
    %v921 = vshrl.u32 %v920, 7
    %v922 = vsub.s32 %v919, %v921
    %v923 = vrot.slane %v692, %v922
    %v925 = vunpack.c.l.s4 1983009808
    %v926 = vunpack.c.0.s8 %v925
    %v927 = vlaneseq
    %v928 = vshrl.u32 %v927, 7
    %v929 = vsub.s32 %v926, %v928
    %v930 = vrot.slane %v916, %v929
    %v931 = vcombine.high %v923, %v923
    %v932 = vcombine.high %v930, %v930
    %v933 = vcombine.high %v693, %v693
    %v935 = vunpack.c.l.s4 1983009808
    %v936 = vunpack.c.0.s8 %v935
    %v937 = vlaneseq
    %v938 = vshrl.u32 %v937, 7
    %v939 = vsub.s32 %v936, %v938
    %v940 = vrot.slane %v693, %v939
    %v942 = vunpack.c.l.s4 1983009808
    %v943 = vunpack.c.0.s8 %v942
    %v944 = vlaneseq
    %v945 = vshrl.u32 %v944, 7
    %v946 = vsub.s32 %v943, %v945
    %v947 = vrot.slane %v933, %v946
    %v948 = vcombine.high %v940, %v940
    %v949 = vcombine.high %v947, %v947
    %v950 = vcombine.high %v694, %v694
    %v952 = vunpack.c.l.s4 1983009808
    %v953 = vunpack.c.0.s8 %v952
    %v954 = vlaneseq
    %v955 = vshrl.u32 %v954, 7
    %v956 = vsub.s32 %v953, %v955
    %v957 = vrot.slane %v694, %v956
    %v959 = vunpack.c.l.s4 1983009808
    %v960 = vunpack.c.0.s8 %v959
    %v961 = vlaneseq
    %v962 = vshrl.u32 %v961, 7
    %v963 = vsub.s32 %v960, %v962
    %v964 = vrot.slane %v950, %v963
    %v965 = vcombine.high %v957, %v957
    %v966 = vcombine.high %v964, %v964
    %v967 = vcombine.high %v695, %v695
    %v969 = vunpack.c.l.s4 1983009808
    %v970 = vunpack.c.0.s8 %v969
    %v971 = vlaneseq
    %v972 = vshrl.u32 %v971, 7
    %v973 = vsub.s32 %v970, %v972
    %v974 = vrot.slane %v695, %v973
    %v976 = vunpack.c.l.s4 1983009808
    %v977 = vunpack.c.0.s8 %v976
    %v978 = vlaneseq
    %v979 = vshrl.u32 %v978, 7
    %v980 = vsub.s32 %v977, %v979
    %v981 = vrot.slane %v967, %v980
    %v982 = vcombine.high %v974, %v974
    %v983 = vcombine.high %v981, %v981
    %v984 = vcombine.high %v696, %v696
    %v986 = vunpack.c.l.s4 1983009808
    %v987 = vunpack.c.0.s8 %v986
    %v988 = vlaneseq
    %v989 = vshrl.u32 %v988, 7
    %v990 = vsub.s32 %v987, %v989
    %v991 = vrot.slane %v696, %v990
    %v993 = vunpack.c.l.s4 1983009808
    %v994 = vunpack.c.0.s8 %v993
    %v995 = vlaneseq
    %v996 = vshrl.u32 %v995, 7
    %v997 = vsub.s32 %v994, %v996
    %v998 = vrot.slane %v984, %v997
    %v999 = vcombine.high %v991, %v991
    %v1000 = vcombine.high %v998, %v998
    %v1001 = vcombine.high %v697, %v697
    %v1003 = vunpack.c.l.s4 1983009808
    %v1004 = vunpack.c.0.s8 %v1003
    %v1005 = vlaneseq
    %v1006 = vshrl.u32 %v1005, 7
    %v1007 = vsub.s32 %v1004, %v1006
    %v1008 = vrot.slane %v697, %v1007
    %v1010 = vunpack.c.l.s4 1983009808
    %v1011 = vunpack.c.0.s8 %v1010
    %v1012 = vlaneseq
    %v1013 = vshrl.u32 %v1012, 7
    %v1014 = vsub.s32 %v1011, %v1013
    %v1015 = vrot.slane %v1001, %v1014
    %v1016 = vcombine.high %v1008, %v1008
    %v1017 = vcombine.high %v1015, %v1015
    %v1018 = vcombine.high %v698, %v698
    %v1020 = vunpack.c.l.s4 1983009808
    %v1021 = vunpack.c.0.s8 %v1020
    %v1022 = vlaneseq
    %v1023 = vshrl.u32 %v1022, 7
    %v1024 = vsub.s32 %v1021, %v1023
    %v1025 = vrot.slane %v698, %v1024
    %v1027 = vunpack.c.l.s4 1983009808
    %v1028 = vunpack.c.0.s8 %v1027
    %v1029 = vlaneseq
    %v1030 = vshrl.u32 %v1029, 7
    %v1031 = vsub.s32 %v1028, %v1030
    %v1032 = vrot.slane %v1018, %v1031
    %v1033 = vcombine.high %v1025, %v1025
    %v1034 = vcombine.high %v1032, %v1032
    %v1035 = vcombine.high %v699, %v699
    %v1037 = vunpack.c.l.s4 1983009808
    %v1038 = vunpack.c.0.s8 %v1037
    %v1039 = vlaneseq
    %v1040 = vshrl.u32 %v1039, 7
    %v1041 = vsub.s32 %v1038, %v1040
    %v1042 = vrot.slane %v699, %v1041
    %v1044 = vunpack.c.l.s4 1983009808
    %v1045 = vunpack.c.0.s8 %v1044
    %v1046 = vlaneseq
    %v1047 = vshrl.u32 %v1046, 7
    %v1048 = vsub.s32 %v1045, %v1047
    %v1049 = vrot.slane %v1035, %v1048
    %v1050 = vcombine.high %v1042, %v1042
    %v1051 = vcombine.high %v1049, %v1049
    %v1052 = vcombine.high %v700, %v700
    %v1054 = vunpack.c.l.s4 1983009808
    %v1055 = vunpack.c.0.s8 %v1054
    %v1056 = vlaneseq
    %v1057 = vshrl.u32 %v1056, 7
    %v1058 = vsub.s32 %v1055, %v1057
    %v1059 = vrot.slane %v700, %v1058
    %v1061 = vunpack.c.l.s4 1983009808
    %v1062 = vunpack.c.0.s8 %v1061
    %v1063 = vlaneseq
    %v1064 = vshrl.u32 %v1063, 7
    %v1065 = vsub.s32 %v1062, %v1064
    %v1066 = vrot.slane %v1052, %v1065
    %v1067 = vcombine.high %v1059, %v1059
    %v1068 = vcombine.high %v1066, %v1066
    %v1069 = vcombine.high %v701, %v701
    %v1071 = vunpack.c.l.s4 1983009808
    %v1072 = vunpack.c.0.s8 %v1071
    %v1073 = vlaneseq
    %v1074 = vshrl.u32 %v1073, 7
    %v1075 = vsub.s32 %v1072, %v1074
    %v1076 = vrot.slane %v701, %v1075
    %v1078 = vunpack.c.l.s4 1983009808
    %v1079 = vunpack.c.0.s8 %v1078
    %v1080 = vlaneseq
    %v1081 = vshrl.u32 %v1080, 7
    %v1082 = vsub.s32 %v1079, %v1081
    %v1083 = vrot.slane %v1069, %v1082
    %v1084 = vcombine.high %v1076, %v1076
    %v1085 = vcombine.high %v1083, %v1083
    %v1086 = vcombine.high %v702, %v702
    %v1088 = vunpack.c.l.s4 1983009808
    %v1089 = vunpack.c.0.s8 %v1088
    %v1090 = vlaneseq
    %v1091 = vshrl.u32 %v1090, 7
    %v1092 = vsub.s32 %v1089, %v1091
    %v1093 = vrot.slane %v702, %v1092
    %v1095 = vunpack.c.l.s4 1983009808
    %v1096 = vunpack.c.0.s8 %v1095
    %v1097 = vlaneseq
    %v1098 = vshrl.u32 %v1097, 7
    %v1099 = vsub.s32 %v1096, %v1098
    %v1100 = vrot.slane %v1086, %v1099
    %v1101 = vcombine.high %v1093, %v1093
    %v1102 = vcombine.high %v1100, %v1100
    %v1103 = vcombine.high %v703, %v703
    %v1105 = vunpack.c.l.s4 1983009808
    %v1106 = vunpack.c.0.s8 %v1105
    %v1107 = vlaneseq
    %v1108 = vshrl.u32 %v1107, 7
    %v1109 = vsub.s32 %v1106, %v1108
    %v1110 = vrot.slane %v703, %v1109
    %v1112 = vunpack.c.l.s4 1983009808
    %v1113 = vunpack.c.0.s8 %v1112
    %v1114 = vlaneseq
    %v1115 = vshrl.u32 %v1114, 7
    %v1116 = vsub.s32 %v1113, %v1115
    %v1117 = vrot.slane %v1103, %v1116
    %v1118 = vcombine.high %v1110, %v1110
    %v1119 = vcombine.high %v1117, %v1117
    %v1120 = vcombine.high %v704, %v704
    %v1122 = vunpack.c.l.s4 1983009808
    %v1123 = vunpack.c.0.s8 %v1122
    %v1124 = vlaneseq
    %v1125 = vshrl.u32 %v1124, 7
    %v1126 = vsub.s32 %v1123, %v1125
    %v1127 = vrot.slane %v704, %v1126
    %v1129 = vunpack.c.l.s4 1983009808
    %v1130 = vunpack.c.0.s8 %v1129
    %v1131 = vlaneseq
    %v1132 = vshrl.u32 %v1131, 7
    %v1133 = vsub.s32 %v1130, %v1132
    %v1134 = vrot.slane %v1120, %v1133
    %v1135 = vcombine.high %v1127, %v1127
    %v1136 = vcombine.high %v1134, %v1134
    %v1137 = vcombine.high %v705, %v705
    %v1139 = vunpack.c.l.s4 1983009808
    %v1140 = vunpack.c.0.s8 %v1139
    %v1141 = vlaneseq
    %v1142 = vshrl.u32 %v1141, 7
    %v1143 = vsub.s32 %v1140, %v1142
    %v1144 = vrot.slane %v705, %v1143
    %v1146 = vunpack.c.l.s4 1983009808
    %v1147 = vunpack.c.0.s8 %v1146
    %v1148 = vlaneseq
    %v1149 = vshrl.u32 %v1148, 7
    %v1150 = vsub.s32 %v1147, %v1149
    %v1151 = vrot.slane %v1137, %v1150
    %v1152 = vcombine.high %v1144, %v1144
    %v1153 = vcombine.high %v1151, %v1151
    %v1154 = vcombine.high %v706, %v706
    %v1156 = vunpack.c.l.s4 1983009808
    %v1157 = vunpack.c.0.s8 %v1156
    %v1158 = vlaneseq
    %v1159 = vshrl.u32 %v1158, 7
    %v1160 = vsub.s32 %v1157, %v1159
    %v1161 = vrot.slane %v706, %v1160
    %v1163 = vunpack.c.l.s4 1983009808
    %v1164 = vunpack.c.0.s8 %v1163
    %v1165 = vlaneseq
    %v1166 = vshrl.u32 %v1165, 7
    %v1167 = vsub.s32 %v1164, %v1166
    %v1168 = vrot.slane %v1154, %v1167
    %v1169 = vcombine.high %v1161, %v1161
    %v1170 = vcombine.high %v1168, %v1168
    %v1171 = vcombine.high %v707, %v707
    %v1173 = vunpack.c.l.s4 1983009808
    %v1174 = vunpack.c.0.s8 %v1173
    %v1175 = vlaneseq
    %v1176 = vshrl.u32 %v1175, 7
    %v1177 = vsub.s32 %v1174, %v1176
    %v1178 = vrot.slane %v707, %v1177
    %v1180 = vunpack.c.l.s4 1983009808
    %v1181 = vunpack.c.0.s8 %v1180
    %v1182 = vlaneseq
    %v1183 = vshrl.u32 %v1182, 7
    %v1184 = vsub.s32 %v1181, %v1183
    %v1185 = vrot.slane %v1171, %v1184
    %v1186 = vcombine.high %v1178, %v1178
    %v1187 = vcombine.high %v1185, %v1185
    %v1188 = vcombine.high %v708, %v708
    %v1190 = vunpack.c.l.s4 1983009808
    %v1191 = vunpack.c.0.s8 %v1190
    %v1192 = vlaneseq
    %v1193 = vshrl.u32 %v1192, 7
    %v1194 = vsub.s32 %v1191, %v1193
    %v1195 = vrot.slane %v708, %v1194
    %v1197 = vunpack.c.l.s4 1983009808
    %v1198 = vunpack.c.0.s8 %v1197
    %v1199 = vlaneseq
    %v1200 = vshrl.u32 %v1199, 7
    %v1201 = vsub.s32 %v1198, %v1200
    %v1202 = vrot.slane %v1188, %v1201
    %v1203 = vcombine.high %v1195, %v1195
    %v1204 = vcombine.high %v1202, %v1202
    %v1205 = vcombine.high %v709, %v709
    %v1207 = vunpack.c.l.s4 1983009808
    %v1208 = vunpack.c.0.s8 %v1207
    %v1209 = vlaneseq
    %v1210 = vshrl.u32 %v1209, 7
    %v1211 = vsub.s32 %v1208, %v1210
    %v1212 = vrot.slane %v709, %v1211
    %v1214 = vunpack.c.l.s4 1983009808
    %v1215 = vunpack.c.0.s8 %v1214
    %v1216 = vlaneseq
    %v1217 = vshrl.u32 %v1216, 7
    %v1218 = vsub.s32 %v1215, %v1217
    %v1219 = vrot.slane %v1205, %v1218
    %v1220 = vcombine.high %v1212, %v1212
    %v1221 = vcombine.high %v1219, %v1219
    %v1222 = vcombine.high %v710, %v710
    %v1224 = vunpack.c.l.s4 1983009808
    %v1225 = vunpack.c.0.s8 %v1224
    %v1226 = vlaneseq
    %v1227 = vshrl.u32 %v1226, 7
    %v1228 = vsub.s32 %v1225, %v1227
    %v1229 = vrot.slane %v710, %v1228
    %v1231 = vunpack.c.l.s4 1983009808
    %v1232 = vunpack.c.0.s8 %v1231
    %v1233 = vlaneseq
    %v1234 = vshrl.u32 %v1233, 7
    %v1235 = vsub.s32 %v1232, %v1234
    %v1236 = vrot.slane %v1222, %v1235
    %v1237 = vcombine.high %v1229, %v1229
    %v1238 = vcombine.high %v1236, %v1236
    %v1239 = vcombine.high %v711, %v711
    %v1241 = vunpack.c.l.s4 1983009808
    %v1242 = vunpack.c.0.s8 %v1241
    %v1243 = vlaneseq
    %v1244 = vshrl.u32 %v1243, 7
    %v1245 = vsub.s32 %v1242, %v1244
    %v1246 = vrot.slane %v711, %v1245
    %v1248 = vunpack.c.l.s4 1983009808
    %v1249 = vunpack.c.0.s8 %v1248
    %v1250 = vlaneseq
    %v1251 = vshrl.u32 %v1250, 7
    %v1252 = vsub.s32 %v1249, %v1251
    %v1253 = vrot.slane %v1239, %v1252
    %v1254 = vcombine.high %v1246, %v1246
    %v1255 = vcombine.high %v1253, %v1253
    %v1256 = vcombine.high %v712, %v712
    %v1258 = vunpack.c.l.s4 1983009808
    %v1259 = vunpack.c.0.s8 %v1258
    %v1260 = vlaneseq
    %v1261 = vshrl.u32 %v1260, 7
    %v1262 = vsub.s32 %v1259, %v1261
    %v1263 = vrot.slane %v712, %v1262
    %v1265 = vunpack.c.l.s4 1983009808
    %v1266 = vunpack.c.0.s8 %v1265
    %v1267 = vlaneseq
    %v1268 = vshrl.u32 %v1267, 7
    %v1269 = vsub.s32 %v1266, %v1268
    %v1270 = vrot.slane %v1256, %v1269
    %v1271 = vcombine.high %v1263, %v1263
    %v1272 = vcombine.high %v1270, %v1270
    %v1273 = vcombine.high %v713, %v713
    %v1275 = vunpack.c.l.s4 1983009808
    %v1276 = vunpack.c.0.s8 %v1275
    %v1277 = vlaneseq
    %v1278 = vshrl.u32 %v1277, 7
    %v1279 = vsub.s32 %v1276, %v1278
    %v1280 = vrot.slane %v713, %v1279
    %v1282 = vunpack.c.l.s4 1983009808
    %v1283 = vunpack.c.0.s8 %v1282
    %v1284 = vlaneseq
    %v1285 = vshrl.u32 %v1284, 7
    %v1286 = vsub.s32 %v1283, %v1285
    %v1287 = vrot.slane %v1273, %v1286
    %v1288 = vcombine.high %v1280, %v1280
    %v1289 = vcombine.high %v1287, %v1287
    %v1290 = vcombine.high %v714, %v714
    %v1292 = vunpack.c.l.s4 1983009808
    %v1293 = vunpack.c.0.s8 %v1292
    %v1294 = vlaneseq
    %v1295 = vshrl.u32 %v1294, 7
    %v1296 = vsub.s32 %v1293, %v1295
    %v1297 = vrot.slane %v714, %v1296
    %v1299 = vunpack.c.l.s4 1983009808
    %v1300 = vunpack.c.0.s8 %v1299
    %v1301 = vlaneseq
    %v1302 = vshrl.u32 %v1301, 7
    %v1303 = vsub.s32 %v1300, %v1302
    %v1304 = vrot.slane %v1290, %v1303
    %v1305 = vcombine.high %v1297, %v1297
    %v1306 = vcombine.high %v1304, %v1304
    %v1307 = vcombine.high %v715, %v715
    %v1309 = vunpack.c.l.s4 1983009808
    %v1310 = vunpack.c.0.s8 %v1309
    %v1311 = vlaneseq
    %v1312 = vshrl.u32 %v1311, 7
    %v1313 = vsub.s32 %v1310, %v1312
    %v1314 = vrot.slane %v715, %v1313
    %v1316 = vunpack.c.l.s4 1983009808
    %v1317 = vunpack.c.0.s8 %v1316
    %v1318 = vlaneseq
    %v1319 = vshrl.u32 %v1318, 7
    %v1320 = vsub.s32 %v1317, %v1319
    %v1321 = vrot.slane %v1307, %v1320
    %v1322 = vcombine.high %v1314, %v1314
    %v1323 = vcombine.high %v1321, %v1321
    %v1324 = vcombine.high %v716, %v716
    %v1326 = vunpack.c.l.s4 1983009808
    %v1327 = vunpack.c.0.s8 %v1326
    %v1328 = vlaneseq
    %v1329 = vshrl.u32 %v1328, 7
    %v1330 = vsub.s32 %v1327, %v1329
    %v1331 = vrot.slane %v716, %v1330
    %v1333 = vunpack.c.l.s4 1983009808
    %v1334 = vunpack.c.0.s8 %v1333
    %v1335 = vlaneseq
    %v1336 = vshrl.u32 %v1335, 7
    %v1337 = vsub.s32 %v1334, %v1336
    %v1338 = vrot.slane %v1324, %v1337
    %v1339 = vcombine.high %v1331, %v1331
    %v1340 = vcombine.high %v1338, %v1338
    %v1341 = vcombine.high %v717, %v717
    %v1343 = vunpack.c.l.s4 1983009808
    %v1344 = vunpack.c.0.s8 %v1343
    %v1345 = vlaneseq
    %v1346 = vshrl.u32 %v1345, 7
    %v1347 = vsub.s32 %v1344, %v1346
    %v1348 = vrot.slane %v717, %v1347
    %v1350 = vunpack.c.l.s4 1983009808
    %v1351 = vunpack.c.0.s8 %v1350
    %v1352 = vlaneseq
    %v1353 = vshrl.u32 %v1352, 7
    %v1354 = vsub.s32 %v1351, %v1353
    %v1355 = vrot.slane %v1341, %v1354
    %v1356 = vcombine.high %v1348, %v1348
    %v1357 = vcombine.high %v1355, %v1355
    %v1358 = vcombine.high %v718, %v718
    %v1360 = vunpack.c.l.s4 1983009808
    %v1361 = vunpack.c.0.s8 %v1360
    %v1362 = vlaneseq
    %v1363 = vshrl.u32 %v1362, 7
    %v1364 = vsub.s32 %v1361, %v1363
    %v1365 = vrot.slane %v718, %v1364
    %v1367 = vunpack.c.l.s4 1983009808
    %v1368 = vunpack.c.0.s8 %v1367
    %v1369 = vlaneseq
    %v1370 = vshrl.u32 %v1369, 7
    %v1371 = vsub.s32 %v1368, %v1370
    %v1372 = vrot.slane %v1358, %v1371
    %v1373 = vcombine.high %v1365, %v1365
    %v1374 = vcombine.high %v1372, %v1372
    %v1375 = vcombine.high %v719, %v719
    %v1377 = vunpack.c.l.s4 1983009808
    %v1378 = vunpack.c.0.s8 %v1377
    %v1379 = vlaneseq
    %v1380 = vshrl.u32 %v1379, 7
    %v1381 = vsub.s32 %v1378, %v1380
    %v1382 = vrot.slane %v719, %v1381
    %v1384 = vunpack.c.l.s4 1983009808
    %v1385 = vunpack.c.0.s8 %v1384
    %v1386 = vlaneseq
    %v1387 = vshrl.u32 %v1386, 7
    %v1388 = vsub.s32 %v1385, %v1387
    %v1389 = vrot.slane %v1375, %v1388
    %v1390 = vcombine.high %v1382, %v1382
    %v1391 = vcombine.high %v1389, %v1389
    %v1392 = vcombine.high %v720, %v720
    %v1394 = vunpack.c.l.s4 1983009808
    %v1395 = vunpack.c.0.s8 %v1394
    %v1396 = vlaneseq
    %v1397 = vshrl.u32 %v1396, 7
    %v1398 = vsub.s32 %v1395, %v1397
    %v1399 = vrot.slane %v720, %v1398
    %v1401 = vunpack.c.l.s4 1983009808
    %v1402 = vunpack.c.0.s8 %v1401
    %v1403 = vlaneseq
    %v1404 = vshrl.u32 %v1403, 7
    %v1405 = vsub.s32 %v1402, %v1404
    %v1406 = vrot.slane %v1392, %v1405
    %v1407 = vcombine.high %v1399, %v1399
    %v1408 = vcombine.high %v1406, %v1406
    %v1409 = vcombine.high %v721, %v721
    %v1411 = vunpack.c.l.s4 1983009808
    %v1412 = vunpack.c.0.s8 %v1411
    %v1413 = vlaneseq
    %v1414 = vshrl.u32 %v1413, 7
    %v1415 = vsub.s32 %v1412, %v1414
    %v1416 = vrot.slane %v721, %v1415
    %v1418 = vunpack.c.l.s4 1983009808
    %v1419 = vunpack.c.0.s8 %v1418
    %v1420 = vlaneseq
    %v1421 = vshrl.u32 %v1420, 7
    %v1422 = vsub.s32 %v1419, %v1421
    %v1423 = vrot.slane %v1409, %v1422
    %v1424 = vcombine.high %v1416, %v1416
    %v1425 = vcombine.high %v1423, %v1423
    %v1426 = vcombine.high %v722, %v722
    %v1428 = vunpack.c.l.s4 1983009808
    %v1429 = vunpack.c.0.s8 %v1428
    %v1430 = vlaneseq
    %v1431 = vshrl.u32 %v1430, 7
    %v1432 = vsub.s32 %v1429, %v1431
    %v1433 = vrot.slane %v722, %v1432
    %v1435 = vunpack.c.l.s4 1983009808
    %v1436 = vunpack.c.0.s8 %v1435
    %v1437 = vlaneseq
    %v1438 = vshrl.u32 %v1437, 7
    %v1439 = vsub.s32 %v1436, %v1438
    %v1440 = vrot.slane %v1426, %v1439
    %v1441 = vcombine.high %v1433, %v1433
    %v1442 = vcombine.high %v1440, %v1440
    %v1443 = vcombine.high %v723, %v723
    %v1445 = vunpack.c.l.s4 1983009808
    %v1446 = vunpack.c.0.s8 %v1445
    %v1447 = vlaneseq
    %v1448 = vshrl.u32 %v1447, 7
    %v1449 = vsub.s32 %v1446, %v1448
    %v1450 = vrot.slane %v723, %v1449
    %v1452 = vunpack.c.l.s4 1983009808
    %v1453 = vunpack.c.0.s8 %v1452
    %v1454 = vlaneseq
    %v1455 = vshrl.u32 %v1454, 7
    %v1456 = vsub.s32 %v1453, %v1455
    %v1457 = vrot.slane %v1443, %v1456
    %v1458 = vcombine.high %v1450, %v1450
    %v1459 = vcombine.high %v1457, %v1457
    %v1460 = vcombine.high %v724, %v724
    %v1462 = vunpack.c.l.s4 1983009808
    %v1463 = vunpack.c.0.s8 %v1462
    %v1464 = vlaneseq
    %v1465 = vshrl.u32 %v1464, 7
    %v1466 = vsub.s32 %v1463, %v1465
    %v1467 = vrot.slane %v724, %v1466
    %v1469 = vunpack.c.l.s4 1983009808
    %v1470 = vunpack.c.0.s8 %v1469
    %v1471 = vlaneseq
    %v1472 = vshrl.u32 %v1471, 7
    %v1473 = vsub.s32 %v1470, %v1472
    %v1474 = vrot.slane %v1460, %v1473
    %v1475 = vcombine.high %v1467, %v1467
    %v1476 = vcombine.high %v1474, %v1474
    %v1477 = vcombine.high %v725, %v725
    %v1479 = vunpack.c.l.s4 1983009808
    %v1480 = vunpack.c.0.s8 %v1479
    %v1481 = vlaneseq
    %v1482 = vshrl.u32 %v1481, 7
    %v1483 = vsub.s32 %v1480, %v1482
    %v1484 = vrot.slane %v725, %v1483
    %v1486 = vunpack.c.l.s4 1983009808
    %v1487 = vunpack.c.0.s8 %v1486
    %v1488 = vlaneseq
    %v1489 = vshrl.u32 %v1488, 7
    %v1490 = vsub.s32 %v1487, %v1489
    %v1491 = vrot.slane %v1477, %v1490
    %v1492 = vcombine.high %v1484, %v1484
    %v1493 = vcombine.high %v1491, %v1491
    %v1494 = vcombine.high %v726, %v726
    %v1496 = vunpack.c.l.s4 1983009808
    %v1497 = vunpack.c.0.s8 %v1496
    %v1498 = vlaneseq
    %v1499 = vshrl.u32 %v1498, 7
    %v1500 = vsub.s32 %v1497, %v1499
    %v1501 = vrot.slane %v726, %v1500
    %v1503 = vunpack.c.l.s4 1983009808
    %v1504 = vunpack.c.0.s8 %v1503
    %v1505 = vlaneseq
    %v1506 = vshrl.u32 %v1505, 7
    %v1507 = vsub.s32 %v1504, %v1506
    %v1508 = vrot.slane %v1494, %v1507
    %v1509 = vcombine.high %v1501, %v1501
    %v1510 = vcombine.high %v1508, %v1508
    %v1511 = vcombine.high %v727, %v727
    %v1513 = vunpack.c.l.s4 1983009808
    %v1514 = vunpack.c.0.s8 %v1513
    %v1515 = vlaneseq
    %v1516 = vshrl.u32 %v1515, 7
    %v1517 = vsub.s32 %v1514, %v1516
    %v1518 = vrot.slane %v727, %v1517
    %v1520 = vunpack.c.l.s4 1983009808
    %v1521 = vunpack.c.0.s8 %v1520
    %v1522 = vlaneseq
    %v1523 = vshrl.u32 %v1522, 7
    %v1524 = vsub.s32 %v1521, %v1523
    %v1525 = vrot.slane %v1511, %v1524
    %v1526 = vcombine.high %v1518, %v1518
    %v1527 = vcombine.high %v1525, %v1525
    %v1528 = vcombine.high %v728, %v728
    %v1530 = vunpack.c.l.s4 1983009808
    %v1531 = vunpack.c.0.s8 %v1530
    %v1532 = vlaneseq
    %v1533 = vshrl.u32 %v1532, 7
    %v1534 = vsub.s32 %v1531, %v1533
    %v1535 = vrot.slane %v728, %v1534
    %v1537 = vunpack.c.l.s4 1983009808
    %v1538 = vunpack.c.0.s8 %v1537
    %v1539 = vlaneseq
    %v1540 = vshrl.u32 %v1539, 7
    %v1541 = vsub.s32 %v1538, %v1540
    %v1542 = vrot.slane %v1528, %v1541
    %v1543 = vcombine.high %v1535, %v1535
    %v1544 = vcombine.high %v1542, %v1542
    %v1545 = vcombine.high %v729, %v729
    %v1547 = vunpack.c.l.s4 1983009808
    %v1548 = vunpack.c.0.s8 %v1547
    %v1549 = vlaneseq
    %v1550 = vshrl.u32 %v1549, 7
    %v1551 = vsub.s32 %v1548, %v1550
    %v1552 = vrot.slane %v729, %v1551
    %v1554 = vunpack.c.l.s4 1983009808
    %v1555 = vunpack.c.0.s8 %v1554
    %v1556 = vlaneseq
    %v1557 = vshrl.u32 %v1556, 7
    %v1558 = vsub.s32 %v1555, %v1557
    %v1559 = vrot.slane %v1545, %v1558
    %v1560 = vcombine.high %v1552, %v1552
    %v1561 = vcombine.high %v1559, %v1559
    %v1562 = vcombine.high %v730, %v730
    %v1564 = vunpack.c.l.s4 1983009808
    %v1565 = vunpack.c.0.s8 %v1564
    %v1566 = vlaneseq
    %v1567 = vshrl.u32 %v1566, 7
    %v1568 = vsub.s32 %v1565, %v1567
    %v1569 = vrot.slane %v730, %v1568
    %v1571 = vunpack.c.l.s4 1983009808
    %v1572 = vunpack.c.0.s8 %v1571
    %v1573 = vlaneseq
    %v1574 = vshrl.u32 %v1573, 7
    %v1575 = vsub.s32 %v1572, %v1574
    %v1576 = vrot.slane %v1562, %v1575
    %v1577 = vcombine.high %v1569, %v1569
    %v1578 = vcombine.high %v1576, %v1576
    %v1579 = vcombine.high %v731, %v731
    %v1581 = vunpack.c.l.s4 1983009808
    %v1582 = vunpack.c.0.s8 %v1581
    %v1583 = vlaneseq
    %v1584 = vshrl.u32 %v1583, 7
    %v1585 = vsub.s32 %v1582, %v1584
    %v1586 = vrot.slane %v731, %v1585
    %v1588 = vunpack.c.l.s4 1983009808
    %v1589 = vunpack.c.0.s8 %v1588
    %v1590 = vlaneseq
    %v1591 = vshrl.u32 %v1590, 7
    %v1592 = vsub.s32 %v1589, %v1591
    %v1593 = vrot.slane %v1579, %v1592
    %v1594 = vcombine.high %v1586, %v1586
    %v1595 = vcombine.high %v1593, %v1593
    %v1596 = vcombine.high %v732, %v732
    %v1598 = vunpack.c.l.s4 1983009808
    %v1599 = vunpack.c.0.s8 %v1598
    %v1600 = vlaneseq
    %v1601 = vshrl.u32 %v1600, 7
    %v1602 = vsub.s32 %v1599, %v1601
    %v1603 = vrot.slane %v732, %v1602
    %v1605 = vunpack.c.l.s4 1983009808
    %v1606 = vunpack.c.0.s8 %v1605
    %v1607 = vlaneseq
    %v1608 = vshrl.u32 %v1607, 7
    %v1609 = vsub.s32 %v1606, %v1608
    %v1610 = vrot.slane %v1596, %v1609
    %v1611 = vcombine.high %v1603, %v1603
    %v1612 = vcombine.high %v1610, %v1610
    %v1613 = vcombine.high %v733, %v733
    %v1615 = vunpack.c.l.s4 1983009808
    %v1616 = vunpack.c.0.s8 %v1615
    %v1617 = vlaneseq
    %v1618 = vshrl.u32 %v1617, 7
    %v1619 = vsub.s32 %v1616, %v1618
    %v1620 = vrot.slane %v733, %v1619
    %v1622 = vunpack.c.l.s4 1983009808
    %v1623 = vunpack.c.0.s8 %v1622
    %v1624 = vlaneseq
    %v1625 = vshrl.u32 %v1624, 7
    %v1626 = vsub.s32 %v1623, %v1625
    %v1627 = vrot.slane %v1613, %v1626
    %v1628 = vcombine.high %v1620, %v1620
    %v1629 = vcombine.high %v1627, %v1627
    %v1630 = vcombine.high %v734, %v734
    %v1632 = vunpack.c.l.s4 1983009808
    %v1633 = vunpack.c.0.s8 %v1632
    %v1634 = vlaneseq
    %v1635 = vshrl.u32 %v1634, 7
    %v1636 = vsub.s32 %v1633, %v1635
    %v1637 = vrot.slane %v734, %v1636
    %v1639 = vunpack.c.l.s4 1983009808
    %v1640 = vunpack.c.0.s8 %v1639
    %v1641 = vlaneseq
    %v1642 = vshrl.u32 %v1641, 7
    %v1643 = vsub.s32 %v1640, %v1642
    %v1644 = vrot.slane %v1630, %v1643
    %v1645 = vcombine.high %v1637, %v1637
    %v1646 = vcombine.high %v1644, %v1644
    %v1647 = vcombine.high %v735, %v735
    %v1649 = vunpack.c.l.s4 1983009808
    %v1650 = vunpack.c.0.s8 %v1649
    %v1651 = vlaneseq
    %v1652 = vshrl.u32 %v1651, 7
    %v1653 = vsub.s32 %v1650, %v1652
    %v1654 = vrot.slane %v735, %v1653
    %v1656 = vunpack.c.l.s4 1983009808
    %v1657 = vunpack.c.0.s8 %v1656
    %v1658 = vlaneseq
    %v1659 = vshrl.u32 %v1658, 7
    %v1660 = vsub.s32 %v1657, %v1659
    %v1661 = vrot.slane %v1647, %v1660
    %v1662 = vcombine.high %v1654, %v1654
    %v1663 = vcombine.high %v1661, %v1661
    %v1664 = vcombine.high %v736, %v736
    %v1666 = vunpack.c.l.s4 1983009808
    %v1667 = vunpack.c.0.s8 %v1666
    %v1668 = vlaneseq
    %v1669 = vshrl.u32 %v1668, 7
    %v1670 = vsub.s32 %v1667, %v1669
    %v1671 = vrot.slane %v736, %v1670
    %v1673 = vunpack.c.l.s4 1983009808
    %v1674 = vunpack.c.0.s8 %v1673
    %v1675 = vlaneseq
    %v1676 = vshrl.u32 %v1675, 7
    %v1677 = vsub.s32 %v1674, %v1676
    %v1678 = vrot.slane %v1664, %v1677
    %v1679 = vcombine.high %v1671, %v1671
    %v1680 = vcombine.high %v1678, %v1678
    %v1681 = vcombine.high %v737, %v737
    %v1683 = vunpack.c.l.s4 1983009808
    %v1684 = vunpack.c.0.s8 %v1683
    %v1685 = vlaneseq
    %v1686 = vshrl.u32 %v1685, 7
    %v1687 = vsub.s32 %v1684, %v1686
    %v1688 = vrot.slane %v737, %v1687
    %v1690 = vunpack.c.l.s4 1983009808
    %v1691 = vunpack.c.0.s8 %v1690
    %v1692 = vlaneseq
    %v1693 = vshrl.u32 %v1692, 7
    %v1694 = vsub.s32 %v1691, %v1693
    %v1695 = vrot.slane %v1681, %v1694
    %v1696 = vcombine.high %v1688, %v1688
    %v1697 = vcombine.high %v1695, %v1695
    %v1698 = vcombine.high %v738, %v738
    %v1700 = vunpack.c.l.s4 1983009808
    %v1701 = vunpack.c.0.s8 %v1700
    %v1702 = vlaneseq
    %v1703 = vshrl.u32 %v1702, 7
    %v1704 = vsub.s32 %v1701, %v1703
    %v1705 = vrot.slane %v738, %v1704
    %v1707 = vunpack.c.l.s4 1983009808
    %v1708 = vunpack.c.0.s8 %v1707
    %v1709 = vlaneseq
    %v1710 = vshrl.u32 %v1709, 7
    %v1711 = vsub.s32 %v1708, %v1710
    %v1712 = vrot.slane %v1698, %v1711
    %v1713 = vcombine.high %v1705, %v1705
    %v1714 = vcombine.high %v1712, %v1712
    %v1715 = vcombine.high %v739, %v739
    %v1717 = vunpack.c.l.s4 1983009808
    %v1718 = vunpack.c.0.s8 %v1717
    %v1719 = vlaneseq
    %v1720 = vshrl.u32 %v1719, 7
    %v1721 = vsub.s32 %v1718, %v1720
    %v1722 = vrot.slane %v739, %v1721
    %v1724 = vunpack.c.l.s4 1983009808
    %v1725 = vunpack.c.0.s8 %v1724
    %v1726 = vlaneseq
    %v1727 = vshrl.u32 %v1726, 7
    %v1728 = vsub.s32 %v1725, %v1727
    %v1729 = vrot.slane %v1715, %v1728
    %v1730 = vcombine.high %v1722, %v1722
    %v1731 = vcombine.high %v1729, %v1729
    %v1732 = vcombine.high %v740, %v740
    %v1734 = vunpack.c.l.s4 1983009808
    %v1735 = vunpack.c.0.s8 %v1734
    %v1736 = vlaneseq
    %v1737 = vshrl.u32 %v1736, 7
    %v1738 = vsub.s32 %v1735, %v1737
    %v1739 = vrot.slane %v740, %v1738
    %v1741 = vunpack.c.l.s4 1983009808
    %v1742 = vunpack.c.0.s8 %v1741
    %v1743 = vlaneseq
    %v1744 = vshrl.u32 %v1743, 7
    %v1745 = vsub.s32 %v1742, %v1744
    %v1746 = vrot.slane %v1732, %v1745
    %v1747 = vcombine.high %v1739, %v1739
    %v1748 = vcombine.high %v1746, %v1746
    %v1749 = vcombine.high %v741, %v741
    %v1751 = vunpack.c.l.s4 1983009808
    %v1752 = vunpack.c.0.s8 %v1751
    %v1753 = vlaneseq
    %v1754 = vshrl.u32 %v1753, 7
    %v1755 = vsub.s32 %v1752, %v1754
    %v1756 = vrot.slane %v741, %v1755
    %v1758 = vunpack.c.l.s4 1983009808
    %v1759 = vunpack.c.0.s8 %v1758
    %v1760 = vlaneseq
    %v1761 = vshrl.u32 %v1760, 7
    %v1762 = vsub.s32 %v1759, %v1761
    %v1763 = vrot.slane %v1749, %v1762
    %v1764 = vcombine.high %v1756, %v1756
    %v1765 = vcombine.high %v1763, %v1763
    %v1766 = vcombine.high %v742, %v742
    %v1768 = vunpack.c.l.s4 1983009808
    %v1769 = vunpack.c.0.s8 %v1768
    %v1770 = vlaneseq
    %v1771 = vshrl.u32 %v1770, 7
    %v1772 = vsub.s32 %v1769, %v1771
    %v1773 = vrot.slane %v742, %v1772
    %v1775 = vunpack.c.l.s4 1983009808
    %v1776 = vunpack.c.0.s8 %v1775
    %v1777 = vlaneseq
    %v1778 = vshrl.u32 %v1777, 7
    %v1779 = vsub.s32 %v1776, %v1778
    %v1780 = vrot.slane %v1766, %v1779
    %v1781 = vcombine.high %v1773, %v1773
    %v1782 = vcombine.high %v1780, %v1780
    %v1783 = vcombine.high %v743, %v743
    %v1785 = vunpack.c.l.s4 1983009808
    %v1786 = vunpack.c.0.s8 %v1785
    %v1787 = vlaneseq
    %v1788 = vshrl.u32 %v1787, 7
    %v1789 = vsub.s32 %v1786, %v1788
    %v1790 = vrot.slane %v743, %v1789
    %v1792 = vunpack.c.l.s4 1983009808
    %v1793 = vunpack.c.0.s8 %v1792
    %v1794 = vlaneseq
    %v1795 = vshrl.u32 %v1794, 7
    %v1796 = vsub.s32 %v1793, %v1795
    %v1797 = vrot.slane %v1783, %v1796
    %v1798 = vcombine.high %v1790, %v1790
    %v1799 = vcombine.high %v1797, %v1797
    %v1800 = vcombine.high %v744, %v744
    %v1802 = vunpack.c.l.s4 1983009808
    %v1803 = vunpack.c.0.s8 %v1802
    %v1804 = vlaneseq
    %v1805 = vshrl.u32 %v1804, 7
    %v1806 = vsub.s32 %v1803, %v1805
    %v1807 = vrot.slane %v744, %v1806
    %v1809 = vunpack.c.l.s4 1983009808
    %v1810 = vunpack.c.0.s8 %v1809
    %v1811 = vlaneseq
    %v1812 = vshrl.u32 %v1811, 7
    %v1813 = vsub.s32 %v1810, %v1812
    %v1814 = vrot.slane %v1800, %v1813
    %v1815 = vcombine.high %v1807, %v1807
    %v1816 = vcombine.high %v1814, %v1814
    %v1817 = vcombine.high %v745, %v745
    %v1819 = vunpack.c.l.s4 1983009808
    %v1820 = vunpack.c.0.s8 %v1819
    %v1821 = vlaneseq
    %v1822 = vshrl.u32 %v1821, 7
    %v1823 = vsub.s32 %v1820, %v1822
    %v1824 = vrot.slane %v745, %v1823
    %v1826 = vunpack.c.l.s4 1983009808
    %v1827 = vunpack.c.0.s8 %v1826
    %v1828 = vlaneseq
    %v1829 = vshrl.u32 %v1828, 7
    %v1830 = vsub.s32 %v1827, %v1829
    %v1831 = vrot.slane %v1817, %v1830
    %v1832 = vcombine.high %v1824, %v1824
    %v1833 = vcombine.high %v1831, %v1831
    %v1834 = vcombine.high %v746, %v746
    %v1836 = vunpack.c.l.s4 1983009808
    %v1837 = vunpack.c.0.s8 %v1836
    %v1838 = vlaneseq
    %v1839 = vshrl.u32 %v1838, 7
    %v1840 = vsub.s32 %v1837, %v1839
    %v1841 = vrot.slane %v746, %v1840
    %v1843 = vunpack.c.l.s4 1983009808
    %v1844 = vunpack.c.0.s8 %v1843
    %v1845 = vlaneseq
    %v1846 = vshrl.u32 %v1845, 7
    %v1847 = vsub.s32 %v1844, %v1846
    %v1848 = vrot.slane %v1834, %v1847
    %v1849 = vcombine.high %v1841, %v1841
    %v1850 = vcombine.high %v1848, %v1848
    %v1851 = vcombine.high %v747, %v747
    %v1853 = vunpack.c.l.s4 1983009808
    %v1854 = vunpack.c.0.s8 %v1853
    %v1855 = vlaneseq
    %v1856 = vshrl.u32 %v1855, 7
    %v1857 = vsub.s32 %v1854, %v1856
    %v1858 = vrot.slane %v747, %v1857
    %v1860 = vunpack.c.l.s4 1983009808
    %v1861 = vunpack.c.0.s8 %v1860
    %v1862 = vlaneseq
    %v1863 = vshrl.u32 %v1862, 7
    %v1864 = vsub.s32 %v1861, %v1863
    %v1865 = vrot.slane %v1851, %v1864
    %v1866 = vcombine.high %v1858, %v1858
    %v1867 = vcombine.high %v1865, %v1865
    %v1868 = vcombine.high %v748, %v748
    %v1870 = vunpack.c.l.s4 1983009808
    %v1871 = vunpack.c.0.s8 %v1870
    %v1872 = vlaneseq
    %v1873 = vshrl.u32 %v1872, 7
    %v1874 = vsub.s32 %v1871, %v1873
    %v1875 = vrot.slane %v748, %v1874
    %v1877 = vunpack.c.l.s4 1983009808
    %v1878 = vunpack.c.0.s8 %v1877
    %v1879 = vlaneseq
    %v1880 = vshrl.u32 %v1879, 7
    %v1881 = vsub.s32 %v1878, %v1880
    %v1882 = vrot.slane %v1868, %v1881
    %v1883 = vcombine.high %v1875, %v1875
    %v1884 = vcombine.high %v1882, %v1882
    %v1885 = vcombine.high %v749, %v749
    %v1887 = vunpack.c.l.s4 1983009808
    %v1888 = vunpack.c.0.s8 %v1887
    %v1889 = vlaneseq
    %v1890 = vshrl.u32 %v1889, 7
    %v1891 = vsub.s32 %v1888, %v1890
    %v1892 = vrot.slane %v749, %v1891
    %v1894 = vunpack.c.l.s4 1983009808
    %v1895 = vunpack.c.0.s8 %v1894
    %v1896 = vlaneseq
    %v1897 = vshrl.u32 %v1896, 7
    %v1898 = vsub.s32 %v1895, %v1897
    %v1899 = vrot.slane %v1885, %v1898
    %v1900 = vcombine.high %v1892, %v1892
    %v1901 = vcombine.high %v1899, %v1899
    %v2158 = vmax.f32 %v821, %v855
    %v2159 = vmax.f32 %v829, %v863
    %v2160 = vmax.f32 %v828, %v862
    %v2161 = vmax.f32 %v830, %v864
    %v2162 = vmax.f32 %v838, %v872
    %v2163 = vmax.f32 %v846, %v880
    %v2164 = vmax.f32 %v845, %v879
    %v2165 = vmax.f32 %v847, %v881
    %v2166 = vmax.f32 %v889, %v923
    %v2167 = vmax.f32 %v897, %v931
    %v2168 = vmax.f32 %v896, %v930
    %v2169 = vmax.f32 %v898, %v932
    %v2170 = vmax.f32 %v906, %v940
    %v2171 = vmax.f32 %v914, %v948
    %v2172 = vmax.f32 %v913, %v947
    %v2173 = vmax.f32 %v915, %v949
    %v2174 = vmax.f32 %v957, %v991
    %v2175 = vmax.f32 %v965, %v999
    %v2176 = vmax.f32 %v964, %v998
    %v2177 = vmax.f32 %v966, %v1000
    %v2178 = vmax.f32 %v974, %v1008
    %v2179 = vmax.f32 %v982, %v1016
    %v2180 = vmax.f32 %v981, %v1015
    %v2181 = vmax.f32 %v983, %v1017
    %v2182 = vmax.f32 %v1025, %v1059
    %v2183 = vmax.f32 %v1033, %v1067
    %v2184 = vmax.f32 %v1032, %v1066
    %v2185 = vmax.f32 %v1034, %v1068
    %v2186 = vmax.f32 %v1042, %v1076
    %v2187 = vmax.f32 %v1050, %v1084
    %v2188 = vmax.f32 %v1049, %v1083
    %v2189 = vmax.f32 %v1051, %v1085
    %v2190 = vmax.f32 %v1093, %v1127
    %v2191 = vmax.f32 %v1101, %v1135
    %v2192 = vmax.f32 %v1100, %v1134
    %v2193 = vmax.f32 %v1102, %v1136
    %v2194 = vmax.f32 %v1110, %v1144
    %v2195 = vmax.f32 %v1118, %v1152
    %v2196 = vmax.f32 %v1117, %v1151
    %v2197 = vmax.f32 %v1119, %v1153
    %v2198 = vmax.f32 %v1161, %v1195
    %v2199 = vmax.f32 %v1169, %v1203
    %v2200 = vmax.f32 %v1168, %v1202
    %v2201 = vmax.f32 %v1170, %v1204
    %v2202 = vmax.f32 %v1178, %v1212
    %v2203 = vmax.f32 %v1186, %v1220
    %v2204 = vmax.f32 %v1185, %v1219
    %v2205 = vmax.f32 %v1187, %v1221
    %v2206 = vmax.f32 %v1229, %v1263
    %v2207 = vmax.f32 %v1237, %v1271
    %v2208 = vmax.f32 %v1236, %v1270
    %v2209 = vmax.f32 %v1238, %v1272
    %v2210 = vmax.f32 %v1246, %v1280
    %v2211 = vmax.f32 %v1254, %v1288
    %v2212 = vmax.f32 %v1253, %v1287
    %v2213 = vmax.f32 %v1255, %v1289
    %v2214 = vmax.f32 %v1297, %v1331
    %v2215 = vmax.f32 %v1305, %v1339
    %v2216 = vmax.f32 %v1304, %v1338
    %v2217 = vmax.f32 %v1306, %v1340
    %v2218 = vmax.f32 %v1314, %v1348
    %v2219 = vmax.f32 %v1322, %v1356
    %v2220 = vmax.f32 %v1321, %v1355
    %v2221 = vmax.f32 %v1323, %v1357
    %v2222 = vmax.f32 %v1365, %v1399
    %v2223 = vmax.f32 %v1373, %v1407
    %v2224 = vmax.f32 %v1372, %v1406
    %v2225 = vmax.f32 %v1374, %v1408
    %v2226 = vmax.f32 %v1382, %v1416
    %v2227 = vmax.f32 %v1390, %v1424
    %v2228 = vmax.f32 %v1389, %v1423
    %v2229 = vmax.f32 %v1391, %v1425
    %v2230 = vmax.f32 %v1433, %v1467
    %v2231 = vmax.f32 %v1441, %v1475
    %v2232 = vmax.f32 %v1440, %v1474
    %v2233 = vmax.f32 %v1442, %v1476
    %v2234 = vmax.f32 %v1450, %v1484
    %v2235 = vmax.f32 %v1458, %v1492
    %v2236 = vmax.f32 %v1457, %v1491
    %v2237 = vmax.f32 %v1459, %v1493
    %v2238 = vmax.f32 %v1501, %v1535
    %v2239 = vmax.f32 %v1509, %v1543
    %v2240 = vmax.f32 %v1508, %v1542
    %v2241 = vmax.f32 %v1510, %v1544
    %v2242 = vmax.f32 %v1518, %v1552
    %v2243 = vmax.f32 %v1526, %v1560
    %v2244 = vmax.f32 %v1525, %v1559
    %v2245 = vmax.f32 %v1527, %v1561
    %v2246 = vmax.f32 %v1569, %v1603
    %v2247 = vmax.f32 %v1577, %v1611
    %v2248 = vmax.f32 %v1576, %v1610
    %v2249 = vmax.f32 %v1578, %v1612
    %v2250 = vmax.f32 %v1586, %v1620
    %v2251 = vmax.f32 %v1594, %v1628
    %v2252 = vmax.f32 %v1593, %v1627
    %v2253 = vmax.f32 %v1595, %v1629
    %v2254 = vmax.f32 %v1637, %v1671
    %v2255 = vmax.f32 %v1645, %v1679
    %v2256 = vmax.f32 %v1644, %v1678
    %v2257 = vmax.f32 %v1646, %v1680
    %v2258 = vmax.f32 %v1654, %v1688
    %v2259 = vmax.f32 %v1662, %v1696
    %v2260 = vmax.f32 %v1661, %v1695
    %v2261 = vmax.f32 %v1663, %v1697
    %v2262 = vmax.f32 %v1705, %v1739
    %v2263 = vmax.f32 %v1713, %v1747
    %v2264 = vmax.f32 %v1712, %v1746
    %v2265 = vmax.f32 %v1714, %v1748
    %v2266 = vmax.f32 %v1722, %v1756
    %v2267 = vmax.f32 %v1730, %v1764
    %v2268 = vmax.f32 %v1729, %v1763
    %v2269 = vmax.f32 %v1731, %v1765
    %v2270 = vmax.f32 %v1773, %v1807
    %v2271 = vmax.f32 %v1781, %v1815
    %v2272 = vmax.f32 %v1780, %v1814
    %v2273 = vmax.f32 %v1782, %v1816
    %v2274 = vmax.f32 %v1790, %v1824
    %v2275 = vmax.f32 %v1798, %v1832
    %v2276 = vmax.f32 %v1797, %v1831
    %v2277 = vmax.f32 %v1799, %v1833
    %v2278 = vmax.f32 %v1841, %v1875
    %v2279 = vmax.f32 %v1849, %v1883
    %v2280 = vmax.f32 %v1848, %v1882
    %v2281 = vmax.f32 %v1850, %v1884
    %v2282 = vmax.f32 %v1858, %v1892
    %v2283 = vmax.f32 %v1866, %v1900
    %v2284 = vmax.f32 %v1865, %v1899
    %v2285 = vmax.f32 %v1867, %v1901
    %v2414 = vrot.slane %v2158, 7
    %v2415 = vrot.slane %v2414, 2
    %v2416 = vrot.slane %v2159, 7
    %v2417 = vrot.slane %v2416, 2
    %v2418 = vrot.slane %v2160, 7
    %v2419 = vrot.slane %v2418, 2
    %v2420 = vrot.slane %v2161, 7
    %v2421 = vrot.slane %v2420, 2
    %v2422 = vrot.slane %v2162, 7
    %v2423 = vrot.slane %v2422, 2
    %v2424 = vrot.slane %v2163, 7
    %v2425 = vrot.slane %v2424, 2
    %v2426 = vrot.slane %v2164, 7
    %v2427 = vrot.slane %v2426, 2
    %v2428 = vrot.slane %v2165, 7
    %v2429 = vrot.slane %v2428, 2
    %v2430 = vrot.slane %v2166, 7
    %v2431 = vrot.slane %v2430, 2
    %v2432 = vrot.slane %v2167, 7
    %v2433 = vrot.slane %v2432, 2
    %v2434 = vrot.slane %v2168, 7
    %v2435 = vrot.slane %v2434, 2
    %v2436 = vrot.slane %v2169, 7
    %v2437 = vrot.slane %v2436, 2
    %v2438 = vrot.slane %v2170, 7
    %v2439 = vrot.slane %v2438, 2
    %v2440 = vrot.slane %v2171, 7
    %v2441 = vrot.slane %v2440, 2
    %v2442 = vrot.slane %v2172, 7
    %v2443 = vrot.slane %v2442, 2
    %v2444 = vrot.slane %v2173, 7
    %v2445 = vrot.slane %v2444, 2
    %v2446 = vrot.slane %v2174, 7
    %v2447 = vrot.slane %v2446, 2
    %v2448 = vrot.slane %v2175, 7
    %v2449 = vrot.slane %v2448, 2
    %v2450 = vrot.slane %v2176, 7
    %v2451 = vrot.slane %v2450, 2
    %v2452 = vrot.slane %v2177, 7
    %v2453 = vrot.slane %v2452, 2
    %v2454 = vrot.slane %v2178, 7
    %v2455 = vrot.slane %v2454, 2
    %v2456 = vrot.slane %v2179, 7
    %v2457 = vrot.slane %v2456, 2
    %v2458 = vrot.slane %v2180, 7
    %v2459 = vrot.slane %v2458, 2
    %v2460 = vrot.slane %v2181, 7
    %v2461 = vrot.slane %v2460, 2
    %v2462 = vrot.slane %v2182, 7
    %v2463 = vrot.slane %v2462, 2
    %v2464 = vrot.slane %v2183, 7
    %v2465 = vrot.slane %v2464, 2
    %v2466 = vrot.slane %v2184, 7
    %v2467 = vrot.slane %v2466, 2
    %v2468 = vrot.slane %v2185, 7
    %v2469 = vrot.slane %v2468, 2
    %v2470 = vrot.slane %v2186, 7
    %v2471 = vrot.slane %v2470, 2
    %v2472 = vrot.slane %v2187, 7
    %v2473 = vrot.slane %v2472, 2
    %v2474 = vrot.slane %v2188, 7
    %v2475 = vrot.slane %v2474, 2
    %v2476 = vrot.slane %v2189, 7
    %v2477 = vrot.slane %v2476, 2
    %v2478 = vrot.slane %v2190, 7
    %v2479 = vrot.slane %v2478, 2
    %v2480 = vrot.slane %v2191, 7
    %v2481 = vrot.slane %v2480, 2
    %v2482 = vrot.slane %v2192, 7
    %v2483 = vrot.slane %v2482, 2
    %v2484 = vrot.slane %v2193, 7
    %v2485 = vrot.slane %v2484, 2
    %v2486 = vrot.slane %v2194, 7
    %v2487 = vrot.slane %v2486, 2
    %v2488 = vrot.slane %v2195, 7
    %v2489 = vrot.slane %v2488, 2
    %v2490 = vrot.slane %v2196, 7
    %v2491 = vrot.slane %v2490, 2
    %v2492 = vrot.slane %v2197, 7
    %v2493 = vrot.slane %v2492, 2
    %v2494 = vrot.slane %v2198, 7
    %v2495 = vrot.slane %v2494, 2
    %v2496 = vrot.slane %v2199, 7
    %v2497 = vrot.slane %v2496, 2
    %v2498 = vrot.slane %v2200, 7
    %v2499 = vrot.slane %v2498, 2
    %v2500 = vrot.slane %v2201, 7
    %v2501 = vrot.slane %v2500, 2
    %v2502 = vrot.slane %v2202, 7
    %v2503 = vrot.slane %v2502, 2
    %v2504 = vrot.slane %v2203, 7
    %v2505 = vrot.slane %v2504, 2
    %v2506 = vrot.slane %v2204, 7
    %v2507 = vrot.slane %v2506, 2
    %v2508 = vrot.slane %v2205, 7
    %v2509 = vrot.slane %v2508, 2
    %v2510 = vrot.slane %v2206, 7
    %v2511 = vrot.slane %v2510, 2
    %v2512 = vrot.slane %v2207, 7
    %v2513 = vrot.slane %v2512, 2
    %v2514 = vrot.slane %v2208, 7
    %v2515 = vrot.slane %v2514, 2
    %v2516 = vrot.slane %v2209, 7
    %v2517 = vrot.slane %v2516, 2
    %v2518 = vrot.slane %v2210, 7
    %v2519 = vrot.slane %v2518, 2
    %v2520 = vrot.slane %v2211, 7
    %v2521 = vrot.slane %v2520, 2
    %v2522 = vrot.slane %v2212, 7
    %v2523 = vrot.slane %v2522, 2
    %v2524 = vrot.slane %v2213, 7
    %v2525 = vrot.slane %v2524, 2
    %v2526 = vrot.slane %v2214, 7
    %v2527 = vrot.slane %v2526, 2
    %v2528 = vrot.slane %v2215, 7
    %v2529 = vrot.slane %v2528, 2
    %v2530 = vrot.slane %v2216, 7
    %v2531 = vrot.slane %v2530, 2
    %v2532 = vrot.slane %v2217, 7
    %v2533 = vrot.slane %v2532, 2
    %v2534 = vrot.slane %v2218, 7
    %v2535 = vrot.slane %v2534, 2
    %v2536 = vrot.slane %v2219, 7
    %v2537 = vrot.slane %v2536, 2
    %v2538 = vrot.slane %v2220, 7
    %v2539 = vrot.slane %v2538, 2
    %v2540 = vrot.slane %v2221, 7
    %v2541 = vrot.slane %v2540, 2
    %v2542 = vrot.slane %v2222, 7
    %v2543 = vrot.slane %v2542, 2
    %v2544 = vrot.slane %v2223, 7
    %v2545 = vrot.slane %v2544, 2
    %v2546 = vrot.slane %v2224, 7
    %v2547 = vrot.slane %v2546, 2
    %v2548 = vrot.slane %v2225, 7
    %v2549 = vrot.slane %v2548, 2
    %v2550 = vrot.slane %v2226, 7
    %v2551 = vrot.slane %v2550, 2
    %v2552 = vrot.slane %v2227, 7
    %v2553 = vrot.slane %v2552, 2
    %v2554 = vrot.slane %v2228, 7
    %v2555 = vrot.slane %v2554, 2
    %v2556 = vrot.slane %v2229, 7
    %v2557 = vrot.slane %v2556, 2
    %v2558 = vrot.slane %v2230, 7
    %v2559 = vrot.slane %v2558, 2
    %v2560 = vrot.slane %v2231, 7
    %v2561 = vrot.slane %v2560, 2
    %v2562 = vrot.slane %v2232, 7
    %v2563 = vrot.slane %v2562, 2
    %v2564 = vrot.slane %v2233, 7
    %v2565 = vrot.slane %v2564, 2
    %v2566 = vrot.slane %v2234, 7
    %v2567 = vrot.slane %v2566, 2
    %v2568 = vrot.slane %v2235, 7
    %v2569 = vrot.slane %v2568, 2
    %v2570 = vrot.slane %v2236, 7
    %v2571 = vrot.slane %v2570, 2
    %v2572 = vrot.slane %v2237, 7
    %v2573 = vrot.slane %v2572, 2
    %v2574 = vrot.slane %v2238, 7
    %v2575 = vrot.slane %v2574, 2
    %v2576 = vrot.slane %v2239, 7
    %v2577 = vrot.slane %v2576, 2
    %v2578 = vrot.slane %v2240, 7
    %v2579 = vrot.slane %v2578, 2
    %v2580 = vrot.slane %v2241, 7
    %v2581 = vrot.slane %v2580, 2
    %v2582 = vrot.slane %v2242, 7
    %v2583 = vrot.slane %v2582, 2
    %v2584 = vrot.slane %v2243, 7
    %v2585 = vrot.slane %v2584, 2
    %v2586 = vrot.slane %v2244, 7
    %v2587 = vrot.slane %v2586, 2
    %v2588 = vrot.slane %v2245, 7
    %v2589 = vrot.slane %v2588, 2
    %v2590 = vrot.slane %v2246, 7
    %v2591 = vrot.slane %v2590, 2
    %v2592 = vrot.slane %v2247, 7
    %v2593 = vrot.slane %v2592, 2
    %v2594 = vrot.slane %v2248, 7
    %v2595 = vrot.slane %v2594, 2
    %v2596 = vrot.slane %v2249, 7
    %v2597 = vrot.slane %v2596, 2
    %v2598 = vrot.slane %v2250, 7
    %v2599 = vrot.slane %v2598, 2
    %v2600 = vrot.slane %v2251, 7
    %v2601 = vrot.slane %v2600, 2
    %v2602 = vrot.slane %v2252, 7
    %v2603 = vrot.slane %v2602, 2
    %v2604 = vrot.slane %v2253, 7
    %v2605 = vrot.slane %v2604, 2
    %v2606 = vrot.slane %v2254, 7
    %v2607 = vrot.slane %v2606, 2
    %v2608 = vrot.slane %v2255, 7
    %v2609 = vrot.slane %v2608, 2
    %v2610 = vrot.slane %v2256, 7
    %v2611 = vrot.slane %v2610, 2
    %v2612 = vrot.slane %v2257, 7
    %v2613 = vrot.slane %v2612, 2
    %v2614 = vrot.slane %v2258, 7
    %v2615 = vrot.slane %v2614, 2
    %v2616 = vrot.slane %v2259, 7
    %v2617 = vrot.slane %v2616, 2
    %v2618 = vrot.slane %v2260, 7
    %v2619 = vrot.slane %v2618, 2
    %v2620 = vrot.slane %v2261, 7
    %v2621 = vrot.slane %v2620, 2
    %v2622 = vrot.slane %v2262, 7
    %v2623 = vrot.slane %v2622, 2
    %v2624 = vrot.slane %v2263, 7
    %v2625 = vrot.slane %v2624, 2
    %v2626 = vrot.slane %v2264, 7
    %v2627 = vrot.slane %v2626, 2
    %v2628 = vrot.slane %v2265, 7
    %v2629 = vrot.slane %v2628, 2
    %v2630 = vrot.slane %v2266, 7
    %v2631 = vrot.slane %v2630, 2
    %v2632 = vrot.slane %v2267, 7
    %v2633 = vrot.slane %v2632, 2
    %v2634 = vrot.slane %v2268, 7
    %v2635 = vrot.slane %v2634, 2
    %v2636 = vrot.slane %v2269, 7
    %v2637 = vrot.slane %v2636, 2
    %v2638 = vrot.slane %v2270, 7
    %v2639 = vrot.slane %v2638, 2
    %v2640 = vrot.slane %v2271, 7
    %v2641 = vrot.slane %v2640, 2
    %v2642 = vrot.slane %v2272, 7
    %v2643 = vrot.slane %v2642, 2
    %v2644 = vrot.slane %v2273, 7
    %v2645 = vrot.slane %v2644, 2
    %v2646 = vrot.slane %v2274, 7
    %v2647 = vrot.slane %v2646, 2
    %v2648 = vrot.slane %v2275, 7
    %v2649 = vrot.slane %v2648, 2
    %v2650 = vrot.slane %v2276, 7
    %v2651 = vrot.slane %v2650, 2
    %v2652 = vrot.slane %v2277, 7
    %v2653 = vrot.slane %v2652, 2
    %v2654 = vrot.slane %v2278, 7
    %v2655 = vrot.slane %v2654, 2
    %v2656 = vrot.slane %v2279, 7
    %v2657 = vrot.slane %v2656, 2
    %v2658 = vrot.slane %v2280, 7
    %v2659 = vrot.slane %v2658, 2
    %v2660 = vrot.slane %v2281, 7
    %v2661 = vrot.slane %v2660, 2
    %v2662 = vrot.slane %v2282, 7
    %v2663 = vrot.slane %v2662, 2
    %v2664 = vrot.slane %v2283, 7
    %v2665 = vrot.slane %v2664, 2
    %v2666 = vrot.slane %v2284, 7
    %v2667 = vrot.slane %v2666, 2
    %v2668 = vrot.slane %v2285, 7
    %v2669 = vrot.slane %v2668, 2
    %v2798 = vmax.f32 %v2158, %v2415
    %v2799 = vmax.f32 %v2159, %v2417
    %v2800 = vmax.f32 %v2160, %v2419
    %v2801 = vmax.f32 %v2161, %v2421
    %v2802 = vmax.f32 %v2162, %v2423
    %v2803 = vmax.f32 %v2163, %v2425
    %v2804 = vmax.f32 %v2164, %v2427
    %v2805 = vmax.f32 %v2165, %v2429
    %v2806 = vmax.f32 %v2166, %v2431
    %v2807 = vmax.f32 %v2167, %v2433
    %v2808 = vmax.f32 %v2168, %v2435
    %v2809 = vmax.f32 %v2169, %v2437
    %v2810 = vmax.f32 %v2170, %v2439
    %v2811 = vmax.f32 %v2171, %v2441
    %v2812 = vmax.f32 %v2172, %v2443
    %v2813 = vmax.f32 %v2173, %v2445
    %v2814 = vmax.f32 %v2174, %v2447
    %v2815 = vmax.f32 %v2175, %v2449
    %v2816 = vmax.f32 %v2176, %v2451
    %v2817 = vmax.f32 %v2177, %v2453
    %v2818 = vmax.f32 %v2178, %v2455
    %v2819 = vmax.f32 %v2179, %v2457
    %v2820 = vmax.f32 %v2180, %v2459
    %v2821 = vmax.f32 %v2181, %v2461
    %v2822 = vmax.f32 %v2182, %v2463
    %v2823 = vmax.f32 %v2183, %v2465
    %v2824 = vmax.f32 %v2184, %v2467
    %v2825 = vmax.f32 %v2185, %v2469
    %v2826 = vmax.f32 %v2186, %v2471
    %v2827 = vmax.f32 %v2187, %v2473
    %v2828 = vmax.f32 %v2188, %v2475
    %v2829 = vmax.f32 %v2189, %v2477
    %v2830 = vmax.f32 %v2190, %v2479
    %v2831 = vmax.f32 %v2191, %v2481
    %v2832 = vmax.f32 %v2192, %v2483
    %v2833 = vmax.f32 %v2193, %v2485
    %v2834 = vmax.f32 %v2194, %v2487
    %v2835 = vmax.f32 %v2195, %v2489
    %v2836 = vmax.f32 %v2196, %v2491
    %v2837 = vmax.f32 %v2197, %v2493
    %v2838 = vmax.f32 %v2198, %v2495
    %v2839 = vmax.f32 %v2199, %v2497
    %v2840 = vmax.f32 %v2200, %v2499
    %v2841 = vmax.f32 %v2201, %v2501
    %v2842 = vmax.f32 %v2202, %v2503
    %v2843 = vmax.f32 %v2203, %v2505
    %v2844 = vmax.f32 %v2204, %v2507
    %v2845 = vmax.f32 %v2205, %v2509
    %v2846 = vmax.f32 %v2206, %v2511
    %v2847 = vmax.f32 %v2207, %v2513
    %v2848 = vmax.f32 %v2208, %v2515
    %v2849 = vmax.f32 %v2209, %v2517
    %v2850 = vmax.f32 %v2210, %v2519
    %v2851 = vmax.f32 %v2211, %v2521
    %v2852 = vmax.f32 %v2212, %v2523
    %v2853 = vmax.f32 %v2213, %v2525
    %v2854 = vmax.f32 %v2214, %v2527
    %v2855 = vmax.f32 %v2215, %v2529
    %v2856 = vmax.f32 %v2216, %v2531
    %v2857 = vmax.f32 %v2217, %v2533
    %v2858 = vmax.f32 %v2218, %v2535
    %v2859 = vmax.f32 %v2219, %v2537
    %v2860 = vmax.f32 %v2220, %v2539
    %v2861 = vmax.f32 %v2221, %v2541
    %v2862 = vmax.f32 %v2222, %v2543
    %v2863 = vmax.f32 %v2223, %v2545
    %v2864 = vmax.f32 %v2224, %v2547
    %v2865 = vmax.f32 %v2225, %v2549
    %v2866 = vmax.f32 %v2226, %v2551
    %v2867 = vmax.f32 %v2227, %v2553
    %v2868 = vmax.f32 %v2228, %v2555
    %v2869 = vmax.f32 %v2229, %v2557
    %v2870 = vmax.f32 %v2230, %v2559
    %v2871 = vmax.f32 %v2231, %v2561
    %v2872 = vmax.f32 %v2232, %v2563
    %v2873 = vmax.f32 %v2233, %v2565
    %v2874 = vmax.f32 %v2234, %v2567
    %v2875 = vmax.f32 %v2235, %v2569
    %v2876 = vmax.f32 %v2236, %v2571
    %v2877 = vmax.f32 %v2237, %v2573
    %v2878 = vmax.f32 %v2238, %v2575
    %v2879 = vmax.f32 %v2239, %v2577
    %v2880 = vmax.f32 %v2240, %v2579
    %v2881 = vmax.f32 %v2241, %v2581
    %v2882 = vmax.f32 %v2242, %v2583
    %v2883 = vmax.f32 %v2243, %v2585
    %v2884 = vmax.f32 %v2244, %v2587
    %v2885 = vmax.f32 %v2245, %v2589
    %v2886 = vmax.f32 %v2246, %v2591
    %v2887 = vmax.f32 %v2247, %v2593
    %v2888 = vmax.f32 %v2248, %v2595
    %v2889 = vmax.f32 %v2249, %v2597
    %v2890 = vmax.f32 %v2250, %v2599
    %v2891 = vmax.f32 %v2251, %v2601
    %v2892 = vmax.f32 %v2252, %v2603
    %v2893 = vmax.f32 %v2253, %v2605
    %v2894 = vmax.f32 %v2254, %v2607
    %v2895 = vmax.f32 %v2255, %v2609
    %v2896 = vmax.f32 %v2256, %v2611
    %v2897 = vmax.f32 %v2257, %v2613
    %v2898 = vmax.f32 %v2258, %v2615
    %v2899 = vmax.f32 %v2259, %v2617
    %v2900 = vmax.f32 %v2260, %v2619
    %v2901 = vmax.f32 %v2261, %v2621
    %v2902 = vmax.f32 %v2262, %v2623
    %v2903 = vmax.f32 %v2263, %v2625
    %v2904 = vmax.f32 %v2264, %v2627
    %v2905 = vmax.f32 %v2265, %v2629
    %v2906 = vmax.f32 %v2266, %v2631
    %v2907 = vmax.f32 %v2267, %v2633
    %v2908 = vmax.f32 %v2268, %v2635
    %v2909 = vmax.f32 %v2269, %v2637
    %v2910 = vmax.f32 %v2270, %v2639
    %v2911 = vmax.f32 %v2271, %v2641
    %v2912 = vmax.f32 %v2272, %v2643
    %v2913 = vmax.f32 %v2273, %v2645
    %v2914 = vmax.f32 %v2274, %v2647
    %v2915 = vmax.f32 %v2275, %v2649
    %v2916 = vmax.f32 %v2276, %v2651
    %v2917 = vmax.f32 %v2277, %v2653
    %v2918 = vmax.f32 %v2278, %v2655
    %v2919 = vmax.f32 %v2279, %v2657
    %v2920 = vmax.f32 %v2280, %v2659
    %v2921 = vmax.f32 %v2281, %v2661
    %v2922 = vmax.f32 %v2282, %v2663
    %v2923 = vmax.f32 %v2283, %v2665
    %v2924 = vmax.f32 %v2284, %v2667
    %v2925 = vmax.f32 %v2285, %v2669
    %v3054 = vlaneseq
    %v3055 = vshrl.u32 %v3054, 7
    %v3056 = vsub.s32 0, %v3055
    %v3057 = vrot.slane %v2798, %v3056
    %v3058 = vlaneseq
    %v3059 = vshrl.u32 %v3058, 7
    %v3060 = vsub.s32 0, %v3059
    %v3061 = vrot.slane %v2799, %v3060
    %v3062 = vlaneseq
    %v3063 = vshrl.u32 %v3062, 7
    %v3064 = vsub.s32 0, %v3063
    %v3065 = vrot.slane %v2800, %v3064
    %v3066 = vlaneseq
    %v3067 = vshrl.u32 %v3066, 7
    %v3068 = vsub.s32 0, %v3067
    %v3069 = vrot.slane %v2801, %v3068
    %v3070 = vlaneseq
    %v3071 = vshrl.u32 %v3070, 7
    %v3072 = vsub.s32 0, %v3071
    %v3073 = vrot.slane %v2802, %v3072
    %v3074 = vlaneseq
    %v3075 = vshrl.u32 %v3074, 7
    %v3076 = vsub.s32 0, %v3075
    %v3077 = vrot.slane %v2803, %v3076
    %v3078 = vlaneseq
    %v3079 = vshrl.u32 %v3078, 7
    %v3080 = vsub.s32 0, %v3079
    %v3081 = vrot.slane %v2804, %v3080
    %v3082 = vlaneseq
    %v3083 = vshrl.u32 %v3082, 7
    %v3084 = vsub.s32 0, %v3083
    %v3085 = vrot.slane %v2805, %v3084
    %v3086 = vlaneseq
    %v3087 = vshrl.u32 %v3086, 7
    %v3088 = vsub.s32 0, %v3087
    %v3089 = vrot.slane %v2806, %v3088
    %v3090 = vlaneseq
    %v3091 = vshrl.u32 %v3090, 7
    %v3092 = vsub.s32 0, %v3091
    %v3093 = vrot.slane %v2807, %v3092
    %v3094 = vlaneseq
    %v3095 = vshrl.u32 %v3094, 7
    %v3096 = vsub.s32 0, %v3095
    %v3097 = vrot.slane %v2808, %v3096
    %v3098 = vlaneseq
    %v3099 = vshrl.u32 %v3098, 7
    %v3100 = vsub.s32 0, %v3099
    %v3101 = vrot.slane %v2809, %v3100
    %v3102 = vlaneseq
    %v3103 = vshrl.u32 %v3102, 7
    %v3104 = vsub.s32 0, %v3103
    %v3105 = vrot.slane %v2810, %v3104
    %v3106 = vlaneseq
    %v3107 = vshrl.u32 %v3106, 7
    %v3108 = vsub.s32 0, %v3107
    %v3109 = vrot.slane %v2811, %v3108
    %v3110 = vlaneseq
    %v3111 = vshrl.u32 %v3110, 7
    %v3112 = vsub.s32 0, %v3111
    %v3113 = vrot.slane %v2812, %v3112
    %v3114 = vlaneseq
    %v3115 = vshrl.u32 %v3114, 7
    %v3116 = vsub.s32 0, %v3115
    %v3117 = vrot.slane %v2813, %v3116
    %v3118 = vlaneseq
    %v3119 = vshrl.u32 %v3118, 7
    %v3120 = vsub.s32 0, %v3119
    %v3121 = vrot.slane %v2814, %v3120
    %v3122 = vlaneseq
    %v3123 = vshrl.u32 %v3122, 7
    %v3124 = vsub.s32 0, %v3123
    %v3125 = vrot.slane %v2815, %v3124
    %v3126 = vlaneseq
    %v3127 = vshrl.u32 %v3126, 7
    %v3128 = vsub.s32 0, %v3127
    %v3129 = vrot.slane %v2816, %v3128
    %v3130 = vlaneseq
    %v3131 = vshrl.u32 %v3130, 7
    %v3132 = vsub.s32 0, %v3131
    %v3133 = vrot.slane %v2817, %v3132
    %v3134 = vlaneseq
    %v3135 = vshrl.u32 %v3134, 7
    %v3136 = vsub.s32 0, %v3135
    %v3137 = vrot.slane %v2818, %v3136
    %v3138 = vlaneseq
    %v3139 = vshrl.u32 %v3138, 7
    %v3140 = vsub.s32 0, %v3139
    %v3141 = vrot.slane %v2819, %v3140
    %v3142 = vlaneseq
    %v3143 = vshrl.u32 %v3142, 7
    %v3144 = vsub.s32 0, %v3143
    %v3145 = vrot.slane %v2820, %v3144
    %v3146 = vlaneseq
    %v3147 = vshrl.u32 %v3146, 7
    %v3148 = vsub.s32 0, %v3147
    %v3149 = vrot.slane %v2821, %v3148
    %v3150 = vlaneseq
    %v3151 = vshrl.u32 %v3150, 7
    %v3152 = vsub.s32 0, %v3151
    %v3153 = vrot.slane %v2822, %v3152
    %v3154 = vlaneseq
    %v3155 = vshrl.u32 %v3154, 7
    %v3156 = vsub.s32 0, %v3155
    %v3157 = vrot.slane %v2823, %v3156
    %v3158 = vlaneseq
    %v3159 = vshrl.u32 %v3158, 7
    %v3160 = vsub.s32 0, %v3159
    %v3161 = vrot.slane %v2824, %v3160
    %v3162 = vlaneseq
    %v3163 = vshrl.u32 %v3162, 7
    %v3164 = vsub.s32 0, %v3163
    %v3165 = vrot.slane %v2825, %v3164
    %v3166 = vlaneseq
    %v3167 = vshrl.u32 %v3166, 7
    %v3168 = vsub.s32 0, %v3167
    %v3169 = vrot.slane %v2826, %v3168
    %v3170 = vlaneseq
    %v3171 = vshrl.u32 %v3170, 7
    %v3172 = vsub.s32 0, %v3171
    %v3173 = vrot.slane %v2827, %v3172
    %v3174 = vlaneseq
    %v3175 = vshrl.u32 %v3174, 7
    %v3176 = vsub.s32 0, %v3175
    %v3177 = vrot.slane %v2828, %v3176
    %v3178 = vlaneseq
    %v3179 = vshrl.u32 %v3178, 7
    %v3180 = vsub.s32 0, %v3179
    %v3181 = vrot.slane %v2829, %v3180
    %v3182 = vlaneseq
    %v3183 = vshrl.u32 %v3182, 7
    %v3184 = vsub.s32 0, %v3183
    %v3185 = vrot.slane %v2830, %v3184
    %v3186 = vlaneseq
    %v3187 = vshrl.u32 %v3186, 7
    %v3188 = vsub.s32 0, %v3187
    %v3189 = vrot.slane %v2831, %v3188
    %v3190 = vlaneseq
    %v3191 = vshrl.u32 %v3190, 7
    %v3192 = vsub.s32 0, %v3191
    %v3193 = vrot.slane %v2832, %v3192
    %v3194 = vlaneseq
    %v3195 = vshrl.u32 %v3194, 7
    %v3196 = vsub.s32 0, %v3195
    %v3197 = vrot.slane %v2833, %v3196
    %v3198 = vlaneseq
    %v3199 = vshrl.u32 %v3198, 7
    %v3200 = vsub.s32 0, %v3199
    %v3201 = vrot.slane %v2834, %v3200
    %v3202 = vlaneseq
    %v3203 = vshrl.u32 %v3202, 7
    %v3204 = vsub.s32 0, %v3203
    %v3205 = vrot.slane %v2835, %v3204
    %v3206 = vlaneseq
    %v3207 = vshrl.u32 %v3206, 7
    %v3208 = vsub.s32 0, %v3207
    %v3209 = vrot.slane %v2836, %v3208
    %v3210 = vlaneseq
    %v3211 = vshrl.u32 %v3210, 7
    %v3212 = vsub.s32 0, %v3211
    %v3213 = vrot.slane %v2837, %v3212
    %v3214 = vlaneseq
    %v3215 = vshrl.u32 %v3214, 7
    %v3216 = vsub.s32 0, %v3215
    %v3217 = vrot.slane %v2838, %v3216
    %v3218 = vlaneseq
    %v3219 = vshrl.u32 %v3218, 7
    %v3220 = vsub.s32 0, %v3219
    %v3221 = vrot.slane %v2839, %v3220
    %v3222 = vlaneseq
    %v3223 = vshrl.u32 %v3222, 7
    %v3224 = vsub.s32 0, %v3223
    %v3225 = vrot.slane %v2840, %v3224
    %v3226 = vlaneseq
    %v3227 = vshrl.u32 %v3226, 7
    %v3228 = vsub.s32 0, %v3227
    %v3229 = vrot.slane %v2841, %v3228
    %v3230 = vlaneseq
    %v3231 = vshrl.u32 %v3230, 7
    %v3232 = vsub.s32 0, %v3231
    %v3233 = vrot.slane %v2842, %v3232
    %v3234 = vlaneseq
    %v3235 = vshrl.u32 %v3234, 7
    %v3236 = vsub.s32 0, %v3235
    %v3237 = vrot.slane %v2843, %v3236
    %v3238 = vlaneseq
    %v3239 = vshrl.u32 %v3238, 7
    %v3240 = vsub.s32 0, %v3239
    %v3241 = vrot.slane %v2844, %v3240
    %v3242 = vlaneseq
    %v3243 = vshrl.u32 %v3242, 7
    %v3244 = vsub.s32 0, %v3243
    %v3245 = vrot.slane %v2845, %v3244
    %v3246 = vlaneseq
    %v3247 = vshrl.u32 %v3246, 7
    %v3248 = vsub.s32 0, %v3247
    %v3249 = vrot.slane %v2846, %v3248
    %v3250 = vlaneseq
    %v3251 = vshrl.u32 %v3250, 7
    %v3252 = vsub.s32 0, %v3251
    %v3253 = vrot.slane %v2847, %v3252
    %v3254 = vlaneseq
    %v3255 = vshrl.u32 %v3254, 7
    %v3256 = vsub.s32 0, %v3255
    %v3257 = vrot.slane %v2848, %v3256
    %v3258 = vlaneseq
    %v3259 = vshrl.u32 %v3258, 7
    %v3260 = vsub.s32 0, %v3259
    %v3261 = vrot.slane %v2849, %v3260
    %v3262 = vlaneseq
    %v3263 = vshrl.u32 %v3262, 7
    %v3264 = vsub.s32 0, %v3263
    %v3265 = vrot.slane %v2850, %v3264
    %v3266 = vlaneseq
    %v3267 = vshrl.u32 %v3266, 7
    %v3268 = vsub.s32 0, %v3267
    %v3269 = vrot.slane %v2851, %v3268
    %v3270 = vlaneseq
    %v3271 = vshrl.u32 %v3270, 7
    %v3272 = vsub.s32 0, %v3271
    %v3273 = vrot.slane %v2852, %v3272
    %v3274 = vlaneseq
    %v3275 = vshrl.u32 %v3274, 7
    %v3276 = vsub.s32 0, %v3275
    %v3277 = vrot.slane %v2853, %v3276
    %v3278 = vlaneseq
    %v3279 = vshrl.u32 %v3278, 7
    %v3280 = vsub.s32 0, %v3279
    %v3281 = vrot.slane %v2854, %v3280
    %v3282 = vlaneseq
    %v3283 = vshrl.u32 %v3282, 7
    %v3284 = vsub.s32 0, %v3283
    %v3285 = vrot.slane %v2855, %v3284
    %v3286 = vlaneseq
    %v3287 = vshrl.u32 %v3286, 7
    %v3288 = vsub.s32 0, %v3287
    %v3289 = vrot.slane %v2856, %v3288
    %v3290 = vlaneseq
    %v3291 = vshrl.u32 %v3290, 7
    %v3292 = vsub.s32 0, %v3291
    %v3293 = vrot.slane %v2857, %v3292
    %v3294 = vlaneseq
    %v3295 = vshrl.u32 %v3294, 7
    %v3296 = vsub.s32 0, %v3295
    %v3297 = vrot.slane %v2858, %v3296
    %v3298 = vlaneseq
    %v3299 = vshrl.u32 %v3298, 7
    %v3300 = vsub.s32 0, %v3299
    %v3301 = vrot.slane %v2859, %v3300
    %v3302 = vlaneseq
    %v3303 = vshrl.u32 %v3302, 7
    %v3304 = vsub.s32 0, %v3303
    %v3305 = vrot.slane %v2860, %v3304
    %v3306 = vlaneseq
    %v3307 = vshrl.u32 %v3306, 7
    %v3308 = vsub.s32 0, %v3307
    %v3309 = vrot.slane %v2861, %v3308
    %v3310 = vlaneseq
    %v3311 = vshrl.u32 %v3310, 7
    %v3312 = vsub.s32 0, %v3311
    %v3313 = vrot.slane %v2862, %v3312
    %v3314 = vlaneseq
    %v3315 = vshrl.u32 %v3314, 7
    %v3316 = vsub.s32 0, %v3315
    %v3317 = vrot.slane %v2863, %v3316
    %v3318 = vlaneseq
    %v3319 = vshrl.u32 %v3318, 7
    %v3320 = vsub.s32 0, %v3319
    %v3321 = vrot.slane %v2864, %v3320
    %v3322 = vlaneseq
    %v3323 = vshrl.u32 %v3322, 7
    %v3324 = vsub.s32 0, %v3323
    %v3325 = vrot.slane %v2865, %v3324
    %v3326 = vlaneseq
    %v3327 = vshrl.u32 %v3326, 7
    %v3328 = vsub.s32 0, %v3327
    %v3329 = vrot.slane %v2866, %v3328
    %v3330 = vlaneseq
    %v3331 = vshrl.u32 %v3330, 7
    %v3332 = vsub.s32 0, %v3331
    %v3333 = vrot.slane %v2867, %v3332
    %v3334 = vlaneseq
    %v3335 = vshrl.u32 %v3334, 7
    %v3336 = vsub.s32 0, %v3335
    %v3337 = vrot.slane %v2868, %v3336
    %v3338 = vlaneseq
    %v3339 = vshrl.u32 %v3338, 7
    %v3340 = vsub.s32 0, %v3339
    %v3341 = vrot.slane %v2869, %v3340
    %v3342 = vlaneseq
    %v3343 = vshrl.u32 %v3342, 7
    %v3344 = vsub.s32 0, %v3343
    %v3345 = vrot.slane %v2870, %v3344
    %v3346 = vlaneseq
    %v3347 = vshrl.u32 %v3346, 7
    %v3348 = vsub.s32 0, %v3347
    %v3349 = vrot.slane %v2871, %v3348
    %v3350 = vlaneseq
    %v3351 = vshrl.u32 %v3350, 7
    %v3352 = vsub.s32 0, %v3351
    %v3353 = vrot.slane %v2872, %v3352
    %v3354 = vlaneseq
    %v3355 = vshrl.u32 %v3354, 7
    %v3356 = vsub.s32 0, %v3355
    %v3357 = vrot.slane %v2873, %v3356
    %v3358 = vlaneseq
    %v3359 = vshrl.u32 %v3358, 7
    %v3360 = vsub.s32 0, %v3359
    %v3361 = vrot.slane %v2874, %v3360
    %v3362 = vlaneseq
    %v3363 = vshrl.u32 %v3362, 7
    %v3364 = vsub.s32 0, %v3363
    %v3365 = vrot.slane %v2875, %v3364
    %v3366 = vlaneseq
    %v3367 = vshrl.u32 %v3366, 7
    %v3368 = vsub.s32 0, %v3367
    %v3369 = vrot.slane %v2876, %v3368
    %v3370 = vlaneseq
    %v3371 = vshrl.u32 %v3370, 7
    %v3372 = vsub.s32 0, %v3371
    %v3373 = vrot.slane %v2877, %v3372
    %v3374 = vlaneseq
    %v3375 = vshrl.u32 %v3374, 7
    %v3376 = vsub.s32 0, %v3375
    %v3377 = vrot.slane %v2878, %v3376
    %v3378 = vlaneseq
    %v3379 = vshrl.u32 %v3378, 7
    %v3380 = vsub.s32 0, %v3379
    %v3381 = vrot.slane %v2879, %v3380
    %v3382 = vlaneseq
    %v3383 = vshrl.u32 %v3382, 7
    %v3384 = vsub.s32 0, %v3383
    %v3385 = vrot.slane %v2880, %v3384
    %v3386 = vlaneseq
    %v3387 = vshrl.u32 %v3386, 7
    %v3388 = vsub.s32 0, %v3387
    %v3389 = vrot.slane %v2881, %v3388
    %v3390 = vlaneseq
    %v3391 = vshrl.u32 %v3390, 7
    %v3392 = vsub.s32 0, %v3391
    %v3393 = vrot.slane %v2882, %v3392
    %v3394 = vlaneseq
    %v3395 = vshrl.u32 %v3394, 7
    %v3396 = vsub.s32 0, %v3395
    %v3397 = vrot.slane %v2883, %v3396
    %v3398 = vlaneseq
    %v3399 = vshrl.u32 %v3398, 7
    %v3400 = vsub.s32 0, %v3399
    %v3401 = vrot.slane %v2884, %v3400
    %v3402 = vlaneseq
    %v3403 = vshrl.u32 %v3402, 7
    %v3404 = vsub.s32 0, %v3403
    %v3405 = vrot.slane %v2885, %v3404
    %v3406 = vlaneseq
    %v3407 = vshrl.u32 %v3406, 7
    %v3408 = vsub.s32 0, %v3407
    %v3409 = vrot.slane %v2886, %v3408
    %v3410 = vlaneseq
    %v3411 = vshrl.u32 %v3410, 7
    %v3412 = vsub.s32 0, %v3411
    %v3413 = vrot.slane %v2887, %v3412
    %v3414 = vlaneseq
    %v3415 = vshrl.u32 %v3414, 7
    %v3416 = vsub.s32 0, %v3415
    %v3417 = vrot.slane %v2888, %v3416
    %v3418 = vlaneseq
    %v3419 = vshrl.u32 %v3418, 7
    %v3420 = vsub.s32 0, %v3419
    %v3421 = vrot.slane %v2889, %v3420
    %v3422 = vlaneseq
    %v3423 = vshrl.u32 %v3422, 7
    %v3424 = vsub.s32 0, %v3423
    %v3425 = vrot.slane %v2890, %v3424
    %v3426 = vlaneseq
    %v3427 = vshrl.u32 %v3426, 7
    %v3428 = vsub.s32 0, %v3427
    %v3429 = vrot.slane %v2891, %v3428
    %v3430 = vlaneseq
    %v3431 = vshrl.u32 %v3430, 7
    %v3432 = vsub.s32 0, %v3431
    %v3433 = vrot.slane %v2892, %v3432
    %v3434 = vlaneseq
    %v3435 = vshrl.u32 %v3434, 7
    %v3436 = vsub.s32 0, %v3435
    %v3437 = vrot.slane %v2893, %v3436
    %v3438 = vlaneseq
    %v3439 = vshrl.u32 %v3438, 7
    %v3440 = vsub.s32 0, %v3439
    %v3441 = vrot.slane %v2894, %v3440
    %v3442 = vlaneseq
    %v3443 = vshrl.u32 %v3442, 7
    %v3444 = vsub.s32 0, %v3443
    %v3445 = vrot.slane %v2895, %v3444
    %v3446 = vlaneseq
    %v3447 = vshrl.u32 %v3446, 7
    %v3448 = vsub.s32 0, %v3447
    %v3449 = vrot.slane %v2896, %v3448
    %v3450 = vlaneseq
    %v3451 = vshrl.u32 %v3450, 7
    %v3452 = vsub.s32 0, %v3451
    %v3453 = vrot.slane %v2897, %v3452
    %v3454 = vlaneseq
    %v3455 = vshrl.u32 %v3454, 7
    %v3456 = vsub.s32 0, %v3455
    %v3457 = vrot.slane %v2898, %v3456
    %v3458 = vlaneseq
    %v3459 = vshrl.u32 %v3458, 7
    %v3460 = vsub.s32 0, %v3459
    %v3461 = vrot.slane %v2899, %v3460
    %v3462 = vlaneseq
    %v3463 = vshrl.u32 %v3462, 7
    %v3464 = vsub.s32 0, %v3463
    %v3465 = vrot.slane %v2900, %v3464
    %v3466 = vlaneseq
    %v3467 = vshrl.u32 %v3466, 7
    %v3468 = vsub.s32 0, %v3467
    %v3469 = vrot.slane %v2901, %v3468
    %v3470 = vlaneseq
    %v3471 = vshrl.u32 %v3470, 7
    %v3472 = vsub.s32 0, %v3471
    %v3473 = vrot.slane %v2902, %v3472
    %v3474 = vlaneseq
    %v3475 = vshrl.u32 %v3474, 7
    %v3476 = vsub.s32 0, %v3475
    %v3477 = vrot.slane %v2903, %v3476
    %v3478 = vlaneseq
    %v3479 = vshrl.u32 %v3478, 7
    %v3480 = vsub.s32 0, %v3479
    %v3481 = vrot.slane %v2904, %v3480
    %v3482 = vlaneseq
    %v3483 = vshrl.u32 %v3482, 7
    %v3484 = vsub.s32 0, %v3483
    %v3485 = vrot.slane %v2905, %v3484
    %v3486 = vlaneseq
    %v3487 = vshrl.u32 %v3486, 7
    %v3488 = vsub.s32 0, %v3487
    %v3489 = vrot.slane %v2906, %v3488
    %v3490 = vlaneseq
    %v3491 = vshrl.u32 %v3490, 7
    %v3492 = vsub.s32 0, %v3491
    %v3493 = vrot.slane %v2907, %v3492
    %v3494 = vlaneseq
    %v3495 = vshrl.u32 %v3494, 7
    %v3496 = vsub.s32 0, %v3495
    %v3497 = vrot.slane %v2908, %v3496
    %v3498 = vlaneseq
    %v3499 = vshrl.u32 %v3498, 7
    %v3500 = vsub.s32 0, %v3499
    %v3501 = vrot.slane %v2909, %v3500
    %v3502 = vlaneseq
    %v3503 = vshrl.u32 %v3502, 7
    %v3504 = vsub.s32 0, %v3503
    %v3505 = vrot.slane %v2910, %v3504
    %v3506 = vlaneseq
    %v3507 = vshrl.u32 %v3506, 7
    %v3508 = vsub.s32 0, %v3507
    %v3509 = vrot.slane %v2911, %v3508
    %v3510 = vlaneseq
    %v3511 = vshrl.u32 %v3510, 7
    %v3512 = vsub.s32 0, %v3511
    %v3513 = vrot.slane %v2912, %v3512
    %v3514 = vlaneseq
    %v3515 = vshrl.u32 %v3514, 7
    %v3516 = vsub.s32 0, %v3515
    %v3517 = vrot.slane %v2913, %v3516
    %v3518 = vlaneseq
    %v3519 = vshrl.u32 %v3518, 7
    %v3520 = vsub.s32 0, %v3519
    %v3521 = vrot.slane %v2914, %v3520
    %v3522 = vlaneseq
    %v3523 = vshrl.u32 %v3522, 7
    %v3524 = vsub.s32 0, %v3523
    %v3525 = vrot.slane %v2915, %v3524
    %v3526 = vlaneseq
    %v3527 = vshrl.u32 %v3526, 7
    %v3528 = vsub.s32 0, %v3527
    %v3529 = vrot.slane %v2916, %v3528
    %v3530 = vlaneseq
    %v3531 = vshrl.u32 %v3530, 7
    %v3532 = vsub.s32 0, %v3531
    %v3533 = vrot.slane %v2917, %v3532
    %v3534 = vlaneseq
    %v3535 = vshrl.u32 %v3534, 7
    %v3536 = vsub.s32 0, %v3535
    %v3537 = vrot.slane %v2918, %v3536
    %v3538 = vlaneseq
    %v3539 = vshrl.u32 %v3538, 7
    %v3540 = vsub.s32 0, %v3539
    %v3541 = vrot.slane %v2919, %v3540
    %v3542 = vlaneseq
    %v3543 = vshrl.u32 %v3542, 7
    %v3544 = vsub.s32 0, %v3543
    %v3545 = vrot.slane %v2920, %v3544
    %v3546 = vlaneseq
    %v3547 = vshrl.u32 %v3546, 7
    %v3548 = vsub.s32 0, %v3547
    %v3549 = vrot.slane %v2921, %v3548
    %v3550 = vlaneseq
    %v3551 = vshrl.u32 %v3550, 7
    %v3552 = vsub.s32 0, %v3551
    %v3553 = vrot.slane %v2922, %v3552
    %v3554 = vlaneseq
    %v3555 = vshrl.u32 %v3554, 7
    %v3556 = vsub.s32 0, %v3555
    %v3557 = vrot.slane %v2923, %v3556
    %v3558 = vlaneseq
    %v3559 = vshrl.u32 %v3558, 7
    %v3560 = vsub.s32 0, %v3559
    %v3561 = vrot.slane %v2924, %v3560
    %v3562 = vlaneseq
    %v3563 = vshrl.u32 %v3562, 7
    %v3564 = vsub.s32 0, %v3563
    %v3565 = vrot.slane %v2925, %v3564
    %vm3566 = vcmask 1041409
    %v3567 = vsel %vm3566, %v3061, %v3057
    %vm3568 = vcmask 1042434
    %v3569 = vsel %vm3568, %v3065, %v3567
    %vm3570 = vcmask 1043459
    %v3571 = vsel %vm3570, %v3069, %v3569
    %vm3572 = vcmask 1044484
    %v3573 = vsel %vm3572, %v3073, %v3571
    %vm3574 = vcmask 1045509
    %v3575 = vsel %vm3574, %v3077, %v3573
    %vm3576 = vcmask 1046534
    %v3577 = vsel %vm3576, %v3081, %v3575
    %vm3578 = vcmask 1047559
    %v3579 = vsel %vm3578, %v3085, %v3577
    %v3580 = vsel %vm3566, %v3093, %v3089
    %v3581 = vsel %vm3568, %v3097, %v3580
    %v3582 = vsel %vm3570, %v3101, %v3581
    %v3583 = vsel %vm3572, %v3105, %v3582
    %v3584 = vsel %vm3574, %v3109, %v3583
    %v3585 = vsel %vm3576, %v3113, %v3584
    %v3586 = vsel %vm3578, %v3117, %v3585
    %v3587 = vsel %vm3566, %v3125, %v3121
    %v3588 = vsel %vm3568, %v3129, %v3587
    %v3589 = vsel %vm3570, %v3133, %v3588
    %v3590 = vsel %vm3572, %v3137, %v3589
    %v3591 = vsel %vm3574, %v3141, %v3590
    %v3592 = vsel %vm3576, %v3145, %v3591
    %v3593 = vsel %vm3578, %v3149, %v3592
    %v3594 = vsel %vm3566, %v3157, %v3153
    %v3595 = vsel %vm3568, %v3161, %v3594
    %v3596 = vsel %vm3570, %v3165, %v3595
    %v3597 = vsel %vm3572, %v3169, %v3596
    %v3598 = vsel %vm3574, %v3173, %v3597
    %v3599 = vsel %vm3576, %v3177, %v3598
    %v3600 = vsel %vm3578, %v3181, %v3599
    %v3601 = vsel %vm3566, %v3189, %v3185
    %v3602 = vsel %vm3568, %v3193, %v3601
    %v3603 = vsel %vm3570, %v3197, %v3602
    %v3604 = vsel %vm3572, %v3201, %v3603
    %v3605 = vsel %vm3574, %v3205, %v3604
    %v3606 = vsel %vm3576, %v3209, %v3605
    %v3607 = vsel %vm3578, %v3213, %v3606
    %v3608 = vsel %vm3566, %v3221, %v3217
    %v3609 = vsel %vm3568, %v3225, %v3608
    %v3610 = vsel %vm3570, %v3229, %v3609
    %v3611 = vsel %vm3572, %v3233, %v3610
    %v3612 = vsel %vm3574, %v3237, %v3611
    %v3613 = vsel %vm3576, %v3241, %v3612
    %v3614 = vsel %vm3578, %v3245, %v3613
    %v3615 = vsel %vm3566, %v3253, %v3249
    %v3616 = vsel %vm3568, %v3257, %v3615
    %v3617 = vsel %vm3570, %v3261, %v3616
    %v3618 = vsel %vm3572, %v3265, %v3617
    %v3619 = vsel %vm3574, %v3269, %v3618
    %v3620 = vsel %vm3576, %v3273, %v3619
    %v3621 = vsel %vm3578, %v3277, %v3620
    %v3622 = vsel %vm3566, %v3285, %v3281
    %v3623 = vsel %vm3568, %v3289, %v3622
    %v3624 = vsel %vm3570, %v3293, %v3623
    %v3625 = vsel %vm3572, %v3297, %v3624
    %v3626 = vsel %vm3574, %v3301, %v3625
    %v3627 = vsel %vm3576, %v3305, %v3626
    %v3628 = vsel %vm3578, %v3309, %v3627
    %v3629 = vsel %vm3566, %v3317, %v3313
    %v3630 = vsel %vm3568, %v3321, %v3629
    %v3631 = vsel %vm3570, %v3325, %v3630
    %v3632 = vsel %vm3572, %v3329, %v3631
    %v3633 = vsel %vm3574, %v3333, %v3632
    %v3634 = vsel %vm3576, %v3337, %v3633
    %v3635 = vsel %vm3578, %v3341, %v3634
    %v3636 = vsel %vm3566, %v3349, %v3345
    %v3637 = vsel %vm3568, %v3353, %v3636
    %v3638 = vsel %vm3570, %v3357, %v3637
    %v3639 = vsel %vm3572, %v3361, %v3638
    %v3640 = vsel %vm3574, %v3365, %v3639
    %v3641 = vsel %vm3576, %v3369, %v3640
    %v3642 = vsel %vm3578, %v3373, %v3641
    %v3643 = vsel %vm3566, %v3381, %v3377
    %v3644 = vsel %vm3568, %v3385, %v3643
    %v3645 = vsel %vm3570, %v3389, %v3644
    %v3646 = vsel %vm3572, %v3393, %v3645
    %v3647 = vsel %vm3574, %v3397, %v3646
    %v3648 = vsel %vm3576, %v3401, %v3647
    %v3649 = vsel %vm3578, %v3405, %v3648
    %v3650 = vsel %vm3566, %v3413, %v3409
    %v3651 = vsel %vm3568, %v3417, %v3650
    %v3652 = vsel %vm3570, %v3421, %v3651
    %v3653 = vsel %vm3572, %v3425, %v3652
    %v3654 = vsel %vm3574, %v3429, %v3653
    %v3655 = vsel %vm3576, %v3433, %v3654
    %v3656 = vsel %vm3578, %v3437, %v3655
    %v3657 = vsel %vm3566, %v3445, %v3441
    %v3658 = vsel %vm3568, %v3449, %v3657
    %v3659 = vsel %vm3570, %v3453, %v3658
    %v3660 = vsel %vm3572, %v3457, %v3659
    %v3661 = vsel %vm3574, %v3461, %v3660
    %v3662 = vsel %vm3576, %v3465, %v3661
    %v3663 = vsel %vm3578, %v3469, %v3662
    %v3664 = vsel %vm3566, %v3477, %v3473
    %v3665 = vsel %vm3568, %v3481, %v3664
    %v3666 = vsel %vm3570, %v3485, %v3665
    %v3667 = vsel %vm3572, %v3489, %v3666
    %v3668 = vsel %vm3574, %v3493, %v3667
    %v3669 = vsel %vm3576, %v3497, %v3668
    %v3670 = vsel %vm3578, %v3501, %v3669
    %v3671 = vsel %vm3566, %v3509, %v3505
    %v3672 = vsel %vm3568, %v3513, %v3671
    %v3673 = vsel %vm3570, %v3517, %v3672
    %v3674 = vsel %vm3572, %v3521, %v3673
    %v3675 = vsel %vm3574, %v3525, %v3674
    %v3676 = vsel %vm3576, %v3529, %v3675
    %v3677 = vsel %vm3578, %v3533, %v3676
    %v3678 = vsel %vm3566, %v3541, %v3537
    %v3679 = vsel %vm3568, %v3545, %v3678
    %v3680 = vsel %vm3570, %v3549, %v3679
    %v3681 = vsel %vm3572, %v3553, %v3680
    %v3682 = vsel %vm3574, %v3557, %v3681
    %v3683 = vsel %vm3576, %v3561, %v3682
    %v3684 = vsel %vm3578, %v3565, %v3683
    %v3686 = vrot.slane 0.0, 7
    %v3687 = vrot.slane %v3579, 7
    %v3688 = vrot.slane %v3586, 7
    %v3689 = vrot.slane %v3593, 7
    %v3690 = vrot.slane %v3600, 7
    %v3691 = vrot.slane %v3607, 7
    %v3692 = vrot.slane %v3614, 7
    %v3693 = vrot.slane %v3621, 7
    %v3694 = vrot.slane %v3628, 7
    %v3695 = vrot.slane %v3635, 7
    %v3696 = vrot.slane %v3642, 7
    %v3697 = vrot.slane %v3649, 7
    %v3698 = vrot.slane %v3656, 7
    %v3699 = vrot.slane %v3663, 7
    %v3700 = vrot.slane %v3670, 7
    %v3701 = vrot.slane %v3677, 7
    %v3702 = vrot.slane %v3684, 7
    %vm3720 = vcmask 1040384
    %v3721 = vsel %vm3720, 0.0, %v3686
    %v3722 = vsel %vm3720, 0.0, %v3687
    %v3723 = vsel %vm3720, 0.0, %v3688
    %v3724 = vsel %vm3720, 0.0, %v3689
    %v3725 = vsel %vm3720, 0.0, %v3690
    %v3726 = vsel %vm3720, 0.0, %v3691
    %v3727 = vsel %vm3720, 0.0, %v3692
    %v3728 = vsel %vm3720, 0.0, %v3693
    %v3729 = vsel %vm3720, 0.0, %v3694
    %v3730 = vsel %vm3720, 0.0, %v3695
    %v3731 = vsel %vm3720, 0.0, %v3696
    %v3732 = vsel %vm3720, 0.0, %v3697
    %v3733 = vsel %vm3720, 0.0, %v3698
    %v3734 = vsel %vm3720, 0.0, %v3699
    %v3735 = vsel %vm3720, 0.0, %v3700
    %v3736 = vsel %vm3720, 0.0, %v3701
    %v3737 = vsel %vm3720, 0.0, %v3702
    %v3738 = vsel %vm3720, %v3686, 0.0
    %v3739 = vsel %vm3720, %v3687, 0.0
    %v3740 = vsel %vm3720, %v3688, 0.0
    %v3741 = vsel %vm3720, %v3689, 0.0
    %v3742 = vsel %vm3720, %v3690, 0.0
    %v3743 = vsel %vm3720, %v3691, 0.0
    %v3744 = vsel %vm3720, %v3692, 0.0
    %v3745 = vsel %vm3720, %v3693, 0.0
    %v3746 = vsel %vm3720, %v3694, 0.0
    %v3747 = vsel %vm3720, %v3695, 0.0
    %v3748 = vsel %vm3720, %v3696, 0.0
    %v3749 = vsel %vm3720, %v3697, 0.0
    %v3750 = vsel %vm3720, %v3698, 0.0
    %v3751 = vsel %vm3720, %v3699, 0.0
    %v3752 = vsel %vm3720, %v3700, 0.0
    %v3753 = vsel %vm3720, %v3701, 0.0
    %v3754 = vsel %vm3720, %v3702, 0.0
    %vm3785 = vcmask 1046528
    %v3786 = vrot.slane %v3721, 1
    %v3787 = vrot.slane %v3738, 1
    %v3788 = vsel %vm3785, %v3786, %v3787
    %v3789 = vrot.slane %v3722, 1
    %v3790 = vrot.slane %v3739, 1
    %v3791 = vsel %vm3785, %v3789, %v3790
    %v3792 = vrot.slane %v3723, 1
    %v3793 = vrot.slane %v3740, 1
    %v3794 = vsel %vm3785, %v3792, %v3793
    %v3795 = vrot.slane %v3724, 1
    %v3796 = vrot.slane %v3741, 1
    %v3797 = vsel %vm3785, %v3795, %v3796
    %v3798 = vrot.slane %v3725, 1
    %v3799 = vrot.slane %v3742, 1
    %v3800 = vsel %vm3785, %v3798, %v3799
    %v3801 = vrot.slane %v3726, 1
    %v3802 = vrot.slane %v3743, 1
    %v3803 = vsel %vm3785, %v3801, %v3802
    %v3804 = vrot.slane %v3727, 1
    %v3805 = vrot.slane %v3744, 1
    %v3806 = vsel %vm3785, %v3804, %v3805
    %v3807 = vrot.slane %v3728, 1
    %v3808 = vrot.slane %v3745, 1
    %v3809 = vsel %vm3785, %v3807, %v3808
    %v3810 = vrot.slane %v3730, 1
    %v3811 = vrot.slane %v3747, 1
    %v3812 = vsel %vm3785, %v3810, %v3811
    %v3813 = vrot.slane %v3731, 1
    %v3814 = vrot.slane %v3748, 1
    %v3815 = vsel %vm3785, %v3813, %v3814
    %v3816 = vrot.slane %v3732, 1
    %v3817 = vrot.slane %v3749, 1
    %v3818 = vsel %vm3785, %v3816, %v3817
    %v3819 = vrot.slane %v3733, 1
    %v3820 = vrot.slane %v3750, 1
    %v3821 = vsel %vm3785, %v3819, %v3820
    %v3822 = vrot.slane %v3734, 1
    %v3823 = vrot.slane %v3751, 1
    %v3824 = vsel %vm3785, %v3822, %v3823
    %v3825 = vrot.slane %v3735, 1
    %v3826 = vrot.slane %v3752, 1
    %v3827 = vsel %vm3785, %v3825, %v3826
    %v3828 = vrot.slane %v3736, 1
    %v3829 = vrot.slane %v3753, 1
    %v3830 = vsel %vm3785, %v3828, %v3829
    %3831 = vrot.lane.b32.xlu0 %v3788, 64
    %v3832 = vpop.permute.xlu0 %3831
    %3833 = vrot.lane.b32.xlu0 %v3791, 64
    %v3834 = vpop.permute.xlu0 %3833
    %3835 = vrot.lane.b32.xlu0 %v3794, 64
    %v3836 = vpop.permute.xlu0 %3835
    %3837 = vrot.lane.b32.xlu0 %v3797, 64
    %v3838 = vpop.permute.xlu0 %3837
    %3839 = vrot.lane.b32.xlu0 %v3800, 64
    %v3840 = vpop.permute.xlu0 %3839
    %3841 = vrot.lane.b32.xlu0 %v3803, 64
    %v3842 = vpop.permute.xlu0 %3841
    %3843 = vrot.lane.b32.xlu0 %v3806, 64
    %v3844 = vpop.permute.xlu0 %3843
    %3845 = vrot.lane.b32.xlu0 %v3809, 64
    %v3846 = vpop.permute.xlu0 %3845
    %3847 = vrot.lane.b32.xlu0 %v3812, 64
    %v3848 = vpop.permute.xlu0 %3847
    %3849 = vrot.lane.b32.xlu0 %v3815, 64
    %v3850 = vpop.permute.xlu0 %3849
    %3851 = vrot.lane.b32.xlu0 %v3818, 64
    %v3852 = vpop.permute.xlu0 %3851
    %3853 = vrot.lane.b32.xlu0 %v3821, 64
    %v3854 = vpop.permute.xlu0 %3853
    %3855 = vrot.lane.b32.xlu0 %v3824, 64
    %v3856 = vpop.permute.xlu0 %3855
    %3857 = vrot.lane.b32.xlu0 %v3827, 64
    %v3858 = vpop.permute.xlu0 %3857
    %3859 = vrot.lane.b32.xlu0 %v3830, 64
    %v3860 = vpop.permute.xlu0 %3859
    %vm3876 = vcmask 1045504
    %v3877 = vrot.slane %v3721, 2
    %v3878 = vrot.slane %v3738, 2
    %v3879 = vsel %vm3876, %v3877, %v3878
    %v3880 = vrot.slane %v3722, 2
    %v3881 = vrot.slane %v3739, 2
    %v3882 = vsel %vm3876, %v3880, %v3881
    %v3883 = vrot.slane %v3723, 2
    %v3884 = vrot.slane %v3740, 2
    %v3885 = vsel %vm3876, %v3883, %v3884
    %v3886 = vrot.slane %v3724, 2
    %v3887 = vrot.slane %v3741, 2
    %v3888 = vsel %vm3876, %v3886, %v3887
    %v3889 = vrot.slane %v3725, 2
    %v3890 = vrot.slane %v3742, 2
    %v3891 = vsel %vm3876, %v3889, %v3890
    %v3892 = vrot.slane %v3726, 2
    %v3893 = vrot.slane %v3743, 2
    %v3894 = vsel %vm3876, %v3892, %v3893
    %v3895 = vrot.slane %v3727, 2
    %v3896 = vrot.slane %v3744, 2
    %v3897 = vsel %vm3876, %v3895, %v3896
    %v3898 = vrot.slane %v3728, 2
    %v3899 = vrot.slane %v3745, 2
    %v3900 = vsel %vm3876, %v3898, %v3899
    %v3901 = vrot.slane %v3730, 2
    %v3902 = vrot.slane %v3747, 2
    %v3903 = vsel %vm3876, %v3901, %v3902
    %v3904 = vrot.slane %v3731, 2
    %v3905 = vrot.slane %v3748, 2
    %v3906 = vsel %vm3876, %v3904, %v3905
    %v3907 = vrot.slane %v3732, 2
    %v3908 = vrot.slane %v3749, 2
    %v3909 = vsel %vm3876, %v3907, %v3908
    %v3910 = vrot.slane %v3733, 2
    %v3911 = vrot.slane %v3750, 2
    %v3912 = vsel %vm3876, %v3910, %v3911
    %v3913 = vrot.slane %v3734, 2
    %v3914 = vrot.slane %v3751, 2
    %v3915 = vsel %vm3876, %v3913, %v3914
    %v3916 = vrot.slane %v3735, 2
    %v3917 = vrot.slane %v3752, 2
    %v3918 = vsel %vm3876, %v3916, %v3917
    %v3919 = vrot.slane %v3736, 2
    %v3920 = vrot.slane %v3753, 2
    %v3921 = vsel %vm3876, %v3919, %v3920
    %3939 = vrot.lane.b32.xlu0 %v3722, 64
    %v3940 = vpop.permute.xlu0 %3939
    %3941 = vrot.lane.b32.xlu0 %v3723, 64
    %v3942 = vpop.permute.xlu0 %3941
    %3943 = vrot.lane.b32.xlu0 %v3724, 64
    %v3944 = vpop.permute.xlu0 %3943
    %3945 = vrot.lane.b32.xlu0 %v3725, 64
    %v3946 = vpop.permute.xlu0 %3945
    %3947 = vrot.lane.b32.xlu0 %v3726, 64
    %v3948 = vpop.permute.xlu0 %3947
    %3949 = vrot.lane.b32.xlu0 %v3727, 64
    %v3950 = vpop.permute.xlu0 %3949
    %3951 = vrot.lane.b32.xlu0 %v3728, 64
    %v3952 = vpop.permute.xlu0 %3951
    %3953 = vrot.lane.b32.xlu0 %v3729, 64
    %v3954 = vpop.permute.xlu0 %3953
    %3955 = vrot.lane.b32.xlu0 %v3730, 64
    %v3956 = vpop.permute.xlu0 %3955
    %3957 = vrot.lane.b32.xlu0 %v3731, 64
    %v3958 = vpop.permute.xlu0 %3957
    %3959 = vrot.lane.b32.xlu0 %v3732, 64
    %v3960 = vpop.permute.xlu0 %3959
    %3961 = vrot.lane.b32.xlu0 %v3733, 64
    %v3962 = vpop.permute.xlu0 %3961
    %3963 = vrot.lane.b32.xlu0 %v3734, 64
    %v3964 = vpop.permute.xlu0 %3963
    %3965 = vrot.lane.b32.xlu0 %v3735, 64
    %v3966 = vpop.permute.xlu0 %3965
    %3967 = vrot.lane.b32.xlu0 %v3736, 64
    %v3968 = vpop.permute.xlu0 %3967
    %3969 = vrot.lane.b32.xlu0 %v3737, 64
    %v3970 = vpop.permute.xlu0 %3969
    %v3989 = vrot.slane %v3729, 1
    %v3990 = vrot.slane %v3746, 1
    %v3991 = vsel %vm3785, %v3989, %v3990
    %v3992 = vrot.slane %v3737, 1
    %v3993 = vrot.slane %v3754, 1
    %v3994 = vsel %vm3785, %v3992, %v3993
    %v4011 = vrot.slane %v3729, 2
    %v4012 = vrot.slane %v3746, 2
    %v4013 = vsel %vm3876, %v4011, %v4012
    %v4014 = vrot.slane %v3737, 2
    %v4015 = vrot.slane %v3754, 2
    %v4016 = vsel %vm3876, %v4014, %v4015
    %4017 = vrot.lane.b32.xlu0 %v3882, 64
    %v4018 = vpop.permute.xlu0 %4017
    %4019 = vrot.lane.b32.xlu0 %v3885, 64
    %v4020 = vpop.permute.xlu0 %4019
    %4021 = vrot.lane.b32.xlu0 %v3888, 64
    %v4022 = vpop.permute.xlu0 %4021
    %4023 = vrot.lane.b32.xlu0 %v3891, 64
    %v4024 = vpop.permute.xlu0 %4023
    %4025 = vrot.lane.b32.xlu0 %v3894, 64
    %v4026 = vpop.permute.xlu0 %4025
    %4027 = vrot.lane.b32.xlu0 %v3897, 64
    %v4028 = vpop.permute.xlu0 %4027
    %4029 = vrot.lane.b32.xlu0 %v3900, 64
    %v4030 = vpop.permute.xlu0 %4029
    %4031 = vrot.lane.b32.xlu0 %v4013, 64
    %v4032 = vpop.permute.xlu0 %4031
    %4033 = vrot.lane.b32.xlu0 %v3903, 64
    %v4034 = vpop.permute.xlu0 %4033
    %4035 = vrot.lane.b32.xlu0 %v3906, 64
    %v4036 = vpop.permute.xlu0 %4035
    %4037 = vrot.lane.b32.xlu0 %v3909, 64
    %v4038 = vpop.permute.xlu0 %4037
    %4039 = vrot.lane.b32.xlu0 %v3912, 64
    %v4040 = vpop.permute.xlu0 %4039
    %4041 = vrot.lane.b32.xlu0 %v3915, 64
    %v4042 = vpop.permute.xlu0 %4041
    %4043 = vrot.lane.b32.xlu0 %v3918, 64
    %v4044 = vpop.permute.xlu0 %4043
    %4045 = vrot.lane.b32.xlu0 %v3921, 64
    %v4046 = vpop.permute.xlu0 %4045
    %4047 = vrot.lane.b32.xlu0 %v4016, 64
    %v4048 = vpop.permute.xlu0 %4047
    %4065 = vrot.lane.b32.xlu0 %v3991, 64
    %v4066 = vpop.permute.xlu0 %4065
    %4067 = vrot.lane.b32.xlu0 %v3994, 64
    %v4068 = vpop.permute.xlu0 %4067
    %vm4071 = vcmask 523264
    %v4072 = vsel %vm4071, %v3721, %v3832
    %v4073 = vsel %vm4071, %v3722, %v3834
    %v4074 = vsel %vm4071, %v3723, %v3836
    %v4075 = vsel %vm4071, %v3724, %v3838
    %v4076 = vsel %vm4071, %v3725, %v3840
    %v4077 = vsel %vm4071, %v3726, %v3842
    %v4078 = vsel %vm4071, %v3727, %v3844
    %v4079 = vsel %vm4071, %v3728, %v3846
    %v4080 = vsel %vm4071, %v3730, %v3848
    %v4081 = vsel %vm4071, %v3731, %v3850
    %v4082 = vsel %vm4071, %v3732, %v3852
    %v4083 = vsel %vm4071, %v3733, %v3854
    %v4084 = vsel %vm4071, %v3734, %v3856
    %v4085 = vsel %vm4071, %v3735, %v3858
    %v4086 = vsel %vm4071, %v3736, %v3860
    %v4087 = vsel %vm4071, %v3879, %v3940
    %v4088 = vsel %vm4071, %v3882, %v3942
    %v4089 = vsel %vm4071, %v3885, %v3944
    %v4090 = vsel %vm4071, %v3888, %v3946
    %v4091 = vsel %vm4071, %v3891, %v3948
    %v4092 = vsel %vm4071, %v3894, %v3950
    %v4093 = vsel %vm4071, %v3897, %v3952
    %v4094 = vsel %vm4071, %v3900, %v3954
    %v4095 = vsel %vm4071, %v3879, %v3956
    %v4096 = vsel %vm4071, %v3903, %v3958
    %v4097 = vsel %vm4071, %v3906, %v3960
    %v4098 = vsel %vm4071, %v3909, %v3962
    %v4099 = vsel %vm4071, %v3912, %v3964
    %v4100 = vsel %vm4071, %v3915, %v3966
    %v4101 = vsel %vm4071, %v3918, %v3968
    %v4102 = vsel %vm4071, %v3921, %v3970
    %v4103 = vsel %vm4071, %v3791, %v4018
    %v4104 = vsel %vm4071, %v3794, %v4020
    %v4105 = vsel %vm4071, %v3797, %v4022
    %v4106 = vsel %vm4071, %v3800, %v4024
    %v4107 = vsel %vm4071, %v3803, %v4026
    %v4108 = vsel %vm4071, %v3806, %v4028
    %v4109 = vsel %vm4071, %v3809, %v4030
    %v4110 = vsel %vm4071, %v3991, %v4032
    %v4111 = vsel %vm4071, %v3812, %v4034
    %v4112 = vsel %vm4071, %v3815, %v4036
    %v4113 = vsel %vm4071, %v3818, %v4038
    %v4114 = vsel %vm4071, %v3821, %v4040
    %v4115 = vsel %vm4071, %v3824, %v4042
    %v4116 = vsel %vm4071, %v3827, %v4044
    %v4117 = vsel %vm4071, %v3830, %v4046
    %v4118 = vsel %vm4071, %v3994, %v4048
    %v4119 = vsel %vm4071, %v3729, %v4066
    %v4120 = vsel %vm4071, %v3737, %v4068
    %v4121 = vld [vmem:[%s3] sm:$0xff]
    %v4122 = vld [vmem:[%s3 + $0x8] sm:$0xff]
    %v4123 = vld [vmem:[%s3 + $0x10] sm:$0xff]
    %v4124 = vld [vmem:[%s3 + $0x18] sm:$0xff]
    %v4125 = vld [vmem:[%s3 + $0x20] sm:$0xff]
    %v4126 = vld [vmem:[%s3 + $0x28] sm:$0xff]
    %v4127 = vld [vmem:[%s3 + $0x30] sm:$0xff]
    %v4128 = vld [vmem:[%s3 + $0x38] sm:$0xff]
    %v4129 = vld [vmem:[%s3 + $0x40] sm:$0xff]
    %v4130 = vld [vmem:[%s3 + $0x48] sm:$0xff]
    %v4131 = vld [vmem:[%s3 + $0x50] sm:$0xff]
    %v4132 = vld [vmem:[%s3 + $0x58] sm:$0xff]
    %v4133 = vld [vmem:[%s3 + $0x60] sm:$0xff]
    %v4134 = vld [vmem:[%s3 + $0x68] sm:$0xff]
    %v4135 = vld [vmem:[%s3 + $0x70] sm:$0xff]
    %v4136 = vld [vmem:[%s3 + $0x78] sm:$0xff]
    %v4137 = vld [vmem:[%s3 + $0x80] sm:$0xff]
    %v4138 = vld [vmem:[%s3 + $0x88] sm:$0xff]
    %v4139 = vld [vmem:[%s3 + $0x90] sm:$0xff]
    %v4140 = vld [vmem:[%s3 + $0x98] sm:$0xff]
    %v4141 = vld [vmem:[%s3 + $0xa0] sm:$0xff]
    %v4142 = vld [vmem:[%s3 + $0xa8] sm:$0xff]
    %v4143 = vld [vmem:[%s3 + $0xb0] sm:$0xff]
    %v4144 = vld [vmem:[%s3 + $0xb8] sm:$0xff]
    %v4145 = vld [vmem:[%s3 + $0xc0] sm:$0xff]
    %v4146 = vld [vmem:[%s3 + $0xc8] sm:$0xff]
    %v4147 = vld [vmem:[%s3 + $0xd0] sm:$0xff]
    %v4148 = vld [vmem:[%s3 + $0xd8] sm:$0xff]
    %v4149 = vld [vmem:[%s3 + $0xe0] sm:$0xff]
    %v4150 = vld [vmem:[%s3 + $0xe8] sm:$0xff]
    %v4151 = vld [vmem:[%s3 + $0xf0] sm:$0xff]
    %v4152 = vld [vmem:[%s3 + $0xf8] sm:$0xff]
    %v4153 = vld [vmem:[%s3 + $0x100] sm:$0xff]
    %v4154 = vld [vmem:[%s3 + $0x108] sm:$0xff]
    %v4155 = vld [vmem:[%s3 + $0x110] sm:$0xff]
    %v4156 = vld [vmem:[%s3 + $0x118] sm:$0xff]
    %v4157 = vld [vmem:[%s3 + $0x120] sm:$0xff]
    %v4158 = vld [vmem:[%s3 + $0x128] sm:$0xff]
    %v4159 = vld [vmem:[%s3 + $0x130] sm:$0xff]
    %v4160 = vld [vmem:[%s3 + $0x138] sm:$0xff]
    %v4161 = vld [vmem:[%s3 + $0x140] sm:$0xff]
    %v4162 = vld [vmem:[%s3 + $0x148] sm:$0xff]
    %v4163 = vld [vmem:[%s3 + $0x150] sm:$0xff]
    %v4164 = vld [vmem:[%s3 + $0x158] sm:$0xff]
    %v4165 = vld [vmem:[%s3 + $0x160] sm:$0xff]
    %v4166 = vld [vmem:[%s3 + $0x168] sm:$0xff]
    %v4167 = vld [vmem:[%s3 + $0x170] sm:$0xff]
    %v4168 = vld [vmem:[%s3 + $0x178] sm:$0xff]
    %v4169 = vld [vmem:[%s3 + $0x180] sm:$0xff]
    %v4170 = vld [vmem:[%s3 + $0x188] sm:$0xff]
    %v4171 = vld [vmem:[%s3 + $0x190] sm:$0xff]
    %v4172 = vld [vmem:[%s3 + $0x198] sm:$0xff]
    %v4173 = vld [vmem:[%s3 + $0x1a0] sm:$0xff]
    %v4174 = vld [vmem:[%s3 + $0x1a8] sm:$0xff]
    %v4175 = vld [vmem:[%s3 + $0x1b0] sm:$0xff]
    %v4176 = vld [vmem:[%s3 + $0x1b8] sm:$0xff]
    %v4177 = vld [vmem:[%s3 + $0x1c0] sm:$0xff]
    %v4178 = vld [vmem:[%s3 + $0x1c8] sm:$0xff]
    %v4179 = vld [vmem:[%s3 + $0x1d0] sm:$0xff]
    %v4180 = vld [vmem:[%s3 + $0x1d8] sm:$0xff]
    %v4181 = vld [vmem:[%s3 + $0x1e0] sm:$0xff]
    %v4182 = vld [vmem:[%s3 + $0x1e8] sm:$0xff]
    %v4183 = vld [vmem:[%s3 + $0x1f0] sm:$0xff]
    %v4184 = vld [vmem:[%s3 + $0x1f8] sm:$0xff]
    %v4185 = vld [vmem:[%s3 + $0x200] sm:$0xff]
    %v4186 = vld [vmem:[%s3 + $0x208] sm:$0xff]
    %v4187 = vld [vmem:[%s3 + $0x210] sm:$0xff]
    %v4188 = vld [vmem:[%s3 + $0x218] sm:$0xff]
    %v4189 = vld [vmem:[%s3 + $0x220] sm:$0xff]
    %v4190 = vld [vmem:[%s3 + $0x228] sm:$0xff]
    %v4191 = vld [vmem:[%s3 + $0x230] sm:$0xff]
    %v4192 = vld [vmem:[%s3 + $0x238] sm:$0xff]
    %v4193 = vld [vmem:[%s4] sm:$0x1]
    %v4195 = vlaneseq
    %v4196 = vshrl.u32 %v4195, 7
    %v4197 = vsub.s32 0, %v4196
    %v4198 = vrot.slane %v4193, %v4197
    %v4200 = vsel %vm4071, %v3885, 0
    %v4202 = vsel %vm4071, %v3888, 0
    %v4204 = vsel %vm4071, %v3891, 0
    %v4206 = vsel %vm4071, %v3894, 0
    %v4208 = vsel %vm4071, %v3897, 0
    %v4210 = vsel %vm4071, %v3900, 0
    %v4212 = vsel %vm4071, %v4013, 0
    %v4214 = vsel %vm4071, %v3879, 0
    %v4216 = vsel %vm4071, %v3906, 0
    %v4218 = vsel %vm4071, %v3909, 0
    %v4220 = vsel %vm4071, %v3912, 0
    %v4222 = vsel %vm4071, %v3915, 0
    %v4224 = vsel %vm4071, %v3918, 0
    %v4226 = vsel %vm4071, %v3921, 0
    %v4228 = vsel %vm4071, %v4016, 0
    %4230 = vmatprep.subr.mxu0 0.0
    %4231 = vmatpush1.msra.mxu0 %v4121
    %4232 = vmatprep.subr.mxu0 0.0
    %4233 = vmatpush1.msra.mxu0 %v4122
    %4234 = vmatprep.subr.mxu0 0.0
    %4235 = vmatpush1.msra.mxu0 %v4123
    %4236 = vmatprep.subr.mxu0 0.0
    %4237 = vmatpush1.msra.mxu0 %v4124
    %4238 = vmatprep.subr.mxu0 0.0
    %4239 = vmatpush1.msra.mxu0 %v4125
    %4240 = vmatprep.subr.mxu0 0.0
    %4241 = vmatpush1.msra.mxu0 %v4126
    %4242 = vmatprep.subr.mxu0 0.0
    %4243 = vmatpush1.msra.mxu0 %v4127
    %4244 = vmatprep.subr.mxu0 0.0
    %4245 = vmatpush1.msra.mxu0 %v4128
    %4246 = vmatprep.subr.mxu0 0.0
    %4247 = vmatpush1.msra.mxu0 %v4129
    %4248 = vmatprep.subr.mxu0 0.0
    %4249 = vmatpush1.msra.mxu0 %v4130
    %4250 = vmatprep.subr.mxu0 0.0
    %4251 = vmatpush1.msra.mxu0 %v4131
    %4252 = vmatprep.subr.mxu0 0.0
    %4253 = vmatpush1.msra.mxu0 %v4132
    %4254 = vmatprep.subr.mxu0 0.0
    %4255 = vmatpush1.msra.mxu0 %v4133
    %4256 = vmatprep.subr.mxu0 0.0
    %4257 = vmatpush1.msra.mxu0 %v4134
    %4258 = vmatprep.subr.mxu0 0.0
    %4259 = vmatpush1.msra.mxu0 %v4135
    %4260 = vmatprep.subr.mxu0 0.0
    %4261 = vmatpush1.msra.mxu0 %v4136
    %4262 = vmatprep.subr.mxu0 0.0
    %4263 = vmatpush1.msra.mxu0 %v4137
    %4264 = vmatprep.subr.mxu0 0.0
    %4265 = vmatpush1.msra.mxu0 %v4138
    %4266 = vmatprep.subr.mxu0 0.0
    %4267 = vmatpush1.msra.mxu0 %v4139
    %4268 = vmatprep.subr.mxu0 0.0
    %4269 = vmatpush1.msra.mxu0 %v4140
    %4270 = vmatprep.subr.mxu0 0.0
    %4271 = vmatpush1.msra.mxu0 %v4141
    %4272 = vmatprep.subr.mxu0 0.0
    %4273 = vmatpush1.msra.mxu0 %v4142
    %4274 = vmatprep.subr.mxu0 0.0
    %4275 = vmatpush1.msra.mxu0 %v4143
    %4276 = vmatprep.subr.mxu0 0.0
    %4277 = vmatpush1.msra.mxu0 %v4144
    %4278 = vmatprep.subr.mxu0 0.0
    %4279 = vmatpush1.msra.mxu0 %v4145
    %4280 = vmatprep.subr.mxu0 0.0
    %4281 = vmatpush1.msra.mxu0 %v4146
    %4282 = vmatprep.subr.mxu0 0.0
    %4283 = vmatpush1.msra.mxu0 %v4147
    %4284 = vmatprep.subr.mxu0 0.0
    %4285 = vmatpush1.msra.mxu0 %v4148
    %4286 = vmatprep.subr.mxu0 0.0
    %4287 = vmatpush1.msra.mxu0 %v4149
    %4288 = vmatprep.subr.mxu0 0.0
    %4289 = vmatpush1.msra.mxu0 %v4150
    %4290 = vmatprep.subr.mxu0 0.0
    %4291 = vmatpush1.msra.mxu0 %v4151
    %4292 = vmatprep.subr.mxu0 0.0
    %4293 = vmatpush1.msra.mxu0 %v4152
    %4294 = vmatprep.mubr.f32.mxu0 %v4087
    %4295 = vmatmul.mubr.f32.gmra.mrb[0].mxu0 %v4072
    %v4296 = vpop.f32.mrb[0].mxu0
    %v4297 = vadd.f32 %v4198, %v4296
    %v4298 = vpop.f32.mrb[0].mxu0
    %4299 = vmatprep.mubr.f32.mxu0 %v4088
    %4300 = vmatmul.mubr.f32.gmra.mrb[0].mxu0 %v4073
    %v4301 = vpop.f32.mrb[0].mxu0
    %v4302 = vadd.f32 %v4198, %v4301
    %v4303 = vpop.f32.mrb[0].mxu0
    %4304 = vmatprep.mubr.f32.mxu0 %v4089
    %4305 = vmatmul.mubr.f32.gmra.mrb[0].mxu0 %v4074
    %v4306 = vpop.f32.mrb[0].mxu0
    %v4307 = vadd.f32 %v4198, %v4306
    %v4308 = vpop.f32.mrb[0].mxu0
    %4309 = vmatprep.mubr.f32.mxu0 %v4090
    %4310 = vmatmul.mubr.f32.gmra.mrb[0].mxu0 %v4075
    %v4311 = vpop.f32.mrb[0].mxu0
    %v4312 = vadd.f32 %v4198, %v4311
    %v4313 = vpop.f32.mrb[0].mxu0
    %4314 = vmatprep.mubr.f32.mxu0 %v4091
    %4315 = vmatmul.mubr.f32.gmra.mrb[0].mxu0 %v4076
    %v4316 = vpop.f32.mrb[0].mxu0
    %v4317 = vadd.f32 %v4198, %v4316
    %v4318 = vpop.f32.mrb[0].mxu0
    %4319 = vmatprep.mubr.f32.mxu0 %v4092
    %4320 = vmatmul.mubr.f32.gmra.mrb[0].mxu0 %v4077
    %v4321 = vpop.f32.mrb[0].mxu0
    %v4322 = vadd.f32 %v4198, %v4321
    %v4323 = vpop.f32.mrb[0].mxu0
    %4324 = vmatprep.mubr.f32.mxu0 %v4093
    %4325 = vmatmul.mubr.f32.gmra.mrb[0].mxu0 %v4078
    %v4326 = vpop.f32.mrb[0].mxu0
    %v4327 = vadd.f32 %v4198, %v4326
    %v4328 = vpop.f32.mrb[0].mxu0
    %4329 = vmatprep.mubr.f32.mxu0 %v4094
    %4330 = vmatmul.mubr.f32.gmra.mrb[0].mxu0 %v4079
    %v4331 = vpop.f32.mrb[0].mxu0
    %v4332 = vadd.f32 %v4198, %v4331
    %v4333 = vpop.f32.mrb[0].mxu0
    %4334 = vmatprep.mubr.f32.mxu0 %v4095
    %4335 = vmatmul.mubr.f32.gmra.mrb[0].mxu0 %v4072
    %v4336 = vpop.f32.mrb[0].mxu0
    %v4337 = vadd.f32 %v4198, %v4336
    %v4338 = vpop.f32.mrb[0].mxu0
    %4339 = vmatprep.mubr.f32.mxu0 %v4096
    %4340 = vmatmul.mubr.f32.gmra.mrb[0].mxu0 %v4080
    %v4341 = vpop.f32.mrb[0].mxu0
    %v4342 = vadd.f32 %v4198, %v4341
    %v4343 = vpop.f32.mrb[0].mxu0
    %4344 = vmatprep.mubr.f32.mxu0 %v4097
    %4345 = vmatmul.mubr.f32.gmra.mrb[0].mxu0 %v4081
    %v4346 = vpop.f32.mrb[0].mxu0
    %v4347 = vadd.f32 %v4198, %v4346
    %v4348 = vpop.f32.mrb[0].mxu0
    %4349 = vmatprep.mubr.f32.mxu0 %v4098
    %4350 = vmatmul.mubr.f32.gmra.mrb[0].mxu0 %v4082
    %v4351 = vpop.f32.mrb[0].mxu0
    %v4352 = vadd.f32 %v4198, %v4351
    %v4353 = vpop.f32.mrb[0].mxu0
    %4354 = vmatprep.mubr.f32.mxu0 %v4099
    %4355 = vmatmul.mubr.f32.gmra.mrb[0].mxu0 %v4083
    %v4356 = vpop.f32.mrb[0].mxu0
    %v4357 = vadd.f32 %v4198, %v4356
    %v4358 = vpop.f32.mrb[0].mxu0
    %4359 = vmatprep.mubr.f32.mxu0 %v4100
    %4360 = vmatmul.mubr.f32.gmra.mrb[0].mxu0 %v4084
    %v4361 = vpop.f32.mrb[0].mxu0
    %v4362 = vadd.f32 %v4198, %v4361
    %v4363 = vpop.f32.mrb[0].mxu0
    %4364 = vmatprep.mubr.f32.mxu0 %v4101
    %4365 = vmatmul.mubr.f32.gmra.mrb[0].mxu0 %v4085
    %v4366 = vpop.f32.mrb[0].mxu0
    %v4367 = vadd.f32 %v4198, %v4366
    %v4368 = vpop.f32.mrb[0].mxu0
    %4369 = vmatprep.mubr.f32.mxu0 %v4102
    %4370 = vmatmul.mubr.f32.gmra.mrb[0].mxu0 %v4086
    %v4371 = vpop.f32.mrb[0].mxu0
    %v4372 = vadd.f32 %v4198, %v4371
    %v4373 = vpop.f32.mrb[0].mxu0
    %4374 = vdwg.mxu0
    %4375 = vmatprep.subr.mxu0 0.0
    %4376 = vmatpush1.msra.mxu0 %v4153
    %4377 = vmatprep.subr.mxu0 0.0
    %4378 = vmatpush1.msra.mxu0 %v4154
    %4379 = vmatprep.subr.mxu0 0.0
    %4380 = vmatpush1.msra.mxu0 %v4155
    %4381 = vmatprep.subr.mxu0 0.0
    %4382 = vmatpush1.msra.mxu0 %v4156
    %4383 = vmatprep.subr.mxu0 0.0
    %4384 = vmatpush1.msra.mxu0 %v4157
    %4385 = vmatprep.subr.mxu0 0.0
    %4386 = vmatpush1.msra.mxu0 %v4158
    %4387 = vmatprep.subr.mxu0 0.0
    %4388 = vmatpush1.msra.mxu0 %v4159
    %4389 = vmatprep.subr.mxu0 0.0
    %4390 = vmatpush1.msra.mxu0 %v4160
    %4391 = vmatprep.subr.mxu0 0.0
    %4392 = vmatpush1.msra.mxu0 %v4161
    %4393 = vmatprep.subr.mxu0 0.0
    %4394 = vmatpush1.msra.mxu0 %v4162
    %4395 = vmatprep.subr.mxu0 0.0
    %4396 = vmatpush1.msra.mxu0 %v4163
    %4397 = vmatprep.subr.mxu0 0.0
    %4398 = vmatpush1.msra.mxu0 %v4164
    %4399 = vmatprep.subr.mxu0 0.0
    %4400 = vmatpush1.msra.mxu0 %v4165
    %4401 = vmatprep.subr.mxu0 0.0
    %4402 = vmatpush1.msra.mxu0 %v4166
    %4403 = vmatprep.subr.mxu0 0.0
    %4404 = vmatpush1.msra.mxu0 %v4167
    %4405 = vmatprep.subr.mxu0 0.0
    %4406 = vmatpush1.msra.mxu0 %v4168
    %4407 = vmatprep.subr.mxu0 0.0
    %4408 = vmatpush1.msra.mxu0 %v4169
    %4409 = vmatprep.subr.mxu0 0.0
    %4410 = vmatpush1.msra.mxu0 %v4170
    %4411 = vmatprep.subr.mxu0 0.0
    %4412 = vmatpush1.msra.mxu0 %v4171
    %4413 = vmatprep.subr.mxu0 0.0
    %4414 = vmatpush1.msra.mxu0 %v4172
    %4415 = vmatprep.subr.mxu0 0.0
    %4416 = vmatpush1.msra.mxu0 %v4173
    %4417 = vmatprep.subr.mxu0 0.0
    %4418 = vmatpush1.msra.mxu0 %v4174
    %4419 = vmatprep.subr.mxu0 0.0
    %4420 = vmatpush1.msra.mxu0 %v4175
    %4421 = vmatprep.subr.mxu0 0.0
    %4422 = vmatpush1.msra.mxu0 %v4176
    %4423 = vmatprep.subr.mxu0 0.0
    %4424 = vmatpush1.msra.mxu0 %v4177
    %4425 = vmatprep.subr.mxu0 0.0
    %4426 = vmatpush1.msra.mxu0 %v4178
    %4427 = vmatprep.subr.mxu0 0.0
    %4428 = vmatpush1.msra.mxu0 %v4179
    %4429 = vmatprep.subr.mxu0 0.0
    %4430 = vmatpush1.msra.mxu0 %v4180
    %4431 = vmatprep.subr.mxu0 0.0
    %4432 = vmatpush1.msra.mxu0 %v4181
    %4433 = vmatprep.subr.mxu0 0.0
    %4434 = vmatpush1.msra.mxu0 %v4182
    %4435 = vmatprep.subr.mxu0 0.0
    %4436 = vmatpush1.msra.mxu0 %v4183
    %4437 = vmatprep.subr.mxu0 0.0
    %4438 = vmatpush1.msra.mxu0 %v4184
    %4439 = vmatprep.mubr.f32.mxu0 %v4074
    %4440 = vmatmul.mubr.f32.gmra.mrb[0].mxu0 %v4103
    %v4441 = vpop.f32.mrb[0].mxu0
    %v4442 = vadd.f32 %v4297, %v4441
    %v4443 = vpop.f32.mrb[0].mxu0
    %4444 = vmatprep.mubr.f32.mxu0 %v4075
    %4445 = vmatmul.mubr.f32.gmra.mrb[0].mxu0 %v4104
    %v4446 = vpop.f32.mrb[0].mxu0
    %v4447 = vadd.f32 %v4302, %v4446
    %v4448 = vpop.f32.mrb[0].mxu0
    %4449 = vmatprep.mubr.f32.mxu0 %v4076
    %4450 = vmatmul.mubr.f32.gmra.mrb[0].mxu0 %v4105
    %v4451 = vpop.f32.mrb[0].mxu0
    %v4452 = vadd.f32 %v4307, %v4451
    %v4453 = vpop.f32.mrb[0].mxu0
    %4454 = vmatprep.mubr.f32.mxu0 %v4077
    %4455 = vmatmul.mubr.f32.gmra.mrb[0].mxu0 %v4106
    %v4456 = vpop.f32.mrb[0].mxu0
    %v4457 = vadd.f32 %v4312, %v4456
    %v4458 = vpop.f32.mrb[0].mxu0
    %4459 = vmatprep.mubr.f32.mxu0 %v4078
    %4460 = vmatmul.mubr.f32.gmra.mrb[0].mxu0 %v4107
    %v4461 = vpop.f32.mrb[0].mxu0
    %v4462 = vadd.f32 %v4317, %v4461
    %v4463 = vpop.f32.mrb[0].mxu0
    %4464 = vmatprep.mubr.f32.mxu0 %v4079
    %4465 = vmatmul.mubr.f32.gmra.mrb[0].mxu0 %v4108
    %v4466 = vpop.f32.mrb[0].mxu0
    %v4467 = vadd.f32 %v4322, %v4466
    %v4468 = vpop.f32.mrb[0].mxu0
    %4469 = vmatprep.mubr.f32.mxu0 %v4119
    %4470 = vmatmul.mubr.f32.gmra.mrb[0].mxu0 %v4109
    %v4471 = vpop.f32.mrb[0].mxu0
    %v4472 = vadd.f32 %v4327, %v4471
    %v4473 = vpop.f32.mrb[0].mxu0
    %4474 = vmatprep.mubr.f32.mxu0 %v4072
    %4475 = vmatmul.mubr.f32.gmra.mrb[0].mxu0 %v4110
    %v4476 = vpop.f32.mrb[0].mxu0
    %v4477 = vadd.f32 %v4332, %v4476
    %v4478 = vpop.f32.mrb[0].mxu0
    %4479 = vmatprep.mubr.f32.mxu0 %v4081
    %4480 = vmatmul.mubr.f32.gmra.mrb[0].mxu0 %v4111
    %v4481 = vpop.f32.mrb[0].mxu0
    %v4482 = vadd.f32 %v4337, %v4481
    %v4483 = vpop.f32.mrb[0].mxu0
    %4484 = vmatprep.mubr.f32.mxu0 %v4082
    %4485 = vmatmul.mubr.f32.gmra.mrb[0].mxu0 %v4112
    %v4486 = vpop.f32.mrb[0].mxu0
    %v4487 = vadd.f32 %v4342, %v4486
    %v4488 = vpop.f32.mrb[0].mxu0
    %4489 = vmatprep.mubr.f32.mxu0 %v4083
    %4490 = vmatmul.mubr.f32.gmra.mrb[0].mxu0 %v4113
    %v4491 = vpop.f32.mrb[0].mxu0
    %v4492 = vadd.f32 %v4347, %v4491
    %v4493 = vpop.f32.mrb[0].mxu0
    %4494 = vmatprep.mubr.f32.mxu0 %v4084
    %4495 = vmatmul.mubr.f32.gmra.mrb[0].mxu0 %v4114
    %v4496 = vpop.f32.mrb[0].mxu0
    %v4497 = vadd.f32 %v4352, %v4496
    %v4498 = vpop.f32.mrb[0].mxu0
    %4499 = vmatprep.mubr.f32.mxu0 %v4085
    %4500 = vmatmul.mubr.f32.gmra.mrb[0].mxu0 %v4115
    %v4501 = vpop.f32.mrb[0].mxu0
    %v4502 = vadd.f32 %v4357, %v4501
    %v4503 = vpop.f32.mrb[0].mxu0
    %4504 = vmatprep.mubr.f32.mxu0 %v4086
    %4505 = vmatmul.mubr.f32.gmra.mrb[0].mxu0 %v4116
    %v4506 = vpop.f32.mrb[0].mxu0
    %v4507 = vadd.f32 %v4362, %v4506
    %v4508 = vpop.f32.mrb[0].mxu0
    %4509 = vmatprep.mubr.f32.mxu0 %v4120
    %4510 = vmatmul.mubr.f32.gmra.mrb[0].mxu0 %v4117
    %v4511 = vpop.f32.mrb[0].mxu0
    %v4512 = vadd.f32 %v4367, %v4511
    %v4513 = vpop.f32.mrb[0].mxu0
    %4514 = vmatprep.mubr.f32.mxu0 %v4072
    %4515 = vmatmul.mubr.f32.gmra.mrb[0].mxu0 %v4118
    %v4516 = vpop.f32.mrb[0].mxu0
    %v4517 = vadd.f32 %v4372, %v4516
    %v4518 = vpop.f32.mrb[0].mxu0
    %4519 = vdwg.mxu0
    %4520 = vmatprep.subr.mxu0 0.0
    %4521 = vmatpush1.msra.mxu0 %v4185
    %4522 = vmatprep.subr.mxu0 0.0
    %4523 = vmatpush1.msra.mxu0 %v4186
    %4524 = vmatprep.subr.mxu0 0.0
    %4525 = vmatpush1.msra.mxu0 %v4187
    %4526 = vmatprep.subr.mxu0 0.0
    %4527 = vmatpush1.msra.mxu0 %v4188
    %4528 = vmatprep.subr.mxu0 0.0
    %4529 = vmatpush1.msra.mxu0 %v4189
    %4530 = vmatprep.subr.mxu0 0.0
    %4531 = vmatpush1.msra.mxu0 %v4190
    %4532 = vmatprep.subr.mxu0 0.0
    %4533 = vmatpush1.msra.mxu0 %v4191
    %4534 = vmatprep.subr.mxu0 0.0
    %4535 = vmatpush1.msra.mxu0 %v4192
    %4536 = vmatprep.subr.mxu0 0.0
    %4537 = vmatpush1.msra.mxu0 0.0
    %4538 = vmatprep.subr.mxu0 0.0
    %4539 = vmatpush1.msra.mxu0 0.0
    %4540 = vmatprep.subr.mxu0 0.0
    %4541 = vmatpush1.msra.mxu0 0.0
    %4542 = vmatprep.subr.mxu0 0.0
    %4543 = vmatpush1.msra.mxu0 0.0
    %4544 = vmatprep.subr.mxu0 0.0
    %4545 = vmatpush1.msra.mxu0 0.0
    %4546 = vmatprep.subr.mxu0 0.0
    %4547 = vmatpush1.msra.mxu0 0.0
    %4548 = vmatprep.subr.mxu0 0.0
    %4549 = vmatpush1.msra.mxu0 0.0
    %4550 = vmatprep.subr.mxu0 0.0
    %4551 = vmatpush1.msra.mxu0 0.0
    %4552 = vmatprep.subr.mxu0 0.0
    %4553 = vmatpush1.msra.mxu0 0.0
    %4554 = vmatprep.subr.mxu0 0.0
    %4555 = vmatpush1.msra.mxu0 0.0
    %4556 = vmatprep.subr.mxu0 0.0
    %4557 = vmatpush1.msra.mxu0 0.0
    %4558 = vmatprep.subr.mxu0 0.0
    %4559 = vmatpush1.msra.mxu0 0.0
    %4560 = vmatprep.subr.mxu0 0.0
    %4561 = vmatpush1.msra.mxu0 0.0
    %4562 = vmatprep.subr.mxu0 0.0
    %4563 = vmatpush1.msra.mxu0 0.0
    %4564 = vmatprep.subr.mxu0 0.0
    %4565 = vmatpush1.msra.mxu0 0.0
    %4566 = vmatprep.subr.mxu0 0.0
    %4567 = vmatpush1.msra.mxu0 0.0
    %4568 = vmatprep.subr.mxu0 0.0
    %4569 = vmatpush1.msra.mxu0 0.0
    %4570 = vmatprep.subr.mxu0 0.0
    %4571 = vmatpush1.msra.mxu0 0.0
    %4572 = vmatprep.subr.mxu0 0.0
    %4573 = vmatpush1.msra.mxu0 0.0
    %4574 = vmatprep.subr.mxu0 0.0
    %4575 = vmatpush1.msra.mxu0 0.0
    %4576 = vmatprep.subr.mxu0 0.0
    %4577 = vmatpush1.msra.mxu0 0.0
    %4578 = vmatprep.subr.mxu0 0.0
    %4579 = vmatpush1.msra.mxu0 0.0
    %4580 = vmatprep.subr.mxu0 0.0
    %4581 = vmatpush1.msra.mxu0 0.0
    %4582 = vmatprep.subr.mxu0 0.0
    %4583 = vmatpush1.msra.mxu0 0.0
    %4584 = vmatprep.mubr.f32.mxu0 0.0
    %4585 = vmatmul.mubr.f32.gmra.mrb[0].mxu0 %v4200
    %v4586 = vpop.f32.mrb[0].mxu0
    %v4587 = vadd.f32 %v4442, %v4586
    %v4588 = vpop.f32.mrb[0].mxu0
    %4589 = vmatprep.mubr.f32.mxu0 0.0
    %4590 = vmatmul.mubr.f32.gmra.mrb[0].mxu0 %v4202
    %v4591 = vpop.f32.mrb[0].mxu0
    %v4592 = vadd.f32 %v4447, %v4591
    %v4593 = vpop.f32.mrb[0].mxu0
    %4594 = vmatprep.mubr.f32.mxu0 0.0
    %4595 = vmatmul.mubr.f32.gmra.mrb[0].mxu0 %v4204
    %v4596 = vpop.f32.mrb[0].mxu0
    %v4597 = vadd.f32 %v4452, %v4596
    %v4598 = vpop.f32.mrb[0].mxu0
    %4599 = vmatprep.mubr.f32.mxu0 0.0
    %4600 = vmatmul.mubr.f32.gmra.mrb[0].mxu0 %v4206
    %v4601 = vpop.f32.mrb[0].mxu0
    %v4602 = vadd.f32 %v4457, %v4601
    %v4603 = vpop.f32.mrb[0].mxu0
    %4604 = vmatprep.mubr.f32.mxu0 0.0
    %4605 = vmatmul.mubr.f32.gmra.mrb[0].mxu0 %v4208
    %v4606 = vpop.f32.mrb[0].mxu0
    %v4607 = vadd.f32 %v4462, %v4606
    %v4608 = vpop.f32.mrb[0].mxu0
    %4609 = vmatprep.mubr.f32.mxu0 0.0
    %4610 = vmatmul.mubr.f32.gmra.mrb[0].mxu0 %v4210
    %v4611 = vpop.f32.mrb[0].mxu0
    %v4612 = vadd.f32 %v4467, %v4611
    %v4613 = vpop.f32.mrb[0].mxu0
    %4614 = vmatprep.mubr.f32.mxu0 0.0
    %4615 = vmatmul.mubr.f32.gmra.mrb[0].mxu0 %v4212
    %v4616 = vpop.f32.mrb[0].mxu0
    %v4617 = vadd.f32 %v4472, %v4616
    %v4618 = vpop.f32.mrb[0].mxu0
    %4619 = vmatprep.mubr.f32.mxu0 0.0
    %4620 = vmatmul.mubr.f32.gmra.mrb[0].mxu0 %v4214
    %v4621 = vpop.f32.mrb[0].mxu0
    %v4622 = vadd.f32 %v4477, %v4621
    %v4623 = vpop.f32.mrb[0].mxu0
    %4624 = vmatprep.mubr.f32.mxu0 0.0
    %4625 = vmatmul.mubr.f32.gmra.mrb[0].mxu0 %v4216
    %v4626 = vpop.f32.mrb[0].mxu0
    %v4627 = vadd.f32 %v4482, %v4626
    %v4628 = vpop.f32.mrb[0].mxu0
    %4629 = vmatprep.mubr.f32.mxu0 0.0
    %4630 = vmatmul.mubr.f32.gmra.mrb[0].mxu0 %v4218
    %v4631 = vpop.f32.mrb[0].mxu0
    %v4632 = vadd.f32 %v4487, %v4631
    %v4633 = vpop.f32.mrb[0].mxu0
    %4634 = vmatprep.mubr.f32.mxu0 0.0
    %4635 = vmatmul.mubr.f32.gmra.mrb[0].mxu0 %v4220
    %v4636 = vpop.f32.mrb[0].mxu0
    %v4637 = vadd.f32 %v4492, %v4636
    %v4638 = vpop.f32.mrb[0].mxu0
    %4639 = vmatprep.mubr.f32.mxu0 0.0
    %4640 = vmatmul.mubr.f32.gmra.mrb[0].mxu0 %v4222
    %v4641 = vpop.f32.mrb[0].mxu0
    %v4642 = vadd.f32 %v4497, %v4641
    %v4643 = vpop.f32.mrb[0].mxu0
    %4644 = vmatprep.mubr.f32.mxu0 0.0
    %4645 = vmatmul.mubr.f32.gmra.mrb[0].mxu0 %v4224
    %v4646 = vpop.f32.mrb[0].mxu0
    %v4647 = vadd.f32 %v4502, %v4646
    %v4648 = vpop.f32.mrb[0].mxu0
    %4649 = vmatprep.mubr.f32.mxu0 0.0
    %4650 = vmatmul.mubr.f32.gmra.mrb[0].mxu0 %v4226
    %v4651 = vpop.f32.mrb[0].mxu0
    %v4652 = vadd.f32 %v4507, %v4651
    %v4653 = vpop.f32.mrb[0].mxu0
    %4654 = vmatprep.mubr.f32.mxu0 0.0
    %4655 = vmatmul.mubr.f32.gmra.mrb[0].mxu0 %v4228
    %v4656 = vpop.f32.mrb[0].mxu0
    %v4657 = vadd.f32 %v4512, %v4656
    %v4658 = vpop.f32.mrb[0].mxu0
    %4659 = vmatprep.mubr.f32.mxu0 0.0
    %4660 = vmatmul.mubr.f32.gmra.mrb[0].mxu0 %v4214
    %v4661 = vpop.f32.mrb[0].mxu0
    %v4662 = vadd.f32 %v4517, %v4661
    %v4663 = vpop.f32.mrb[0].mxu0
    %4664 = vdwg.mxu0
    %v4665 = vmax.f32 %v4587, 0.0
    %v4666 = vmax.f32 %v4592, 0.0
    %v4667 = vmax.f32 %v4597, 0.0
    %v4668 = vmax.f32 %v4602, 0.0
    %v4669 = vmax.f32 %v4607, 0.0
    %v4670 = vmax.f32 %v4612, 0.0
    %v4671 = vmax.f32 %v4617, 0.0
    %v4672 = vmax.f32 %v4622, 0.0
    %v4673 = vmax.f32 %v4627, 0.0
    %v4674 = vmax.f32 %v4632, 0.0
    %v4675 = vmax.f32 %v4637, 0.0
    %v4676 = vmax.f32 %v4642, 0.0
    %v4677 = vmax.f32 %v4647, 0.0
    %v4678 = vmax.f32 %v4652, 0.0
    %v4679 = vmax.f32 %v4657, 0.0
    %v4680 = vmax.f32 %v4662, 0.0
    %v4697 = vcombine.high %v4665, %v4665
    %v4699 = vunpack.c.l.s4 1983009808
    %v4700 = vunpack.c.0.s8 %v4699
    %v4701 = vlaneseq
    %v4702 = vshrl.u32 %v4701, 7
    %v4703 = vsub.s32 %v4700, %v4702
    %v4704 = vrot.slane %v4665, %v4703
    %v4706 = vunpack.c.l.s4 1983009808
    %v4707 = vunpack.c.0.s8 %v4706
    %v4708 = vlaneseq
    %v4709 = vshrl.u32 %v4708, 7
    %v4710 = vsub.s32 %v4707, %v4709
    %v4711 = vrot.slane %v4697, %v4710
    %v4712 = vcombine.high %v4704, %v4704
    %v4713 = vcombine.high %v4711, %v4711
    %v4714 = vcombine.high %v4666, %v4666
    %v4716 = vunpack.c.l.s4 1983009808
    %v4717 = vunpack.c.0.s8 %v4716
    %v4718 = vlaneseq
    %v4719 = vshrl.u32 %v4718, 7
    %v4720 = vsub.s32 %v4717, %v4719
    %v4721 = vrot.slane %v4666, %v4720
    %v4723 = vunpack.c.l.s4 1983009808
    %v4724 = vunpack.c.0.s8 %v4723
    %v4725 = vlaneseq
    %v4726 = vshrl.u32 %v4725, 7
    %v4727 = vsub.s32 %v4724, %v4726
    %v4728 = vrot.slane %v4714, %v4727
    %v4729 = vcombine.high %v4721, %v4721
    %v4730 = vcombine.high %v4728, %v4728
    %v4731 = vcombine.high %v4667, %v4667
    %v4733 = vunpack.c.l.s4 1983009808
    %v4734 = vunpack.c.0.s8 %v4733
    %v4735 = vlaneseq
    %v4736 = vshrl.u32 %v4735, 7
    %v4737 = vsub.s32 %v4734, %v4736
    %v4738 = vrot.slane %v4667, %v4737
    %v4740 = vunpack.c.l.s4 1983009808
    %v4741 = vunpack.c.0.s8 %v4740
    %v4742 = vlaneseq
    %v4743 = vshrl.u32 %v4742, 7
    %v4744 = vsub.s32 %v4741, %v4743
    %v4745 = vrot.slane %v4731, %v4744
    %v4746 = vcombine.high %v4738, %v4738
    %v4747 = vcombine.high %v4745, %v4745
    %v4748 = vcombine.high %v4668, %v4668
    %v4750 = vunpack.c.l.s4 1983009808
    %v4751 = vunpack.c.0.s8 %v4750
    %v4752 = vlaneseq
    %v4753 = vshrl.u32 %v4752, 7
    %v4754 = vsub.s32 %v4751, %v4753
    %v4755 = vrot.slane %v4668, %v4754
    %v4757 = vunpack.c.l.s4 1983009808
    %v4758 = vunpack.c.0.s8 %v4757
    %v4759 = vlaneseq
    %v4760 = vshrl.u32 %v4759, 7
    %v4761 = vsub.s32 %v4758, %v4760
    %v4762 = vrot.slane %v4748, %v4761
    %v4763 = vcombine.high %v4755, %v4755
    %v4764 = vcombine.high %v4762, %v4762
    %v4765 = vcombine.high %v4669, %v4669
    %v4767 = vunpack.c.l.s4 1983009808
    %v4768 = vunpack.c.0.s8 %v4767
    %v4769 = vlaneseq
    %v4770 = vshrl.u32 %v4769, 7
    %v4771 = vsub.s32 %v4768, %v4770
    %v4772 = vrot.slane %v4669, %v4771
    %v4774 = vunpack.c.l.s4 1983009808
    %v4775 = vunpack.c.0.s8 %v4774
    %v4776 = vlaneseq
    %v4777 = vshrl.u32 %v4776, 7
    %v4778 = vsub.s32 %v4775, %v4777
    %v4779 = vrot.slane %v4765, %v4778
    %v4780 = vcombine.high %v4772, %v4772
    %v4781 = vcombine.high %v4779, %v4779
    %v4782 = vcombine.high %v4670, %v4670
    %v4784 = vunpack.c.l.s4 1983009808
    %v4785 = vunpack.c.0.s8 %v4784
    %v4786 = vlaneseq
    %v4787 = vshrl.u32 %v4786, 7
    %v4788 = vsub.s32 %v4785, %v4787
    %v4789 = vrot.slane %v4670, %v4788
    %v4791 = vunpack.c.l.s4 1983009808
    %v4792 = vunpack.c.0.s8 %v4791
    %v4793 = vlaneseq
    %v4794 = vshrl.u32 %v4793, 7
    %v4795 = vsub.s32 %v4792, %v4794
    %v4796 = vrot.slane %v4782, %v4795
    %v4797 = vcombine.high %v4789, %v4789
    %v4798 = vcombine.high %v4796, %v4796
    %v4799 = vcombine.high %v4671, %v4671
    %v4801 = vunpack.c.l.s4 1983009808
    %v4802 = vunpack.c.0.s8 %v4801
    %v4803 = vlaneseq
    %v4804 = vshrl.u32 %v4803, 7
    %v4805 = vsub.s32 %v4802, %v4804
    %v4806 = vrot.slane %v4671, %v4805
    %v4808 = vunpack.c.l.s4 1983009808
    %v4809 = vunpack.c.0.s8 %v4808
    %v4810 = vlaneseq
    %v4811 = vshrl.u32 %v4810, 7
    %v4812 = vsub.s32 %v4809, %v4811
    %v4813 = vrot.slane %v4799, %v4812
    %v4814 = vcombine.high %v4806, %v4806
    %v4815 = vcombine.high %v4813, %v4813
    %v4816 = vcombine.high %v4672, %v4672
    %v4818 = vunpack.c.l.s4 1983009808
    %v4819 = vunpack.c.0.s8 %v4818
    %v4820 = vlaneseq
    %v4821 = vshrl.u32 %v4820, 7
    %v4822 = vsub.s32 %v4819, %v4821
    %v4823 = vrot.slane %v4672, %v4822
    %v4825 = vunpack.c.l.s4 1983009808
    %v4826 = vunpack.c.0.s8 %v4825
    %v4827 = vlaneseq
    %v4828 = vshrl.u32 %v4827, 7
    %v4829 = vsub.s32 %v4826, %v4828
    %v4830 = vrot.slane %v4816, %v4829
    %v4831 = vcombine.high %v4823, %v4823
    %v4832 = vcombine.high %v4830, %v4830
    %v4833 = vcombine.high %v4673, %v4673
    %v4835 = vunpack.c.l.s4 1983009808
    %v4836 = vunpack.c.0.s8 %v4835
    %v4837 = vlaneseq
    %v4838 = vshrl.u32 %v4837, 7
    %v4839 = vsub.s32 %v4836, %v4838
    %v4840 = vrot.slane %v4673, %v4839
    %v4842 = vunpack.c.l.s4 1983009808
    %v4843 = vunpack.c.0.s8 %v4842
    %v4844 = vlaneseq
    %v4845 = vshrl.u32 %v4844, 7
    %v4846 = vsub.s32 %v4843, %v4845
    %v4847 = vrot.slane %v4833, %v4846
    %v4848 = vcombine.high %v4840, %v4840
    %v4849 = vcombine.high %v4847, %v4847
    %v4850 = vcombine.high %v4674, %v4674
    %v4852 = vunpack.c.l.s4 1983009808
    %v4853 = vunpack.c.0.s8 %v4852
    %v4854 = vlaneseq
    %v4855 = vshrl.u32 %v4854, 7
    %v4856 = vsub.s32 %v4853, %v4855
    %v4857 = vrot.slane %v4674, %v4856
    %v4859 = vunpack.c.l.s4 1983009808
    %v4860 = vunpack.c.0.s8 %v4859
    %v4861 = vlaneseq
    %v4862 = vshrl.u32 %v4861, 7
    %v4863 = vsub.s32 %v4860, %v4862
    %v4864 = vrot.slane %v4850, %v4863
    %v4865 = vcombine.high %v4857, %v4857
    %v4866 = vcombine.high %v4864, %v4864
    %v4867 = vcombine.high %v4675, %v4675
    %v4869 = vunpack.c.l.s4 1983009808
    %v4870 = vunpack.c.0.s8 %v4869
    %v4871 = vlaneseq
    %v4872 = vshrl.u32 %v4871, 7
    %v4873 = vsub.s32 %v4870, %v4872
    %v4874 = vrot.slane %v4675, %v4873
    %v4876 = vunpack.c.l.s4 1983009808
    %v4877 = vunpack.c.0.s8 %v4876
    %v4878 = vlaneseq
    %v4879 = vshrl.u32 %v4878, 7
    %v4880 = vsub.s32 %v4877, %v4879
    %v4881 = vrot.slane %v4867, %v4880
    %v4882 = vcombine.high %v4874, %v4874
    %v4883 = vcombine.high %v4881, %v4881
    %v4884 = vcombine.high %v4676, %v4676
    %v4886 = vunpack.c.l.s4 1983009808
    %v4887 = vunpack.c.0.s8 %v4886
    %v4888 = vlaneseq
    %v4889 = vshrl.u32 %v4888, 7
    %v4890 = vsub.s32 %v4887, %v4889
    %v4891 = vrot.slane %v4676, %v4890
    %v4893 = vunpack.c.l.s4 1983009808
    %v4894 = vunpack.c.0.s8 %v4893
    %v4895 = vlaneseq
    %v4896 = vshrl.u32 %v4895, 7
    %v4897 = vsub.s32 %v4894, %v4896
    %v4898 = vrot.slane %v4884, %v4897
    %v4899 = vcombine.high %v4891, %v4891
    %v4900 = vcombine.high %v4898, %v4898
    %v4901 = vcombine.high %v4677, %v4677
    %v4903 = vunpack.c.l.s4 1983009808
    %v4904 = vunpack.c.0.s8 %v4903
    %v4905 = vlaneseq
    %v4906 = vshrl.u32 %v4905, 7
    %v4907 = vsub.s32 %v4904, %v4906
    %v4908 = vrot.slane %v4677, %v4907
    %v4910 = vunpack.c.l.s4 1983009808
    %v4911 = vunpack.c.0.s8 %v4910
    %v4912 = vlaneseq
    %v4913 = vshrl.u32 %v4912, 7
    %v4914 = vsub.s32 %v4911, %v4913
    %v4915 = vrot.slane %v4901, %v4914
    %v4916 = vcombine.high %v4908, %v4908
    %v4917 = vcombine.high %v4915, %v4915
    %v4918 = vcombine.high %v4678, %v4678
    %v4920 = vunpack.c.l.s4 1983009808
    %v4921 = vunpack.c.0.s8 %v4920
    %v4922 = vlaneseq
    %v4923 = vshrl.u32 %v4922, 7
    %v4924 = vsub.s32 %v4921, %v4923
    %v4925 = vrot.slane %v4678, %v4924
    %v4927 = vunpack.c.l.s4 1983009808
    %v4928 = vunpack.c.0.s8 %v4927
    %v4929 = vlaneseq
    %v4930 = vshrl.u32 %v4929, 7
    %v4931 = vsub.s32 %v4928, %v4930
    %v4932 = vrot.slane %v4918, %v4931
    %v4933 = vcombine.high %v4925, %v4925
    %v4934 = vcombine.high %v4932, %v4932
    %v4935 = vcombine.high %v4679, %v4679
    %v4937 = vunpack.c.l.s4 1983009808
    %v4938 = vunpack.c.0.s8 %v4937
    %v4939 = vlaneseq
    %v4940 = vshrl.u32 %v4939, 7
    %v4941 = vsub.s32 %v4938, %v4940
    %v4942 = vrot.slane %v4679, %v4941
    %v4944 = vunpack.c.l.s4 1983009808
    %v4945 = vunpack.c.0.s8 %v4944
    %v4946 = vlaneseq
    %v4947 = vshrl.u32 %v4946, 7
    %v4948 = vsub.s32 %v4945, %v4947
    %v4949 = vrot.slane %v4935, %v4948
    %v4950 = vcombine.high %v4942, %v4942
    %v4951 = vcombine.high %v4949, %v4949
    %v4952 = vcombine.high %v4680, %v4680
    %v4954 = vunpack.c.l.s4 1983009808
    %v4955 = vunpack.c.0.s8 %v4954
    %v4956 = vlaneseq
    %v4957 = vshrl.u32 %v4956, 7
    %v4958 = vsub.s32 %v4955, %v4957
    %v4959 = vrot.slane %v4680, %v4958
    %v4961 = vunpack.c.l.s4 1983009808
    %v4962 = vunpack.c.0.s8 %v4961
    %v4963 = vlaneseq
    %v4964 = vshrl.u32 %v4963, 7
    %v4965 = vsub.s32 %v4962, %v4964
    %v4966 = vrot.slane %v4952, %v4965
    %v4967 = vcombine.high %v4959, %v4959
    %v4968 = vcombine.high %v4966, %v4966
    %v5033 = vmax.f32 %v4704, %v4721
    %v5034 = vmax.f32 %v4712, %v4729
    %v5035 = vmax.f32 %v4711, %v4728
    %v5036 = vmax.f32 %v4713, %v4730
    %v5037 = vmax.f32 %v4738, %v4755
    %v5038 = vmax.f32 %v4746, %v4763
    %v5039 = vmax.f32 %v4745, %v4762
    %v5040 = vmax.f32 %v4747, %v4764
    %v5041 = vmax.f32 %v4772, %v4789
    %v5042 = vmax.f32 %v4780, %v4797
    %v5043 = vmax.f32 %v4779, %v4796
    %v5044 = vmax.f32 %v4781, %v4798
    %v5045 = vmax.f32 %v4806, %v4823
    %v5046 = vmax.f32 %v4814, %v4831
    %v5047 = vmax.f32 %v4813, %v4830
    %v5048 = vmax.f32 %v4815, %v4832
    %v5049 = vmax.f32 %v4840, %v4857
    %v5050 = vmax.f32 %v4848, %v4865
    %v5051 = vmax.f32 %v4847, %v4864
    %v5052 = vmax.f32 %v4849, %v4866
    %v5053 = vmax.f32 %v4874, %v4891
    %v5054 = vmax.f32 %v4882, %v4899
    %v5055 = vmax.f32 %v4881, %v4898
    %v5056 = vmax.f32 %v4883, %v4900
    %v5057 = vmax.f32 %v4908, %v4925
    %v5058 = vmax.f32 %v4916, %v4933
    %v5059 = vmax.f32 %v4915, %v4932
    %v5060 = vmax.f32 %v4917, %v4934
    %v5061 = vmax.f32 %v4942, %v4959
    %v5062 = vmax.f32 %v4950, %v4967
    %v5063 = vmax.f32 %v4949, %v4966
    %v5064 = vmax.f32 %v4951, %v4968
    %v5097 = vrot.slane %v5033, 7
    %v5098 = vrot.slane %v5097, 2
    %v5099 = vrot.slane %v5034, 7
    %v5100 = vrot.slane %v5099, 2
    %v5101 = vrot.slane %v5035, 7
    %v5102 = vrot.slane %v5101, 2
    %v5103 = vrot.slane %v5036, 7
    %v5104 = vrot.slane %v5103, 2
    %v5105 = vrot.slane %v5037, 7
    %v5106 = vrot.slane %v5105, 2
    %v5107 = vrot.slane %v5038, 7
    %v5108 = vrot.slane %v5107, 2
    %v5109 = vrot.slane %v5039, 7
    %v5110 = vrot.slane %v5109, 2
    %v5111 = vrot.slane %v5040, 7
    %v5112 = vrot.slane %v5111, 2
    %v5113 = vrot.slane %v5041, 7
    %v5114 = vrot.slane %v5113, 2
    %v5115 = vrot.slane %v5042, 7
    %v5116 = vrot.slane %v5115, 2
    %v5117 = vrot.slane %v5043, 7
    %v5118 = vrot.slane %v5117, 2
    %v5119 = vrot.slane %v5044, 7
    %v5120 = vrot.slane %v5119, 2
    %v5121 = vrot.slane %v5045, 7
    %v5122 = vrot.slane %v5121, 2
    %v5123 = vrot.slane %v5046, 7
    %v5124 = vrot.slane %v5123, 2
    %v5125 = vrot.slane %v5047, 7
    %v5126 = vrot.slane %v5125, 2
    %v5127 = vrot.slane %v5048, 7
    %v5128 = vrot.slane %v5127, 2
    %v5129 = vrot.slane %v5049, 7
    %v5130 = vrot.slane %v5129, 2
    %v5131 = vrot.slane %v5050, 7
    %v5132 = vrot.slane %v5131, 2
    %v5133 = vrot.slane %v5051, 7
    %v5134 = vrot.slane %v5133, 2
    %v5135 = vrot.slane %v5052, 7
    %v5136 = vrot.slane %v5135, 2
    %v5137 = vrot.slane %v5053, 7
    %v5138 = vrot.slane %v5137, 2
    %v5139 = vrot.slane %v5054, 7
    %v5140 = vrot.slane %v5139, 2
    %v5141 = vrot.slane %v5055, 7
    %v5142 = vrot.slane %v5141, 2
    %v5143 = vrot.slane %v5056, 7
    %v5144 = vrot.slane %v5143, 2
    %v5145 = vrot.slane %v5057, 7
    %v5146 = vrot.slane %v5145, 2
    %v5147 = vrot.slane %v5058, 7
    %v5148 = vrot.slane %v5147, 2
    %v5149 = vrot.slane %v5059, 7
    %v5150 = vrot.slane %v5149, 2
    %v5151 = vrot.slane %v5060, 7
    %v5152 = vrot.slane %v5151, 2
    %v5153 = vrot.slane %v5061, 7
    %v5154 = vrot.slane %v5153, 2
    %v5155 = vrot.slane %v5062, 7
    %v5156 = vrot.slane %v5155, 2
    %v5157 = vrot.slane %v5063, 7
    %v5158 = vrot.slane %v5157, 2
    %v5159 = vrot.slane %v5064, 7
    %v5160 = vrot.slane %v5159, 2
    %v5193 = vmax.f32 %v5033, %v5098
    %v5194 = vmax.f32 %v5034, %v5100
    %v5195 = vmax.f32 %v5035, %v5102
    %v5196 = vmax.f32 %v5036, %v5104
    %v5197 = vmax.f32 %v5037, %v5106
    %v5198 = vmax.f32 %v5038, %v5108
    %v5199 = vmax.f32 %v5039, %v5110
    %v5200 = vmax.f32 %v5040, %v5112
    %v5201 = vmax.f32 %v5041, %v5114
    %v5202 = vmax.f32 %v5042, %v5116
    %v5203 = vmax.f32 %v5043, %v5118
    %v5204 = vmax.f32 %v5044, %v5120
    %v5205 = vmax.f32 %v5045, %v5122
    %v5206 = vmax.f32 %v5046, %v5124
    %v5207 = vmax.f32 %v5047, %v5126
    %v5208 = vmax.f32 %v5048, %v5128
    %v5209 = vmax.f32 %v5049, %v5130
    %v5210 = vmax.f32 %v5050, %v5132
    %v5211 = vmax.f32 %v5051, %v5134
    %v5212 = vmax.f32 %v5052, %v5136
    %v5213 = vmax.f32 %v5053, %v5138
    %v5214 = vmax.f32 %v5054, %v5140
    %v5215 = vmax.f32 %v5055, %v5142
    %v5216 = vmax.f32 %v5056, %v5144
    %v5217 = vmax.f32 %v5057, %v5146
    %v5218 = vmax.f32 %v5058, %v5148
    %v5219 = vmax.f32 %v5059, %v5150
    %v5220 = vmax.f32 %v5060, %v5152
    %v5221 = vmax.f32 %v5061, %v5154
    %v5222 = vmax.f32 %v5062, %v5156
    %v5223 = vmax.f32 %v5063, %v5158
    %v5224 = vmax.f32 %v5064, %v5160
    %v5257 = vlaneseq
    %v5258 = vshrl.u32 %v5257, 7
    %v5259 = vsub.s32 0, %v5258
    %v5260 = vrot.slane %v5193, %v5259
    %v5261 = vlaneseq
    %v5262 = vshrl.u32 %v5261, 7
    %v5263 = vsub.s32 0, %v5262
    %v5264 = vrot.slane %v5194, %v5263
    %v5265 = vlaneseq
    %v5266 = vshrl.u32 %v5265, 7
    %v5267 = vsub.s32 0, %v5266
    %v5268 = vrot.slane %v5195, %v5267
    %v5269 = vlaneseq
    %v5270 = vshrl.u32 %v5269, 7
    %v5271 = vsub.s32 0, %v5270
    %v5272 = vrot.slane %v5196, %v5271
    %v5273 = vlaneseq
    %v5274 = vshrl.u32 %v5273, 7
    %v5275 = vsub.s32 0, %v5274
    %v5276 = vrot.slane %v5197, %v5275
    %v5277 = vlaneseq
    %v5278 = vshrl.u32 %v5277, 7
    %v5279 = vsub.s32 0, %v5278
    %v5280 = vrot.slane %v5198, %v5279
    %v5281 = vlaneseq
    %v5282 = vshrl.u32 %v5281, 7
    %v5283 = vsub.s32 0, %v5282
    %v5284 = vrot.slane %v5199, %v5283
    %v5285 = vlaneseq
    %v5286 = vshrl.u32 %v5285, 7
    %v5287 = vsub.s32 0, %v5286
    %v5288 = vrot.slane %v5200, %v5287
    %v5289 = vlaneseq
    %v5290 = vshrl.u32 %v5289, 7
    %v5291 = vsub.s32 0, %v5290
    %v5292 = vrot.slane %v5201, %v5291
    %v5293 = vlaneseq
    %v5294 = vshrl.u32 %v5293, 7
    %v5295 = vsub.s32 0, %v5294
    %v5296 = vrot.slane %v5202, %v5295
    %v5297 = vlaneseq
    %v5298 = vshrl.u32 %v5297, 7
    %v5299 = vsub.s32 0, %v5298
    %v5300 = vrot.slane %v5203, %v5299
    %v5301 = vlaneseq
    %v5302 = vshrl.u32 %v5301, 7
    %v5303 = vsub.s32 0, %v5302
    %v5304 = vrot.slane %v5204, %v5303
    %v5305 = vlaneseq
    %v5306 = vshrl.u32 %v5305, 7
    %v5307 = vsub.s32 0, %v5306
    %v5308 = vrot.slane %v5205, %v5307
    %v5309 = vlaneseq
    %v5310 = vshrl.u32 %v5309, 7
    %v5311 = vsub.s32 0, %v5310
    %v5312 = vrot.slane %v5206, %v5311
    %v5313 = vlaneseq
    %v5314 = vshrl.u32 %v5313, 7
    %v5315 = vsub.s32 0, %v5314
    %v5316 = vrot.slane %v5207, %v5315
    %v5317 = vlaneseq
    %v5318 = vshrl.u32 %v5317, 7
    %v5319 = vsub.s32 0, %v5318
    %v5320 = vrot.slane %v5208, %v5319
    %v5321 = vlaneseq
    %v5322 = vshrl.u32 %v5321, 7
    %v5323 = vsub.s32 0, %v5322
    %v5324 = vrot.slane %v5209, %v5323
    %v5325 = vlaneseq
    %v5326 = vshrl.u32 %v5325, 7
    %v5327 = vsub.s32 0, %v5326
    %v5328 = vrot.slane %v5210, %v5327
    %v5329 = vlaneseq
    %v5330 = vshrl.u32 %v5329, 7
    %v5331 = vsub.s32 0, %v5330
    %v5332 = vrot.slane %v5211, %v5331
    %v5333 = vlaneseq
    %v5334 = vshrl.u32 %v5333, 7
    %v5335 = vsub.s32 0, %v5334
    %v5336 = vrot.slane %v5212, %v5335
    %v5337 = vlaneseq
    %v5338 = vshrl.u32 %v5337, 7
    %v5339 = vsub.s32 0, %v5338
    %v5340 = vrot.slane %v5213, %v5339
    %v5341 = vlaneseq
    %v5342 = vshrl.u32 %v5341, 7
    %v5343 = vsub.s32 0, %v5342
    %v5344 = vrot.slane %v5214, %v5343
    %v5345 = vlaneseq
    %v5346 = vshrl.u32 %v5345, 7
    %v5347 = vsub.s32 0, %v5346
    %v5348 = vrot.slane %v5215, %v5347
    %v5349 = vlaneseq
    %v5350 = vshrl.u32 %v5349, 7
    %v5351 = vsub.s32 0, %v5350
    %v5352 = vrot.slane %v5216, %v5351
    %v5353 = vlaneseq
    %v5354 = vshrl.u32 %v5353, 7
    %v5355 = vsub.s32 0, %v5354
    %v5356 = vrot.slane %v5217, %v5355
    %v5357 = vlaneseq
    %v5358 = vshrl.u32 %v5357, 7
    %v5359 = vsub.s32 0, %v5358
    %v5360 = vrot.slane %v5218, %v5359
    %v5361 = vlaneseq
    %v5362 = vshrl.u32 %v5361, 7
    %v5363 = vsub.s32 0, %v5362
    %v5364 = vrot.slane %v5219, %v5363
    %v5365 = vlaneseq
    %v5366 = vshrl.u32 %v5365, 7
    %v5367 = vsub.s32 0, %v5366
    %v5368 = vrot.slane %v5220, %v5367
    %v5369 = vlaneseq
    %v5370 = vshrl.u32 %v5369, 7
    %v5371 = vsub.s32 0, %v5370
    %v5372 = vrot.slane %v5221, %v5371
    %v5373 = vlaneseq
    %v5374 = vshrl.u32 %v5373, 7
    %v5375 = vsub.s32 0, %v5374
    %v5376 = vrot.slane %v5222, %v5375
    %v5377 = vlaneseq
    %v5378 = vshrl.u32 %v5377, 7
    %v5379 = vsub.s32 0, %v5378
    %v5380 = vrot.slane %v5223, %v5379
    %v5381 = vlaneseq
    %v5382 = vshrl.u32 %v5381, 7
    %v5383 = vsub.s32 0, %v5382
    %v5384 = vrot.slane %v5224, %v5383
    %v5385 = vsel %vm3566, %v5264, %v5260
    %v5386 = vsel %vm3568, %v5268, %v5385
    %v5387 = vsel %vm3570, %v5272, %v5386
    %v5388 = vsel %vm3566, %v5280, %v5276
    %v5389 = vsel %vm3568, %v5284, %v5388
    %v5390 = vsel %vm3570, %v5288, %v5389
    %v5391 = vsel %vm3566, %v5296, %v5292
    %v5392 = vsel %vm3568, %v5300, %v5391
    %v5393 = vsel %vm3570, %v5304, %v5392
    %v5394 = vsel %vm3566, %v5312, %v5308
    %v5395 = vsel %vm3568, %v5316, %v5394
    %v5396 = vsel %vm3570, %v5320, %v5395
    %v5397 = vsel %vm3566, %v5328, %v5324
    %v5398 = vsel %vm3568, %v5332, %v5397
    %v5399 = vsel %vm3570, %v5336, %v5398
    %v5400 = vsel %vm3566, %v5344, %v5340
    %v5401 = vsel %vm3568, %v5348, %v5400
    %v5402 = vsel %vm3570, %v5352, %v5401
    %v5403 = vsel %vm3566, %v5360, %v5356
    %v5404 = vsel %vm3568, %v5364, %v5403
    %v5405 = vsel %vm3570, %v5368, %v5404
    %v5406 = vsel %vm3566, %v5376, %v5372
    %v5407 = vsel %vm3568, %v5380, %v5406
    %v5408 = vsel %vm3570, %v5384, %v5407
    %v5409 = vrot.slane %v5387, 7
    %v5410 = vrot.slane %v5390, 7
    %v5411 = vrot.slane %v5393, 7
    %v5412 = vrot.slane %v5396, 7
    %v5413 = vrot.slane %v5399, 7
    %v5414 = vrot.slane %v5402, 7
    %v5415 = vrot.slane %v5405, 7
    %v5416 = vrot.slane %v5408, 7
    %v5425 = vsel %vm3720, 0.0, %v5409
    %v5426 = vsel %vm3720, 0.0, %v5410
    %v5427 = vsel %vm3720, 0.0, %v5411
    %v5428 = vsel %vm3720, 0.0, %v5412
    %v5429 = vsel %vm3720, 0.0, %v5413
    %v5430 = vsel %vm3720, 0.0, %v5414
    %v5431 = vsel %vm3720, 0.0, %v5415
    %v5432 = vsel %vm3720, 0.0, %v5416
    %vm5433 = vcmask 1044480
    %v5434 = vsel %vm5433, %v3721, 0.0
    %v5435 = vsel %vm5433, %v5425, 0.0
    %v5436 = vsel %vm5433, %v5426, 0.0
    %v5437 = vsel %vm5433, %v5427, 0.0
    %v5438 = vsel %vm5433, %v5428, 0.0
    %v5439 = vsel %vm5433, %v5429, 0.0
    %v5440 = vsel %vm5433, %v5430, 0.0
    %v5441 = vsel %vm5433, %v5431, 0.0
    %v5442 = vsel %vm5433, %v5432, 0.0
    %v5450 = vrot.slane %v5434, 1
    %v5451 = vrot.slane %v5435, 1
    %v5452 = vrot.slane %v5436, 1
    %v5453 = vrot.slane %v5437, 1
    %v5454 = vrot.slane %v5439, 1
    %v5455 = vrot.slane %v5440, 1
    %v5456 = vrot.slane %v5441, 1
    %5457 = vrot.lane.b32.xlu0 %v5450, 64
    %v5458 = vpop.permute.xlu0 %5457
    %5459 = vrot.lane.b32.xlu0 %v5451, 64
    %v5460 = vpop.permute.xlu0 %5459
    %5461 = vrot.lane.b32.xlu0 %v5452, 64
    %v5462 = vpop.permute.xlu0 %5461
    %5463 = vrot.lane.b32.xlu0 %v5453, 64
    %v5464 = vpop.permute.xlu0 %5463
    %5465 = vrot.lane.b32.xlu0 %v5454, 64
    %v5466 = vpop.permute.xlu0 %5465
    %5467 = vrot.lane.b32.xlu0 %v5455, 64
    %v5468 = vpop.permute.xlu0 %5467
    %5469 = vrot.lane.b32.xlu0 %v5456, 64
    %v5470 = vpop.permute.xlu0 %5469
    %v5478 = vrot.slane %v5434, 2
    %v5479 = vrot.slane %v5435, 2
    %v5480 = vrot.slane %v5436, 2
    %v5481 = vrot.slane %v5437, 2
    %v5482 = vrot.slane %v5439, 2
    %v5483 = vrot.slane %v5440, 2
    %v5484 = vrot.slane %v5441, 2
    %5494 = vrot.lane.b32.xlu0 %v5435, 64
    %v5495 = vpop.permute.xlu0 %5494
    %5496 = vrot.lane.b32.xlu0 %v5436, 64
    %v5497 = vpop.permute.xlu0 %5496
    %5498 = vrot.lane.b32.xlu0 %v5437, 64
    %v5499 = vpop.permute.xlu0 %5498
    %5500 = vrot.lane.b32.xlu0 %v5438, 64
    %v5501 = vpop.permute.xlu0 %5500
    %5502 = vrot.lane.b32.xlu0 %v5439, 64
    %v5503 = vpop.permute.xlu0 %5502
    %5504 = vrot.lane.b32.xlu0 %v5440, 64
    %v5505 = vpop.permute.xlu0 %5504
    %5506 = vrot.lane.b32.xlu0 %v5441, 64
    %v5507 = vpop.permute.xlu0 %5506
    %5508 = vrot.lane.b32.xlu0 %v5442, 64
    %v5509 = vpop.permute.xlu0 %5508
    %v5518 = vrot.slane %v5438, 1
    %v5519 = vrot.slane %v5442, 1
    %v5528 = vrot.slane %v5438, 2
    %v5529 = vrot.slane %v5442, 2
    %5530 = vrot.lane.b32.xlu0 %v5479, 64
    %v5531 = vpop.permute.xlu0 %5530
    %5532 = vrot.lane.b32.xlu0 %v5480, 64
    %v5533 = vpop.permute.xlu0 %5532
    %5534 = vrot.lane.b32.xlu0 %v5481, 64
    %v5535 = vpop.permute.xlu0 %5534
    %5536 = vrot.lane.b32.xlu0 %v5528, 64
    %v5537 = vpop.permute.xlu0 %5536
    %5538 = vrot.lane.b32.xlu0 %v5482, 64
    %v5539 = vpop.permute.xlu0 %5538
    %5540 = vrot.lane.b32.xlu0 %v5483, 64
    %v5541 = vpop.permute.xlu0 %5540
    %5542 = vrot.lane.b32.xlu0 %v5484, 64
    %v5543 = vpop.permute.xlu0 %5542
    %5544 = vrot.lane.b32.xlu0 %v5529, 64
    %v5545 = vpop.permute.xlu0 %5544
    %5554 = vrot.lane.b32.xlu0 %v5518, 64
    %v5555 = vpop.permute.xlu0 %5554
    %5556 = vrot.lane.b32.xlu0 %v5519, 64
    %v5557 = vpop.permute.xlu0 %5556
    %v5560 = vsel %vm4071, %v5434, %v5458
    %v5561 = vsel %vm4071, %v5435, %v5460
    %v5562 = vsel %vm4071, %v5436, %v5462
    %v5563 = vsel %vm4071, %v5437, %v5464
    %v5564 = vsel %vm4071, %v5439, %v5466
    %v5565 = vsel %vm4071, %v5440, %v5468
    %v5566 = vsel %vm4071, %v5441, %v5470
    %v5567 = vsel %vm4071, %v5478, %v5495
    %v5568 = vsel %vm4071, %v5479, %v5497
    %v5569 = vsel %vm4071, %v5480, %v5499
    %v5570 = vsel %vm4071, %v5481, %v5501
    %v5571 = vsel %vm4071, %v5478, %v5503
    %v5572 = vsel %vm4071, %v5482, %v5505
    %v5573 = vsel %vm4071, %v5483, %v5507
    %v5574 = vsel %vm4071, %v5484, %v5509
    %v5575 = vsel %vm4071, %v5451, %v5531
    %v5576 = vsel %vm4071, %v5452, %v5533
    %v5577 = vsel %vm4071, %v5453, %v5535
    %v5578 = vsel %vm4071, %v5518, %v5537
    %v5579 = vsel %vm4071, %v5454, %v5539
    %v5580 = vsel %vm4071, %v5455, %v5541
    %v5581 = vsel %vm4071, %v5456, %v5543
    %v5582 = vsel %vm4071, %v5519, %v5545
    %v5583 = vsel %vm4071, %v5438, %v5555
    %v5584 = vsel %vm4071, %v5442, %v5557
    %v5610 = vcombine.low %v5560, %v5567
    %v5611 = vcombine.low %v5575, %v5562
    %v5612 = vcombine.low %v5561, %v5568
    %v5613 = vcombine.low %v5576, %v5563
    %v5614 = vcombine.low %v5562, %v5569
    %v5615 = vcombine.low %v5577, %v5583
    %v5616 = vcombine.low %v5563, %v5570
    %v5617 = vcombine.low %v5578, %v5560
    %v5618 = vcombine.low %v5560, %v5571
    %v5619 = vcombine.low %v5579, %v5565
    %v5620 = vcombine.low %v5564, %v5572
    %v5621 = vcombine.low %v5580, %v5566
    %v5622 = vcombine.low %v5565, %v5573
    %v5623 = vcombine.low %v5581, %v5584
    %v5624 = vcombine.low %v5566, %v5574
    %v5625 = vcombine.low %v5582, %v5560
    %v5626 = vld [vmem:[%s5] sm:$0xff]
    %v5627 = vld [vmem:[%s5 + $0x8] sm:$0xff]
    %v5628 = vld [vmem:[%s5 + $0x10] sm:$0xff]
    %v5629 = vld [vmem:[%s5 + $0x18] sm:$0xff]
    %v5630 = vld [vmem:[%s5 + $0x20] sm:$0xff]
    %v5631 = vld [vmem:[%s5 + $0x28] sm:$0xff]
    %v5632 = vld [vmem:[%s5 + $0x30] sm:$0xff]
    %v5633 = vld [vmem:[%s5 + $0x38] sm:$0xff]
    %v5634 = vld [vmem:[%s5 + $0x40] sm:$0xff]
    %v5635 = vld [vmem:[%s5 + $0x48] sm:$0xff]
    %v5636 = vld [vmem:[%s5 + $0x50] sm:$0xff]
    %v5637 = vld [vmem:[%s5 + $0x58] sm:$0xff]
    %v5638 = vld [vmem:[%s5 + $0x60] sm:$0xff]
    %v5639 = vld [vmem:[%s5 + $0x68] sm:$0xff]
    %v5640 = vld [vmem:[%s5 + $0x70] sm:$0xff]
    %v5641 = vld [vmem:[%s5 + $0x78] sm:$0xff]
    %v5642 = vld [vmem:[%s5 + $0x80] sm:$0xff]
    %v5643 = vld [vmem:[%s5 + $0x88] sm:$0xff]
    %v5644 = vld [vmem:[%s5 + $0x90] sm:$0xff]
    %v5645 = vld [vmem:[%s5 + $0x98] sm:$0xff]
    %v5646 = vld [vmem:[%s5 + $0xa0] sm:$0xff]
    %v5647 = vld [vmem:[%s5 + $0xa8] sm:$0xff]
    %v5648 = vld [vmem:[%s5 + $0xb0] sm:$0xff]
    %v5649 = vld [vmem:[%s5 + $0xb8] sm:$0xff]
    %v5650 = vld [vmem:[%s5 + $0xc0] sm:$0xff]
    %v5651 = vld [vmem:[%s5 + $0xc8] sm:$0xff]
    %v5652 = vld [vmem:[%s5 + $0xd0] sm:$0xff]
    %v5653 = vld [vmem:[%s5 + $0xd8] sm:$0xff]
    %v5654 = vld [vmem:[%s5 + $0xe0] sm:$0xff]
    %v5655 = vld [vmem:[%s5 + $0xe8] sm:$0xff]
    %v5656 = vld [vmem:[%s5 + $0xf0] sm:$0xff]
    %v5657 = vld [vmem:[%s5 + $0xf8] sm:$0xff]
    %v5658 = vld [vmem:[%s5 + $0x100] sm:$0xff]
    %v5659 = vld [vmem:[%s5 + $0x108] sm:$0xff]
    %v5660 = vld [vmem:[%s5 + $0x110] sm:$0xff]
    %v5661 = vld [vmem:[%s5 + $0x118] sm:$0xff]
    %v5662 = vld [vmem:[%s5 + $0x120] sm:$0xff]
    %v5663 = vld [vmem:[%s5 + $0x128] sm:$0xff]
    %v5664 = vld [vmem:[%s5 + $0x130] sm:$0xff]
    %v5665 = vld [vmem:[%s5 + $0x138] sm:$0xff]
    %v5666 = vld [vmem:[%s5 + $0x140] sm:$0xff]
    %v5667 = vld [vmem:[%s5 + $0x148] sm:$0xff]
    %v5668 = vld [vmem:[%s5 + $0x150] sm:$0xff]
    %v5669 = vld [vmem:[%s5 + $0x158] sm:$0xff]
    %v5670 = vld [vmem:[%s5 + $0x160] sm:$0xff]
    %v5671 = vld [vmem:[%s5 + $0x168] sm:$0xff]
    %v5672 = vld [vmem:[%s5 + $0x170] sm:$0xff]
    %v5673 = vld [vmem:[%s5 + $0x178] sm:$0xff]
    %v5674 = vld [vmem:[%s5 + $0x180] sm:$0xff]
    %v5675 = vld [vmem:[%s5 + $0x188] sm:$0xff]
    %v5676 = vld [vmem:[%s5 + $0x190] sm:$0xff]
    %v5677 = vld [vmem:[%s5 + $0x198] sm:$0xff]
    %v5678 = vld [vmem:[%s5 + $0x1a0] sm:$0xff]
    %v5679 = vld [vmem:[%s5 + $0x1a8] sm:$0xff]
    %v5680 = vld [vmem:[%s5 + $0x1b0] sm:$0xff]
    %v5681 = vld [vmem:[%s5 + $0x1b8] sm:$0xff]
    %v5682 = vld [vmem:[%s5 + $0x1c0] sm:$0xff]
    %v5683 = vld [vmem:[%s5 + $0x1c8] sm:$0xff]
    %v5684 = vld [vmem:[%s5 + $0x1d0] sm:$0xff]
    %v5685 = vld [vmem:[%s5 + $0x1d8] sm:$0xff]
    %v5686 = vld [vmem:[%s5 + $0x1e0] sm:$0xff]
    %v5687 = vld [vmem:[%s5 + $0x1e8] sm:$0xff]
    %v5688 = vld [vmem:[%s5 + $0x1f0] sm:$0xff]
    %v5689 = vld [vmem:[%s5 + $0x1f8] sm:$0xff]
    %v5690 = vld [vmem:[%s5 + $0x200] sm:$0xff]
    %v5691 = vld [vmem:[%s5 + $0x208] sm:$0xff]
    %v5692 = vld [vmem:[%s5 + $0x210] sm:$0xff]
    %v5693 = vld [vmem:[%s5 + $0x218] sm:$0xff]
    %v5694 = vld [vmem:[%s5 + $0x220] sm:$0xff]
    %v5695 = vld [vmem:[%s5 + $0x228] sm:$0xff]
    %v5696 = vld [vmem:[%s5 + $0x230] sm:$0xff]
    %v5697 = vld [vmem:[%s5 + $0x238] sm:$0xff]
    %v5698 = vld [vmem:[%s6] sm:$0x1]
    %v5700 = vlaneseq
    %v5701 = vshrl.u32 %v5700, 7
    %v5702 = vsub.s32 0, %v5701
    %v5703 = vrot.slane %v5698, %v5702
    %v5705 = vcombine.low %v5610, %v5612
    %v5706 = vcombine.high %v5610, %v5612
    %v5707 = vcombine.low %v5611, %v5613
    %v5708 = vcombine.high %v5611, %v5613
    %v5709 = vcombine.low %v5480, %v5481
    %v5710 = vcombine.low %v5614, %v5616
    %v5711 = vcombine.high %v5614, %v5616
    %v5712 = vcombine.low %v5615, %v5617
    %v5713 = vcombine.high %v5615, %v5617
    %v5714 = vcombine.low %v5528, %v5478
    %v5715 = vcombine.low %v5618, %v5620
    %v5716 = vcombine.high %v5618, %v5620
    %v5717 = vcombine.low %v5619, %v5621
    %v5718 = vcombine.high %v5619, %v5621
    %v5719 = vcombine.low %v5483, %v5484
    %v5720 = vcombine.low %v5622, %v5624
    %v5721 = vcombine.high %v5622, %v5624
    %v5722 = vcombine.low %v5623, %v5625
    %v5723 = vcombine.high %v5623, %v5625
    %v5724 = vcombine.low %v5529, %v5478
    %v5741 = vsel %vm4071, %v5709, 0
    %v5743 = vsel %vm4071, %v5714, 0
    %v5745 = vsel %vm4071, %v5719, 0
    %v5747 = vsel %vm4071, %v5724, 0
    %5749 = vmatprep.subr.mxu0 0.0
    %5750 = vmatpush1.msra.mxu0 %v5626
    %5751 = vmatprep.subr.mxu0 0.0
    %5752 = vmatpush1.msra.mxu0 %v5627
    %5753 = vmatprep.subr.mxu0 0.0
    %5754 = vmatpush1.msra.mxu0 %v5628
    %5755 = vmatprep.subr.mxu0 0.0
    %5756 = vmatpush1.msra.mxu0 %v5629
    %5757 = vmatprep.subr.mxu0 0.0
    %5758 = vmatpush1.msra.mxu0 %v5630
    %5759 = vmatprep.subr.mxu0 0.0
    %5760 = vmatpush1.msra.mxu0 %v5631
    %5761 = vmatprep.subr.mxu0 0.0
    %5762 = vmatpush1.msra.mxu0 %v5632
    %5763 = vmatprep.subr.mxu0 0.0
    %5764 = vmatpush1.msra.mxu0 %v5633
    %5765 = vmatprep.subr.mxu0 0.0
    %5766 = vmatpush1.msra.mxu0 %v5634
    %5767 = vmatprep.subr.mxu0 0.0
    %5768 = vmatpush1.msra.mxu0 %v5635
    %5769 = vmatprep.subr.mxu0 0.0
    %5770 = vmatpush1.msra.mxu0 %v5636
    %5771 = vmatprep.subr.mxu0 0.0
    %5772 = vmatpush1.msra.mxu0 %v5637
    %5773 = vmatprep.subr.mxu0 0.0
    %5774 = vmatpush1.msra.mxu0 %v5638
    %5775 = vmatprep.subr.mxu0 0.0
    %5776 = vmatpush1.msra.mxu0 %v5639
    %5777 = vmatprep.subr.mxu0 0.0
    %5778 = vmatpush1.msra.mxu0 %v5640
    %5779 = vmatprep.subr.mxu0 0.0
    %5780 = vmatpush1.msra.mxu0 %v5641
    %5781 = vmatprep.subr.mxu0 0.0
    %5782 = vmatpush1.msra.mxu0 %v5642
    %5783 = vmatprep.subr.mxu0 0.0
    %5784 = vmatpush1.msra.mxu0 %v5643
    %5785 = vmatprep.subr.mxu0 0.0
    %5786 = vmatpush1.msra.mxu0 %v5644
    %5787 = vmatprep.subr.mxu0 0.0
    %5788 = vmatpush1.msra.mxu0 %v5645
    %5789 = vmatprep.subr.mxu0 0.0
    %5790 = vmatpush1.msra.mxu0 %v5646
    %5791 = vmatprep.subr.mxu0 0.0
    %5792 = vmatpush1.msra.mxu0 %v5647
    %5793 = vmatprep.subr.mxu0 0.0
    %5794 = vmatpush1.msra.mxu0 %v5648
    %5795 = vmatprep.subr.mxu0 0.0
    %5796 = vmatpush1.msra.mxu0 %v5649
    %5797 = vmatprep.subr.mxu0 0.0
    %5798 = vmatpush1.msra.mxu0 %v5650
    %5799 = vmatprep.subr.mxu0 0.0
    %5800 = vmatpush1.msra.mxu0 %v5651
    %5801 = vmatprep.subr.mxu0 0.0
    %5802 = vmatpush1.msra.mxu0 %v5652
    %5803 = vmatprep.subr.mxu0 0.0
    %5804 = vmatpush1.msra.mxu0 %v5653
    %5805 = vmatprep.subr.mxu0 0.0
    %5806 = vmatpush1.msra.mxu0 %v5654
    %5807 = vmatprep.subr.mxu0 0.0
    %5808 = vmatpush1.msra.mxu0 %v5655
    %5809 = vmatprep.subr.mxu0 0.0
    %5810 = vmatpush1.msra.mxu0 %v5656
    %5811 = vmatprep.subr.mxu0 0.0
    %5812 = vmatpush1.msra.mxu0 %v5657
    %5813 = vmatprep.mubr.f32.mxu0 %v5706
    %5814 = vmatmul.mubr.f32.gmra.mrb[0].mxu0 %v5705
    %v5815 = vpop.f32.mrb[0].mxu0
    %v5816 = vadd.f32 %v5703, %v5815
    %v5817 = vpop.f32.mrb[0].mxu0
    %5818 = vmatprep.mubr.f32.mxu0 %v5711
    %5819 = vmatmul.mubr.f32.gmra.mrb[0].mxu0 %v5710
    %v5820 = vpop.f32.mrb[0].mxu0
    %v5821 = vadd.f32 %v5703, %v5820
    %v5822 = vpop.f32.mrb[0].mxu0
    %5823 = vmatprep.mubr.f32.mxu0 %v5716
    %5824 = vmatmul.mubr.f32.gmra.mrb[0].mxu0 %v5715
    %v5825 = vpop.f32.mrb[0].mxu0
    %v5826 = vadd.f32 %v5703, %v5825
    %v5827 = vpop.f32.mrb[0].mxu0
    %5828 = vmatprep.mubr.f32.mxu0 %v5721
    %5829 = vmatmul.mubr.f32.gmra.mrb[0].mxu0 %v5720
    %v5830 = vpop.f32.mrb[0].mxu0
    %v5831 = vadd.f32 %v5703, %v5830
    %v5832 = vpop.f32.mrb[0].mxu0
    %5833 = vdwg.mxu0
    %5834 = vmatprep.subr.mxu0 0.0
    %5835 = vmatpush1.msra.mxu0 %v5658
    %5836 = vmatprep.subr.mxu0 0.0
    %5837 = vmatpush1.msra.mxu0 %v5659
    %5838 = vmatprep.subr.mxu0 0.0
    %5839 = vmatpush1.msra.mxu0 %v5660
    %5840 = vmatprep.subr.mxu0 0.0
    %5841 = vmatpush1.msra.mxu0 %v5661
    %5842 = vmatprep.subr.mxu0 0.0
    %5843 = vmatpush1.msra.mxu0 %v5662
    %5844 = vmatprep.subr.mxu0 0.0
    %5845 = vmatpush1.msra.mxu0 %v5663
    %5846 = vmatprep.subr.mxu0 0.0
    %5847 = vmatpush1.msra.mxu0 %v5664
    %5848 = vmatprep.subr.mxu0 0.0
    %5849 = vmatpush1.msra.mxu0 %v5665
    %5850 = vmatprep.subr.mxu0 0.0
    %5851 = vmatpush1.msra.mxu0 %v5666
    %5852 = vmatprep.subr.mxu0 0.0
    %5853 = vmatpush1.msra.mxu0 %v5667
    %5854 = vmatprep.subr.mxu0 0.0
    %5855 = vmatpush1.msra.mxu0 %v5668
    %5856 = vmatprep.subr.mxu0 0.0
    %5857 = vmatpush1.msra.mxu0 %v5669
    %5858 = vmatprep.subr.mxu0 0.0
    %5859 = vmatpush1.msra.mxu0 %v5670
    %5860 = vmatprep.subr.mxu0 0.0
    %5861 = vmatpush1.msra.mxu0 %v5671
    %5862 = vmatprep.subr.mxu0 0.0
    %5863 = vmatpush1.msra.mxu0 %v5672
    %5864 = vmatprep.subr.mxu0 0.0
    %5865 = vmatpush1.msra.mxu0 %v5673
    %5866 = vmatprep.subr.mxu0 0.0
    %5867 = vmatpush1.msra.mxu0 %v5674
    %5868 = vmatprep.subr.mxu0 0.0
    %5869 = vmatpush1.msra.mxu0 %v5675
    %5870 = vmatprep.subr.mxu0 0.0
    %5871 = vmatpush1.msra.mxu0 %v5676
    %5872 = vmatprep.subr.mxu0 0.0
    %5873 = vmatpush1.msra.mxu0 %v5677
    %5874 = vmatprep.subr.mxu0 0.0
    %5875 = vmatpush1.msra.mxu0 %v5678
    %5876 = vmatprep.subr.mxu0 0.0
    %5877 = vmatpush1.msra.mxu0 %v5679
    %5878 = vmatprep.subr.mxu0 0.0
    %5879 = vmatpush1.msra.mxu0 %v5680
    %5880 = vmatprep.subr.mxu0 0.0
    %5881 = vmatpush1.msra.mxu0 %v5681
    %5882 = vmatprep.subr.mxu0 0.0
    %5883 = vmatpush1.msra.mxu0 %v5682
    %5884 = vmatprep.subr.mxu0 0.0
    %5885 = vmatpush1.msra.mxu0 %v5683
    %5886 = vmatprep.subr.mxu0 0.0
    %5887 = vmatpush1.msra.mxu0 %v5684
    %5888 = vmatprep.subr.mxu0 0.0
    %5889 = vmatpush1.msra.mxu0 %v5685
    %5890 = vmatprep.subr.mxu0 0.0
    %5891 = vmatpush1.msra.mxu0 %v5686
    %5892 = vmatprep.subr.mxu0 0.0
    %5893 = vmatpush1.msra.mxu0 %v5687
    %5894 = vmatprep.subr.mxu0 0.0
    %5895 = vmatpush1.msra.mxu0 %v5688
    %5896 = vmatprep.subr.mxu0 0.0
    %5897 = vmatpush1.msra.mxu0 %v5689
    %5898 = vmatprep.mubr.f32.mxu0 %v5708
    %5899 = vmatmul.mubr.f32.gmra.mrb[0].mxu0 %v5707
    %v5900 = vpop.f32.mrb[0].mxu0
    %v5901 = vadd.f32 %v5816, %v5900
    %v5902 = vpop.f32.mrb[0].mxu0
    %5903 = vmatprep.mubr.f32.mxu0 %v5713
    %5904 = vmatmul.mubr.f32.gmra.mrb[0].mxu0 %v5712
    %v5905 = vpop.f32.mrb[0].mxu0
    %v5906 = vadd.f32 %v5821, %v5905
    %v5907 = vpop.f32.mrb[0].mxu0
    %5908 = vmatprep.mubr.f32.mxu0 %v5718
    %5909 = vmatmul.mubr.f32.gmra.mrb[0].mxu0 %v5717
    %v5910 = vpop.f32.mrb[0].mxu0
    %v5911 = vadd.f32 %v5826, %v5910
    %v5912 = vpop.f32.mrb[0].mxu0
    %5913 = vmatprep.mubr.f32.mxu0 %v5723
    %5914 = vmatmul.mubr.f32.gmra.mrb[0].mxu0 %v5722
    %v5915 = vpop.f32.mrb[0].mxu0
    %v5916 = vadd.f32 %v5831, %v5915
    %v5917 = vpop.f32.mrb[0].mxu0
    %5918 = vdwg.mxu0
    %5919 = vmatprep.subr.mxu0 0.0
    %5920 = vmatpush1.msra.mxu0 %v5690
    %5921 = vmatprep.subr.mxu0 0.0
    %5922 = vmatpush1.msra.mxu0 %v5691
    %5923 = vmatprep.subr.mxu0 0.0
    %5924 = vmatpush1.msra.mxu0 %v5692
    %5925 = vmatprep.subr.mxu0 0.0
    %5926 = vmatpush1.msra.mxu0 %v5693
    %5927 = vmatprep.subr.mxu0 0.0
    %5928 = vmatpush1.msra.mxu0 %v5694
    %5929 = vmatprep.subr.mxu0 0.0
    %5930 = vmatpush1.msra.mxu0 %v5695
    %5931 = vmatprep.subr.mxu0 0.0
    %5932 = vmatpush1.msra.mxu0 %v5696
    %5933 = vmatprep.subr.mxu0 0.0
    %5934 = vmatpush1.msra.mxu0 %v5697
    %5935 = vmatprep.subr.mxu0 0.0
    %5936 = vmatpush1.msra.mxu0 0.0
    %5937 = vmatprep.subr.mxu0 0.0
    %5938 = vmatpush1.msra.mxu0 0.0
    %5939 = vmatprep.subr.mxu0 0.0
    %5940 = vmatpush1.msra.mxu0 0.0
    %5941 = vmatprep.subr.mxu0 0.0
    %5942 = vmatpush1.msra.mxu0 0.0
    %5943 = vmatprep.subr.mxu0 0.0
    %5944 = vmatpush1.msra.mxu0 0.0
    %5945 = vmatprep.subr.mxu0 0.0
    %5946 = vmatpush1.msra.mxu0 0.0
    %5947 = vmatprep.subr.mxu0 0.0
    %5948 = vmatpush1.msra.mxu0 0.0
    %5949 = vmatprep.subr.mxu0 0.0
    %5950 = vmatpush1.msra.mxu0 0.0
    %5951 = vmatprep.subr.mxu0 0.0
    %5952 = vmatpush1.msra.mxu0 0.0
    %5953 = vmatprep.subr.mxu0 0.0
    %5954 = vmatpush1.msra.mxu0 0.0
    %5955 = vmatprep.subr.mxu0 0.0
    %5956 = vmatpush1.msra.mxu0 0.0
    %5957 = vmatprep.subr.mxu0 0.0
    %5958 = vmatpush1.msra.mxu0 0.0
    %5959 = vmatprep.subr.mxu0 0.0
    %5960 = vmatpush1.msra.mxu0 0.0
    %5961 = vmatprep.subr.mxu0 0.0
    %5962 = vmatpush1.msra.mxu0 0.0
    %5963 = vmatprep.subr.mxu0 0.0
    %5964 = vmatpush1.msra.mxu0 0.0
    %5965 = vmatprep.subr.mxu0 0.0
    %5966 = vmatpush1.msra.mxu0 0.0
    %5967 = vmatprep.subr.mxu0 0.0
    %5968 = vmatpush1.msra.mxu0 0.0
    %5969 = vmatprep.subr.mxu0 0.0
    %5970 = vmatpush1.msra.mxu0 0.0
    %5971 = vmatprep.subr.mxu0 0.0
    %5972 = vmatpush1.msra.mxu0 0.0
    %5973 = vmatprep.subr.mxu0 0.0
    %5974 = vmatpush1.msra.mxu0 0.0
    %5975 = vmatprep.subr.mxu0 0.0
    %5976 = vmatpush1.msra.mxu0 0.0
    %5977 = vmatprep.subr.mxu0 0.0
    %5978 = vmatpush1.msra.mxu0 0.0
    %5979 = vmatprep.subr.mxu0 0.0
    %5980 = vmatpush1.msra.mxu0 0.0
    %5981 = vmatprep.subr.mxu0 0.0
    %5982 = vmatpush1.msra.mxu0 0.0
    %5983 = vmatprep.mubr.f32.mxu0 0.0
    %5984 = vmatmul.mubr.f32.gmra.mrb[0].mxu0 %v5741
    %v5985 = vpop.f32.mrb[0].mxu0
    %v5986 = vadd.f32 %v5901, %v5985
    %v5987 = vpop.f32.mrb[0].mxu0
    %5988 = vmatprep.mubr.f32.mxu0 0.0
    %5989 = vmatmul.mubr.f32.gmra.mrb[0].mxu0 %v5743
    %v5990 = vpop.f32.mrb[0].mxu0
    %v5991 = vadd.f32 %v5906, %v5990
    %v5992 = vpop.f32.mrb[0].mxu0
    %5993 = vmatprep.mubr.f32.mxu0 0.0
    %5994 = vmatmul.mubr.f32.gmra.mrb[0].mxu0 %v5745
    %v5995 = vpop.f32.mrb[0].mxu0
    %v5996 = vadd.f32 %v5911, %v5995
    %v5997 = vpop.f32.mrb[0].mxu0
    %5998 = vmatprep.mubr.f32.mxu0 0.0
    %5999 = vmatmul.mubr.f32.gmra.mrb[0].mxu0 %v5747
    %v6000 = vpop.f32.mrb[0].mxu0
    %v6001 = vadd.f32 %v5916, %v6000
    %v6002 = vpop.f32.mrb[0].mxu0
    %6003 = vdwg.mxu0
    %v6004 = vmax.f32 %v5986, 0.0
    %v6005 = vmax.f32 %v5991, 0.0
    %v6006 = vmax.f32 %v5996, 0.0
    %v6007 = vmax.f32 %v6001, 0.0
    %v6012 = vcombine.high %v6004, %v6004
    %v6014 = vunpack.c.l.s4 1983009808
    %v6015 = vunpack.c.0.s8 %v6014
    %v6016 = vlaneseq
    %v6017 = vshrl.u32 %v6016, 7
    %v6018 = vsub.s32 %v6015, %v6017
    %v6019 = vrot.slane %v6004, %v6018
    %v6021 = vunpack.c.l.s4 1983009808
    %v6022 = vunpack.c.0.s8 %v6021
    %v6023 = vlaneseq
    %v6024 = vshrl.u32 %v6023, 7
    %v6025 = vsub.s32 %v6022, %v6024
    %v6026 = vrot.slane %v6012, %v6025
    %v6027 = vcombine.high %v6019, %v6019
    %v6028 = vcombine.high %v6026, %v6026
    %v6029 = vcombine.high %v6005, %v6005
    %v6031 = vunpack.c.l.s4 1983009808
    %v6032 = vunpack.c.0.s8 %v6031
    %v6033 = vlaneseq
    %v6034 = vshrl.u32 %v6033, 7
    %v6035 = vsub.s32 %v6032, %v6034
    %v6036 = vrot.slane %v6005, %v6035
    %v6038 = vunpack.c.l.s4 1983009808
    %v6039 = vunpack.c.0.s8 %v6038
    %v6040 = vlaneseq
    %v6041 = vshrl.u32 %v6040, 7
    %v6042 = vsub.s32 %v6039, %v6041
    %v6043 = vrot.slane %v6029, %v6042
    %v6044 = vcombine.high %v6036, %v6036
    %v6045 = vcombine.high %v6043, %v6043
    %v6046 = vcombine.high %v6006, %v6006
    %v6048 = vunpack.c.l.s4 1983009808
    %v6049 = vunpack.c.0.s8 %v6048
    %v6050 = vlaneseq
    %v6051 = vshrl.u32 %v6050, 7
    %v6052 = vsub.s32 %v6049, %v6051
    %v6053 = vrot.slane %v6006, %v6052
    %v6055 = vunpack.c.l.s4 1983009808
    %v6056 = vunpack.c.0.s8 %v6055
    %v6057 = vlaneseq
    %v6058 = vshrl.u32 %v6057, 7
    %v6059 = vsub.s32 %v6056, %v6058
    %v6060 = vrot.slane %v6046, %v6059
    %v6061 = vcombine.high %v6053, %v6053
    %v6062 = vcombine.high %v6060, %v6060
    %v6063 = vcombine.high %v6007, %v6007
    %v6065 = vunpack.c.l.s4 1983009808
    %v6066 = vunpack.c.0.s8 %v6065
    %v6067 = vlaneseq
    %v6068 = vshrl.u32 %v6067, 7
    %v6069 = vsub.s32 %v6066, %v6068
    %v6070 = vrot.slane %v6007, %v6069
    %v6072 = vunpack.c.l.s4 1983009808
    %v6073 = vunpack.c.0.s8 %v6072
    %v6074 = vlaneseq
    %v6075 = vshrl.u32 %v6074, 7
    %v6076 = vsub.s32 %v6073, %v6075
    %v6077 = vrot.slane %v6063, %v6076
    %v6078 = vcombine.high %v6070, %v6070
    %v6079 = vcombine.high %v6077, %v6077
    %v6096 = vmax.f32 %v6019, %v6026
    %v6097 = vmax.f32 %v6027, %v6028
    %v6098 = vmax.f32 %v6036, %v6043
    %v6099 = vmax.f32 %v6044, %v6045
    %v6100 = vmax.f32 %v6053, %v6060
    %v6101 = vmax.f32 %v6061, %v6062
    %v6102 = vmax.f32 %v6070, %v6077
    %v6103 = vmax.f32 %v6078, %v6079
    %v6112 = vrot.slane %v6096, 7
    %v6113 = vrot.slane %v6112, 2
    %v6114 = vrot.slane %v6097, 7
    %v6115 = vrot.slane %v6114, 2
    %v6116 = vrot.slane %v6098, 7
    %v6117 = vrot.slane %v6116, 2
    %v6118 = vrot.slane %v6099, 7
    %v6119 = vrot.slane %v6118, 2
    %v6120 = vrot.slane %v6100, 7
    %v6121 = vrot.slane %v6120, 2
    %v6122 = vrot.slane %v6101, 7
    %v6123 = vrot.slane %v6122, 2
    %v6124 = vrot.slane %v6102, 7
    %v6125 = vrot.slane %v6124, 2
    %v6126 = vrot.slane %v6103, 7
    %v6127 = vrot.slane %v6126, 2
    %v6136 = vmax.f32 %v6096, %v6113
    %v6137 = vmax.f32 %v6097, %v6115
    %v6138 = vmax.f32 %v6098, %v6117
    %v6139 = vmax.f32 %v6099, %v6119
    %v6140 = vmax.f32 %v6100, %v6121
    %v6141 = vmax.f32 %v6101, %v6123
    %v6142 = vmax.f32 %v6102, %v6125
    %v6143 = vmax.f32 %v6103, %v6127
    %v6152 = vlaneseq
    %v6153 = vshrl.u32 %v6152, 7
    %v6154 = vsub.s32 0, %v6153
    %v6155 = vrot.slane %v6136, %v6154
    %v6156 = vlaneseq
    %v6157 = vshrl.u32 %v6156, 7
    %v6158 = vsub.s32 0, %v6157
    %v6159 = vrot.slane %v6137, %v6158
    %v6160 = vlaneseq
    %v6161 = vshrl.u32 %v6160, 7
    %v6162 = vsub.s32 0, %v6161
    %v6163 = vrot.slane %v6138, %v6162
    %v6164 = vlaneseq
    %v6165 = vshrl.u32 %v6164, 7
    %v6166 = vsub.s32 0, %v6165
    %v6167 = vrot.slane %v6139, %v6166
    %v6168 = vlaneseq
    %v6169 = vshrl.u32 %v6168, 7
    %v6170 = vsub.s32 0, %v6169
    %v6171 = vrot.slane %v6140, %v6170
    %v6172 = vlaneseq
    %v6173 = vshrl.u32 %v6172, 7
    %v6174 = vsub.s32 0, %v6173
    %v6175 = vrot.slane %v6141, %v6174
    %v6176 = vlaneseq
    %v6177 = vshrl.u32 %v6176, 7
    %v6178 = vsub.s32 0, %v6177
    %v6179 = vrot.slane %v6142, %v6178
    %v6180 = vlaneseq
    %v6181 = vshrl.u32 %v6180, 7
    %v6182 = vsub.s32 0, %v6181
    %v6183 = vrot.slane %v6143, %v6182
    %v6184 = vsel %vm3566, %v6159, %v6155
    %v6185 = vsel %vm3566, %v6167, %v6163
    %v6186 = vsel %vm3566, %v6175, %v6171
    %v6187 = vsel %vm3566, %v6183, %v6179
    %v6188 = vrot.slane %v6184, 7
    %v6189 = vrot.slane %v6185, 7
    %v6190 = vrot.slane %v6186, 7
    %v6191 = vrot.slane %v6187, 7
    %v6196 = vsel %vm3720, 0.0, %v6188
    %v6197 = vsel %vm3720, 0.0, %v6189
    %v6198 = vsel %vm3720, 0.0, %v6190
    %v6199 = vsel %vm3720, 0.0, %v6191
    %vm6200 = vcmask 1042432
    %v6201 = vsel %vm6200, %v3721, 0.0
    %v6202 = vsel %vm6200, %v6196, 0.0
    %v6203 = vsel %vm6200, %v6197, 0.0
    %v6204 = vsel %vm6200, %v6198, 0.0
    %v6205 = vsel %vm6200, %v6199, 0.0
    %v6209 = vrot.slane %v6201, 1
    %v6210 = vrot.slane %v6202, 1
    %v6211 = vrot.slane %v6204, 1
    %6212 = vrot.lane.b32.xlu0 %v6209, 64
    %v6213 = vpop.permute.xlu0 %6212
    %6214 = vrot.lane.b32.xlu0 %v6210, 64
    %v6215 = vpop.permute.xlu0 %6214
    %6216 = vrot.lane.b32.xlu0 %v6211, 64
    %v6217 = vpop.permute.xlu0 %6216
    %v6221 = vrot.slane %v6201, 2
    %v6222 = vrot.slane %v6202, 2
    %v6223 = vrot.slane %v6204, 2
    %6229 = vrot.lane.b32.xlu0 %v6202, 64
    %v6230 = vpop.permute.xlu0 %6229
    %6231 = vrot.lane.b32.xlu0 %v6203, 64
    %v6232 = vpop.permute.xlu0 %6231
    %6233 = vrot.lane.b32.xlu0 %v6204, 64
    %v6234 = vpop.permute.xlu0 %6233
    %6235 = vrot.lane.b32.xlu0 %v6205, 64
    %v6236 = vpop.permute.xlu0 %6235
    %v6241 = vrot.slane %v6203, 1
    %v6242 = vrot.slane %v6205, 1
    %v6247 = vrot.slane %v6203, 2
    %v6248 = vrot.slane %v6205, 2
    %6249 = vrot.lane.b32.xlu0 %v6222, 64
    %v6250 = vpop.permute.xlu0 %6249
    %6251 = vrot.lane.b32.xlu0 %v6247, 64
    %v6252 = vpop.permute.xlu0 %6251
    %6253 = vrot.lane.b32.xlu0 %v6223, 64
    %v6254 = vpop.permute.xlu0 %6253
    %6255 = vrot.lane.b32.xlu0 %v6248, 64
    %v6256 = vpop.permute.xlu0 %6255
    %6261 = vrot.lane.b32.xlu0 %v6241, 64
    %v6262 = vpop.permute.xlu0 %6261
    %6263 = vrot.lane.b32.xlu0 %v6242, 64
    %v6264 = vpop.permute.xlu0 %6263
    %v6267 = vsel %vm4071, %v6201, %v6213
    %v6268 = vsel %vm4071, %v6202, %v6215
    %v6269 = vsel %vm4071, %v6204, %v6217
    %v6270 = vsel %vm4071, %v6221, %v6230
    %v6271 = vsel %vm4071, %v6222, %v6232
    %v6272 = vsel %vm4071, %v6221, %v6234
    %v6273 = vsel %vm4071, %v6223, %v6236
    %v6274 = vsel %vm4071, %v6210, %v6250
    %v6275 = vsel %vm4071, %v6241, %v6252
    %v6276 = vsel %vm4071, %v6211, %v6254
    %v6277 = vsel %vm4071, %v6242, %v6256
    %v6278 = vsel %vm4071, %v6203, %v6262
    %v6279 = vsel %vm4071, %v6205, %v6264
    %v6293 = vcombine.low %v6267, %v6270
    %v6294 = vcombine.low %v6274, %v6278
    %v6296 = vunpack.c.l.s4 1983009808
    %v6297 = vunpack.c.0.s8 %v6296
    %v6298 = vlaneseq
    %v6299 = vshrl.u32 %v6298, 7
    %v6300 = vsub.s32 %v6297, %v6299
    %v6301 = vrot.slane %v6293, %v6300
    %v6303 = vunpack.c.l.s4 1983009808
    %v6304 = vunpack.c.0.s8 %v6303
    %v6305 = vlaneseq
    %v6306 = vshrl.u32 %v6305, 7
    %v6307 = vsub.s32 %v6304, %v6306
    %v6308 = vrot.slane %v6294, %v6307
    %v6309 = vcombine.low %v6301, %v6308
    %v6311 = vunpack.c.l.s4 1983009808
    %v6312 = vunpack.c.0.s8 %v6311
    %v6313 = vlaneseq
    %v6314 = vshrl.u32 %v6313, 7
    %v6315 = vsub.s32 %v6312, %v6314
    %v6316 = vrot.slane %v6247, %v6315
    %v6317 = vcombine.low %v6268, %v6271
    %v6318 = vcombine.low %v6275, %v6267
    %v6320 = vunpack.c.l.s4 1983009808
    %v6321 = vunpack.c.0.s8 %v6320
    %v6322 = vlaneseq
    %v6323 = vshrl.u32 %v6322, 7
    %v6324 = vsub.s32 %v6321, %v6323
    %v6325 = vrot.slane %v6317, %v6324
    %v6327 = vunpack.c.l.s4 1983009808
    %v6328 = vunpack.c.0.s8 %v6327
    %v6329 = vlaneseq
    %v6330 = vshrl.u32 %v6329, 7
    %v6331 = vsub.s32 %v6328, %v6330
    %v6332 = vrot.slane %v6318, %v6331
    %v6333 = vcombine.low %v6325, %v6332
    %v6335 = vunpack.c.l.s4 1983009808
    %v6336 = vunpack.c.0.s8 %v6335
    %v6337 = vlaneseq
    %v6338 = vshrl.u32 %v6337, 7
    %v6339 = vsub.s32 %v6336, %v6338
    %v6340 = vrot.slane %v6221, %v6339
    %v6341 = vcombine.low %v6267, %v6272
    %v6342 = vcombine.low %v6276, %v6279
    %v6344 = vunpack.c.l.s4 1983009808
    %v6345 = vunpack.c.0.s8 %v6344
    %v6346 = vlaneseq
    %v6347 = vshrl.u32 %v6346, 7
    %v6348 = vsub.s32 %v6345, %v6347
    %v6349 = vrot.slane %v6341, %v6348
    %v6351 = vunpack.c.l.s4 1983009808
    %v6352 = vunpack.c.0.s8 %v6351
    %v6353 = vlaneseq
    %v6354 = vshrl.u32 %v6353, 7
    %v6355 = vsub.s32 %v6352, %v6354
    %v6356 = vrot.slane %v6342, %v6355
    %v6357 = vcombine.low %v6349, %v6356
    %v6359 = vunpack.c.l.s4 1983009808
    %v6360 = vunpack.c.0.s8 %v6359
    %v6361 = vlaneseq
    %v6362 = vshrl.u32 %v6361, 7
    %v6363 = vsub.s32 %v6360, %v6362
    %v6364 = vrot.slane %v6248, %v6363
    %v6365 = vcombine.low %v6269, %v6273
    %v6366 = vcombine.low %v6277, %v6267
    %v6368 = vunpack.c.l.s4 1983009808
    %v6369 = vunpack.c.0.s8 %v6368
    %v6370 = vlaneseq
    %v6371 = vshrl.u32 %v6370, 7
    %v6372 = vsub.s32 %v6369, %v6371
    %v6373 = vrot.slane %v6365, %v6372
    %v6375 = vunpack.c.l.s4 1983009808
    %v6376 = vunpack.c.0.s8 %v6375
    %v6377 = vlaneseq
    %v6378 = vshrl.u32 %v6377, 7
    %v6379 = vsub.s32 %v6376, %v6378
    %v6380 = vrot.slane %v6366, %v6379
    %v6381 = vcombine.low %v6373, %v6380
    %v6382 = vld [vmem:[%s7] sm:$0xff]
    %v6383 = vld [vmem:[%s7 + $0x8] sm:$0xff]
    %v6384 = vld [vmem:[%s7 + $0x10] sm:$0xff]
    %v6385 = vld [vmem:[%s7 + $0x18] sm:$0xff]
    %v6386 = vld [vmem:[%s7 + $0x20] sm:$0xff]
    %v6387 = vld [vmem:[%s7 + $0x28] sm:$0xff]
    %v6388 = vld [vmem:[%s7 + $0x30] sm:$0xff]
    %v6389 = vld [vmem:[%s7 + $0x38] sm:$0xff]
    %v6390 = vld [vmem:[%s7 + $0x40] sm:$0xff]
    %v6391 = vld [vmem:[%s7 + $0x48] sm:$0xff]
    %v6392 = vld [vmem:[%s7 + $0x50] sm:$0xff]
    %v6393 = vld [vmem:[%s7 + $0x58] sm:$0xff]
    %v6394 = vld [vmem:[%s7 + $0x60] sm:$0xff]
    %v6395 = vld [vmem:[%s7 + $0x68] sm:$0xff]
    %v6396 = vld [vmem:[%s7 + $0x70] sm:$0xff]
    %v6397 = vld [vmem:[%s7 + $0x78] sm:$0xff]
    %v6398 = vld [vmem:[%s7 + $0x80] sm:$0xff]
    %v6399 = vld [vmem:[%s7 + $0x88] sm:$0xff]
    %v6400 = vld [vmem:[%s7 + $0x90] sm:$0xff]
    %v6401 = vld [vmem:[%s7 + $0x98] sm:$0xff]
    %v6402 = vld [vmem:[%s7 + $0xa0] sm:$0xff]
    %v6403 = vld [vmem:[%s7 + $0xa8] sm:$0xff]
    %v6404 = vld [vmem:[%s7 + $0xb0] sm:$0xff]
    %v6405 = vld [vmem:[%s7 + $0xb8] sm:$0xff]
    %v6406 = vld [vmem:[%s7 + $0xc0] sm:$0xff]
    %v6407 = vld [vmem:[%s7 + $0xc8] sm:$0xff]
    %v6408 = vld [vmem:[%s7 + $0xd0] sm:$0xff]
    %v6409 = vld [vmem:[%s7 + $0xd8] sm:$0xff]
    %v6410 = vld [vmem:[%s7 + $0xe0] sm:$0xff]
    %v6411 = vld [vmem:[%s7 + $0xe8] sm:$0xff]
    %v6412 = vld [vmem:[%s7 + $0xf0] sm:$0xff]
    %v6413 = vld [vmem:[%s7 + $0xf8] sm:$0xff]
    %v6414 = vld [vmem:[%s7 + $0x100] sm:$0xff]
    %v6415 = vld [vmem:[%s7 + $0x108] sm:$0xff]
    %v6416 = vld [vmem:[%s7 + $0x110] sm:$0xff]
    %v6417 = vld [vmem:[%s7 + $0x118] sm:$0xff]
    %v6418 = vld [vmem:[%s7 + $0x120] sm:$0xff]
    %v6419 = vld [vmem:[%s7 + $0x128] sm:$0xff]
    %v6420 = vld [vmem:[%s7 + $0x130] sm:$0xff]
    %v6421 = vld [vmem:[%s7 + $0x138] sm:$0xff]
    %v6422 = vld [vmem:[%s7 + $0x140] sm:$0xff]
    %v6423 = vld [vmem:[%s7 + $0x148] sm:$0xff]
    %v6424 = vld [vmem:[%s7 + $0x150] sm:$0xff]
    %v6425 = vld [vmem:[%s7 + $0x158] sm:$0xff]
    %v6426 = vld [vmem:[%s7 + $0x160] sm:$0xff]
    %v6427 = vld [vmem:[%s7 + $0x168] sm:$0xff]
    %v6428 = vld [vmem:[%s7 + $0x170] sm:$0xff]
    %v6429 = vld [vmem:[%s7 + $0x178] sm:$0xff]
    %v6430 = vld [vmem:[%s7 + $0x180] sm:$0xff]
    %v6431 = vld [vmem:[%s7 + $0x188] sm:$0xff]
    %v6432 = vld [vmem:[%s7 + $0x190] sm:$0xff]
    %v6433 = vld [vmem:[%s7 + $0x198] sm:$0xff]
    %v6434 = vld [vmem:[%s7 + $0x1a0] sm:$0xff]
    %v6435 = vld [vmem:[%s7 + $0x1a8] sm:$0xff]
    %v6436 = vld [vmem:[%s7 + $0x1b0] sm:$0xff]
    %v6437 = vld [vmem:[%s7 + $0x1b8] sm:$0xff]
    %v6438 = vld [vmem:[%s7 + $0x1c0] sm:$0xff]
    %v6439 = vld [vmem:[%s7 + $0x1c8] sm:$0xff]
    %v6440 = vld [vmem:[%s7 + $0x1d0] sm:$0xff]
    %v6441 = vld [vmem:[%s7 + $0x1d8] sm:$0xff]
    %v6442 = vld [vmem:[%s7 + $0x1e0] sm:$0xff]
    %v6443 = vld [vmem:[%s7 + $0x1e8] sm:$0xff]
    %v6444 = vld [vmem:[%s7 + $0x1f0] sm:$0xff]
    %v6445 = vld [vmem:[%s7 + $0x1f8] sm:$0xff]
    %v6446 = vld [vmem:[%s7 + $0x200] sm:$0xff]
    %v6447 = vld [vmem:[%s7 + $0x208] sm:$0xff]
    %v6448 = vld [vmem:[%s7 + $0x210] sm:$0xff]
    %v6449 = vld [vmem:[%s7 + $0x218] sm:$0xff]
    %v6450 = vld [vmem:[%s7 + $0x220] sm:$0xff]
    %v6451 = vld [vmem:[%s7 + $0x228] sm:$0xff]
    %v6452 = vld [vmem:[%s7 + $0x230] sm:$0xff]
    %v6453 = vld [vmem:[%s7 + $0x238] sm:$0xff]
    %v6454 = vld [vmem:[%s8] sm:$0x1]
    %v6456 = vlaneseq
    %v6457 = vshrl.u32 %v6456, 7
    %v6458 = vsub.s32 0, %v6457
    %v6459 = vrot.slane %v6454, %v6458
    %v6461 = vcombine.low %v6309, %v6333
    %v6462 = vcombine.high %v6309, %v6333
    %v6463 = vcombine.low %v6357, %v6381
    %v6464 = vcombine.high %v6357, %v6381
    %v6466 = vunpack.c.l.s4 1983009808
    %v6467 = vunpack.c.0.s8 %v6466
    %v6468 = vlaneseq
    %v6469 = vshrl.u32 %v6468, 7
    %v6470 = vsub.s32 %v6467, %v6469
    %v6471 = vrot.slane %v6461, %v6470
    %v6473 = vunpack.c.l.s4 1983009808
    %v6474 = vunpack.c.0.s8 %v6473
    %v6475 = vlaneseq
    %v6476 = vshrl.u32 %v6475, 7
    %v6477 = vsub.s32 %v6474, %v6476
    %v6478 = vrot.slane %v6462, %v6477
    %v6480 = vunpack.c.l.s4 1983009808
    %v6481 = vunpack.c.0.s8 %v6480
    %v6482 = vlaneseq
    %v6483 = vshrl.u32 %v6482, 7
    %v6484 = vsub.s32 %v6481, %v6483
    %v6485 = vrot.slane %v6463, %v6484
    %v6487 = vunpack.c.l.s4 1983009808
    %v6488 = vunpack.c.0.s8 %v6487
    %v6489 = vlaneseq
    %v6490 = vshrl.u32 %v6489, 7
    %v6491 = vsub.s32 %v6488, %v6490
    %v6492 = vrot.slane %v6464, %v6491
    %v6493 = vcombine.low %v6471, %v6485
    %v6494 = vcombine.high %v6471, %v6485
    %v6495 = vcombine.low %v6478, %v6492
    %v6496 = vcombine.high %v6478, %v6492
    %v6497 = vcombine.low %v6316, %v6340
    %v6498 = vcombine.low %v6364, %v6340
    %v6500 = vunpack.c.l.s4 1983009808
    %v6501 = vunpack.c.0.s8 %v6500
    %v6502 = vlaneseq
    %v6503 = vshrl.u32 %v6502, 7
    %v6504 = vsub.s32 %v6501, %v6503
    %v6505 = vrot.slane %v6497, %v6504
    %v6507 = vunpack.c.l.s4 1983009808
    %v6508 = vunpack.c.0.s8 %v6507
    %v6509 = vlaneseq
    %v6510 = vshrl.u32 %v6509, 7
    %v6511 = vsub.s32 %v6508, %v6510
    %v6512 = vrot.slane %v6498, %v6511
    %v6513 = vcombine.low %v6505, %v6512
    %v6518 = vsel %vm4071, %v6513, 0
    %6520 = vmatprep.subr.mxu0 0.0
    %6521 = vmatpush1.msra.mxu0 %v6382
    %6522 = vmatprep.subr.mxu0 0.0
    %6523 = vmatpush1.msra.mxu0 %v6383
    %6524 = vmatprep.subr.mxu0 0.0
    %6525 = vmatpush1.msra.mxu0 %v6384
    %6526 = vmatprep.subr.mxu0 0.0
    %6527 = vmatpush1.msra.mxu0 %v6385
    %6528 = vmatprep.subr.mxu0 0.0
    %6529 = vmatpush1.msra.mxu0 %v6386
    %6530 = vmatprep.subr.mxu0 0.0
    %6531 = vmatpush1.msra.mxu0 %v6387
    %6532 = vmatprep.subr.mxu0 0.0
    %6533 = vmatpush1.msra.mxu0 %v6388
    %6534 = vmatprep.subr.mxu0 0.0
    %6535 = vmatpush1.msra.mxu0 %v6389
    %6536 = vmatprep.subr.mxu0 0.0
    %6537 = vmatpush1.msra.mxu0 %v6390
    %6538 = vmatprep.subr.mxu0 0.0
    %6539 = vmatpush1.msra.mxu0 %v6391
    %6540 = vmatprep.subr.mxu0 0.0
    %6541 = vmatpush1.msra.mxu0 %v6392
    %6542 = vmatprep.subr.mxu0 0.0
    %6543 = vmatpush1.msra.mxu0 %v6393
    %6544 = vmatprep.subr.mxu0 0.0
    %6545 = vmatpush1.msra.mxu0 %v6394
    %6546 = vmatprep.subr.mxu0 0.0
    %6547 = vmatpush1.msra.mxu0 %v6395
    %6548 = vmatprep.subr.mxu0 0.0
    %6549 = vmatpush1.msra.mxu0 %v6396
    %6550 = vmatprep.subr.mxu0 0.0
    %6551 = vmatpush1.msra.mxu0 %v6397
    %6552 = vmatprep.subr.mxu0 0.0
    %6553 = vmatpush1.msra.mxu0 %v6398
    %6554 = vmatprep.subr.mxu0 0.0
    %6555 = vmatpush1.msra.mxu0 %v6399
    %6556 = vmatprep.subr.mxu0 0.0
    %6557 = vmatpush1.msra.mxu0 %v6400
    %6558 = vmatprep.subr.mxu0 0.0
    %6559 = vmatpush1.msra.mxu0 %v6401
    %6560 = vmatprep.subr.mxu0 0.0
    %6561 = vmatpush1.msra.mxu0 %v6402
    %6562 = vmatprep.subr.mxu0 0.0
    %6563 = vmatpush1.msra.mxu0 %v6403
    %6564 = vmatprep.subr.mxu0 0.0
    %6565 = vmatpush1.msra.mxu0 %v6404
    %6566 = vmatprep.subr.mxu0 0.0
    %6567 = vmatpush1.msra.mxu0 %v6405
    %6568 = vmatprep.subr.mxu0 0.0
    %6569 = vmatpush1.msra.mxu0 %v6406
    %6570 = vmatprep.subr.mxu0 0.0
    %6571 = vmatpush1.msra.mxu0 %v6407
    %6572 = vmatprep.subr.mxu0 0.0
    %6573 = vmatpush1.msra.mxu0 %v6408
    %6574 = vmatprep.subr.mxu0 0.0
    %6575 = vmatpush1.msra.mxu0 %v6409
    %6576 = vmatprep.subr.mxu0 0.0
    %6577 = vmatpush1.msra.mxu0 %v6410
    %6578 = vmatprep.subr.mxu0 0.0
    %6579 = vmatpush1.msra.mxu0 %v6411
    %6580 = vmatprep.subr.mxu0 0.0
    %6581 = vmatpush1.msra.mxu0 %v6412
    %6582 = vmatprep.subr.mxu0 0.0
    %6583 = vmatpush1.msra.mxu0 %v6413
    %6584 = vmatprep.mubr.f32.mxu0 %v6494
    %6585 = vmatmul.mubr.f32.gmra.mrb[0].mxu0 %v6493
    %v6586 = vpop.f32.mrb[0].mxu0
    %v6587 = vadd.f32 %v6459, %v6586
    %v6588 = vpop.f32.mrb[0].mxu0
    %6589 = vdwg.mxu0
    %6590 = vmatprep.subr.mxu0 0.0
    %6591 = vmatpush1.msra.mxu0 %v6414
    %6592 = vmatprep.subr.mxu0 0.0
    %6593 = vmatpush1.msra.mxu0 %v6415
    %6594 = vmatprep.subr.mxu0 0.0
    %6595 = vmatpush1.msra.mxu0 %v6416
    %6596 = vmatprep.subr.mxu0 0.0
    %6597 = vmatpush1.msra.mxu0 %v6417
    %6598 = vmatprep.subr.mxu0 0.0
    %6599 = vmatpush1.msra.mxu0 %v6418
    %6600 = vmatprep.subr.mxu0 0.0
    %6601 = vmatpush1.msra.mxu0 %v6419
    %6602 = vmatprep.subr.mxu0 0.0
    %6603 = vmatpush1.msra.mxu0 %v6420
    %6604 = vmatprep.subr.mxu0 0.0
    %6605 = vmatpush1.msra.mxu0 %v6421
    %6606 = vmatprep.subr.mxu0 0.0
    %6607 = vmatpush1.msra.mxu0 %v6422
    %6608 = vmatprep.subr.mxu0 0.0
    %6609 = vmatpush1.msra.mxu0 %v6423
    %6610 = vmatprep.subr.mxu0 0.0
    %6611 = vmatpush1.msra.mxu0 %v6424
    %6612 = vmatprep.subr.mxu0 0.0
    %6613 = vmatpush1.msra.mxu0 %v6425
    %6614 = vmatprep.subr.mxu0 0.0
    %6615 = vmatpush1.msra.mxu0 %v6426
    %6616 = vmatprep.subr.mxu0 0.0
    %6617 = vmatpush1.msra.mxu0 %v6427
    %6618 = vmatprep.subr.mxu0 0.0
    %6619 = vmatpush1.msra.mxu0 %v6428
    %6620 = vmatprep.subr.mxu0 0.0
    %6621 = vmatpush1.msra.mxu0 %v6429
    %6622 = vmatprep.subr.mxu0 0.0
    %6623 = vmatpush1.msra.mxu0 %v6430
    %6624 = vmatprep.subr.mxu0 0.0
    %6625 = vmatpush1.msra.mxu0 %v6431
    %6626 = vmatprep.subr.mxu0 0.0
    %6627 = vmatpush1.msra.mxu0 %v6432
    %6628 = vmatprep.subr.mxu0 0.0
    %6629 = vmatpush1.msra.mxu0 %v6433
    %6630 = vmatprep.subr.mxu0 0.0
    %6631 = vmatpush1.msra.mxu0 %v6434
    %6632 = vmatprep.subr.mxu0 0.0
    %6633 = vmatpush1.msra.mxu0 %v6435
    %6634 = vmatprep.subr.mxu0 0.0
    %6635 = vmatpush1.msra.mxu0 %v6436
    %6636 = vmatprep.subr.mxu0 0.0
    %6637 = vmatpush1.msra.mxu0 %v6437
    %6638 = vmatprep.subr.mxu0 0.0
    %6639 = vmatpush1.msra.mxu0 %v6438
    %6640 = vmatprep.subr.mxu0 0.0
    %6641 = vmatpush1.msra.mxu0 %v6439
    %6642 = vmatprep.subr.mxu0 0.0
    %6643 = vmatpush1.msra.mxu0 %v6440
    %6644 = vmatprep.subr.mxu0 0.0
    %6645 = vmatpush1.msra.mxu0 %v6441
    %6646 = vmatprep.subr.mxu0 0.0
    %6647 = vmatpush1.msra.mxu0 %v6442
    %6648 = vmatprep.subr.mxu0 0.0
    %6649 = vmatpush1.msra.mxu0 %v6443
    %6650 = vmatprep.subr.mxu0 0.0
    %6651 = vmatpush1.msra.mxu0 %v6444
    %6652 = vmatprep.subr.mxu0 0.0
    %6653 = vmatpush1.msra.mxu0 %v6445
    %6654 = vmatprep.mubr.f32.mxu0 %v6496
    %6655 = vmatmul.mubr.f32.gmra.mrb[0].mxu0 %v6495
    %v6656 = vpop.f32.mrb[0].mxu0
    %v6657 = vadd.f32 %v6587, %v6656
    %v6658 = vpop.f32.mrb[0].mxu0
    %6659 = vdwg.mxu0
    %6660 = vmatprep.subr.mxu0 0.0
    %6661 = vmatpush1.msra.mxu0 %v6446
    %6662 = vmatprep.subr.mxu0 0.0
    %6663 = vmatpush1.msra.mxu0 %v6447
    %6664 = vmatprep.subr.mxu0 0.0
    %6665 = vmatpush1.msra.mxu0 %v6448
    %6666 = vmatprep.subr.mxu0 0.0
    %6667 = vmatpush1.msra.mxu0 %v6449
    %6668 = vmatprep.subr.mxu0 0.0
    %6669 = vmatpush1.msra.mxu0 %v6450
    %6670 = vmatprep.subr.mxu0 0.0
    %6671 = vmatpush1.msra.mxu0 %v6451
    %6672 = vmatprep.subr.mxu0 0.0
    %6673 = vmatpush1.msra.mxu0 %v6452
    %6674 = vmatprep.subr.mxu0 0.0
    %6675 = vmatpush1.msra.mxu0 %v6453
    %6676 = vmatprep.subr.mxu0 0.0
    %6677 = vmatpush1.msra.mxu0 0.0
    %6678 = vmatprep.subr.mxu0 0.0
    %6679 = vmatpush1.msra.mxu0 0.0
    %6680 = vmatprep.subr.mxu0 0.0
    %6681 = vmatpush1.msra.mxu0 0.0
    %6682 = vmatprep.subr.mxu0 0.0
    %6683 = vmatpush1.msra.mxu0 0.0
    %6684 = vmatprep.subr.mxu0 0.0
    %6685 = vmatpush1.msra.mxu0 0.0
    %6686 = vmatprep.subr.mxu0 0.0
    %6687 = vmatpush1.msra.mxu0 0.0
    %6688 = vmatprep.subr.mxu0 0.0
    %6689 = vmatpush1.msra.mxu0 0.0
    %6690 = vmatprep.subr.mxu0 0.0
    %6691 = vmatpush1.msra.mxu0 0.0
    %6692 = vmatprep.subr.mxu0 0.0
    %6693 = vmatpush1.msra.mxu0 0.0
    %6694 = vmatprep.subr.mxu0 0.0
    %6695 = vmatpush1.msra.mxu0 0.0
    %6696 = vmatprep.subr.mxu0 0.0
    %6697 = vmatpush1.msra.mxu0 0.0
    %6698 = vmatprep.subr.mxu0 0.0
    %6699 = vmatpush1.msra.mxu0 0.0
    %6700 = vmatprep.subr.mxu0 0.0
    %6701 = vmatpush1.msra.mxu0 0.0
    %6702 = vmatprep.subr.mxu0 0.0
    %6703 = vmatpush1.msra.mxu0 0.0
    %6704 = vmatprep.subr.mxu0 0.0
    %6705 = vmatpush1.msra.mxu0 0.0
    %6706 = vmatprep.subr.mxu0 0.0
    %6707 = vmatpush1.msra.mxu0 0.0
    %6708 = vmatprep.subr.mxu0 0.0
    %6709 = vmatpush1.msra.mxu0 0.0
    %6710 = vmatprep.subr.mxu0 0.0
    %6711 = vmatpush1.msra.mxu0 0.0
    %6712 = vmatprep.subr.mxu0 0.0
    %6713 = vmatpush1.msra.mxu0 0.0
    %6714 = vmatprep.subr.mxu0 0.0
    %6715 = vmatpush1.msra.mxu0 0.0
    %6716 = vmatprep.subr.mxu0 0.0
    %6717 = vmatpush1.msra.mxu0 0.0
    %6718 = vmatprep.subr.mxu0 0.0
    %6719 = vmatpush1.msra.mxu0 0.0
    %6720 = vmatprep.subr.mxu0 0.0
    %6721 = vmatpush1.msra.mxu0 0.0
    %6722 = vmatprep.subr.mxu0 0.0
    %6723 = vmatpush1.msra.mxu0 0.0
    %6724 = vmatprep.mubr.f32.mxu0 0.0
    %6725 = vmatmul.mubr.f32.gmra.mrb[0].mxu0 %v6518
    %v6726 = vpop.f32.mrb[0].mxu0
    %v6727 = vadd.f32 %v6657, %v6726
    %v6728 = vpop.f32.mrb[0].mxu0
    %6729 = vdwg.mxu0
    %v6730 = vmax.f32 %v6727, 0.0
    %v6732 = vcombine.high %v6730, %v6730
    %v6734 = vunpack.c.l.s4 1983009808
    %v6735 = vunpack.c.0.s8 %v6734
    %v6736 = vlaneseq
    %v6737 = vshrl.u32 %v6736, 7
    %v6738 = vsub.s32 %v6735, %v6737
    %v6739 = vrot.slane %v6730, %v6738
    %v6741 = vunpack.c.l.s4 1983009808
    %v6742 = vunpack.c.0.s8 %v6741
    %v6743 = vlaneseq
    %v6744 = vshrl.u32 %v6743, 7
    %v6745 = vsub.s32 %v6742, %v6744
    %v6746 = vrot.slane %v6732, %v6745
    %v6747 = vcombine.high %v6739, %v6739
    %v6748 = vcombine.high %v6746, %v6746
    %v6753 = vmax.f32 %v6739, %v6747
    %v6754 = vmax.f32 %v6746, %v6748
    %v6757 = vrot.slane %v6753, 7
    %v6758 = vrot.slane %v6757, 2
    %v6759 = vrot.slane %v6754, 7
    %v6760 = vrot.slane %v6759, 2
    %v6763 = vmax.f32 %v6753, %v6758
    %v6764 = vmax.f32 %v6754, %v6760
    %v6765 = vadd.f32 %v6763, 0.0
    %v6766 = vadd.f32 %v6764, 0.0
    %v6769 = vlaneseq
    %v6770 = vshrl.u32 %v6769, 7
    %v6771 = vsub.s32 0, %v6770
    %v6772 = vrot.slane %v6765, %v6771
    %v6773 = vlaneseq
    %v6774 = vshrl.u32 %v6773, 7
    %v6775 = vsub.s32 0, %v6774
    %v6776 = vrot.slane %v6766, %v6775
    %v6777 = vsel %vm3566, %v6776, %v6772
    %vm6779 = vcmask 517120
    %6780 = vst.msk [vmem:[#allocation2] sm:$0x3] %vm6779, %v6777
    // Predicated region
    $region38: #{conv4_forward.1} parent=1 // pred_check
      _
    $region39: #{conv4_forward.1} parent=1 // pred_check_branch
      %6782 = sbr.rel (0) target = $region41
    $region40: #{conv4_forward.1} parent=1 // pred_region
      %s6784 = ssub.s32 32, 32
      %6785 = vsyncadd [#allocation3], %s6784
      %s6787 = sshll.u32 [#allocation2], 4
      %s6788 = int_to_ptr.vmem [resolvable:$true] %s6787
      %6790 = dma.vmem_to_hbm [thread:$0]  %s6788, 32, %s9, [#allocation3]
    $region41: #{conv4_forward.1} parent=1 // pred_fallthru
      _
    // Predicated region
    $region42: #{conv4_forward.1} parent=1 // pred_check
      _
    $region43: #{conv4_forward.1} parent=1 // pred_check_branch
      %6792 = sbr.rel (0) target = $region45
    $region44: #{conv4_forward.1} parent=1 // pred_region
      %6793 = dma.done [#allocation3], 32
    $region45: #{conv4_forward.1} parent=1 // pred_fallthru
      _
    %6794 = vsyncpa [#allocation3], 1

</llo_original>
